<compile_context>
chip_gen: v7x
topology: tpu7x:2x2x1
jax: 0.10.0
libtpu: 0.0.40
codegen_flags: <defaults>
</compile_context>

<pallas_src>
import functools

import jax
import jax.numpy as jnp
from jax.experimental import pallas as pl
from jax.experimental.pallas import tpu as pltpu


def _basic_block_kernel(x_ref, w1_ref, w2_ref, s1_ref, b1_ref, s2_ref, b2_ref,
                        out_ref, xpad_ref, *, H, W, C):
    """One batch element: conv1+bn1+relu -> conv2+bn2+add(x)+relu, all in VMEM."""
    # Zero-fill the padded scratch once, then write the (unpadded) input block
    # into its interior -- replaces the host-side jnp.pad HBM pass.
    xpad_ref[...] = jnp.zeros_like(xpad_ref)
    x = x_ref[0].astype(jnp.float32)                      # (H, W, C); DMA'd as bf16
    xpad_ref[1:H + 1, 1:W + 1, :] = x

    def conv3x3(w_ref):
        # im2col: build the 9-tap patch matrix and issue a single deep matmul
        # (K = 9*C) instead of 9 shallow ones that starve the MXU.
        taps = [xpad_ref[kh:kh + H, kw:kw + W, :]
                for kh in range(3) for kw in range(3)]
        patches = jnp.concatenate(taps, axis=-1).reshape(H * W, 9 * C)
        return jnp.dot(patches.astype(jnp.bfloat16), w_ref[...],
                       preferred_element_type=jnp.float32)          # (H*W, C) f32

    # conv1 + folded-BN1 + ReLU; intermediate stays in VMEM (no HBM round trip).
    h = jnp.maximum(conv3x3(w1_ref) * s1_ref[0] + b1_ref[0], 0.0)
    xpad_ref[1:H + 1, 1:W + 1, :] = h.reshape(H, W, C)    # borders are still zero

    # conv2 + folded-BN2 + residual add + ReLU (all f32).
    out = conv3x3(w2_ref) * s2_ref[0] + b2_ref[0]
    out = jnp.maximum(out.reshape(H, W, C) + x, 0.0)

    # Lane-dense store: fold W into the lane axis (W*C is a multiple of 128 here).
    out_ref[...] = out.reshape(1, H, W * C).astype(out_ref.dtype)


def fold_bn(gamma, beta, mean, var, eps=1e-5):
    scale = gamma / jnp.sqrt(var + eps)
    bias = beta - mean * scale
    return scale, bias


def basic_block_forward(x_nchw, params):
    """BasicBlock forward. Input/output in NCHW to match the PyTorch module."""
    N, C, H, W = x_nchw.shape
    # NCHW -> NHWC, cast activations to bf16 (halves input DMA traffic; MXU is
    # bf16-native on v5e/v6e/v7x).  BN / residual / output stay f32.
    x = jnp.transpose(x_nchw, (0, 2, 3, 1)).astype(jnp.bfloat16)

    s1, b1 = fold_bn(params["g1"], params["be1"], params["m1"], params["v1"])
    s2, b2 = fold_bn(params["g2"], params["be2"], params["m2"], params["v2"])
    # HWIO (3,3,Cin,Cout) -> (9*Cin, Cout), matching im2col column order (t*C + c).
    w1 = params["w1"].reshape(9 * C, C).astype(jnp.bfloat16)
    w2 = params["w2"].reshape(9 * C, C).astype(jnp.bfloat16)

    kernel = functools.partial(_basic_block_kernel, H=H, W=W, C=C)

    out_flat = pl.pallas_call(
        kernel,
        grid=(N,),
        in_specs=[
            pl.BlockSpec((1, H, W, C), lambda n: (n, 0, 0, 0)),   # x (bf16)
            pl.BlockSpec((9 * C, C), lambda n: (0, 0)),           # w1 (bf16)
            pl.BlockSpec((9 * C, C), lambda n: (0, 0)),           # w2 (bf16)
            pl.BlockSpec((1, C), lambda n: (0, 0)),               # bn1 scale
            pl.BlockSpec((1, C), lambda n: (0, 0)),               # bn1 bias
            pl.BlockSpec((1, C), lambda n: (0, 0)),               # bn2 scale
            pl.BlockSpec((1, C), lambda n: (0, 0)),               # bn2 bias
        ],
        out_specs=pl.BlockSpec((1, H, W * C), lambda n: (n, 0, 0)),
        out_shape=jax.ShapeDtypeStruct((N, H, W * C), jnp.float32),
        scratch_shapes=[
            pltpu.VMEM((H + 2, W + 2, C), jnp.float32),   # padded act, reused by both convs
        ],
        compiler_params=pltpu.CompilerParams(
            dimension_semantics=("parallel",),            # shard batch over v7x's 2 TCs
        ),
    )(x, w1, w2, s1.reshape(1, C), b1.reshape(1, C),
      s2.reshape(1, C), b2.reshape(1, C))

    out = out_flat.reshape(N, H, W, C)
    return jnp.transpose(out, (0, 3, 1, 2)).astype(x_nchw.dtype)   # NHWC -> NCHW


def reference_forward(x_nchw, params, *, conv_dtype=jnp.float32):
    """Pure-JAX (XLA) reference.  conv_dtype=bfloat16 mirrors the kernel's MXU precision."""
    xc = x_nchw.astype(conv_dtype).astype(jnp.float32)

    def conv(x, w_hwio):
        w_oihw = jnp.transpose(w_hwio, (3, 2, 0, 1))
        return jax.lax.conv_general_dilated(
            x.astype(conv_dtype), w_oihw.astype(conv_dtype), (1, 1), ((1, 1), (1, 1)),
            dimension_numbers=("NCHW", "OIHW", "NCHW"),
            preferred_element_type=jnp.float32)

    def bn(y, g, be, m, v, eps=1e-5):
        s = g / jnp.sqrt(v + eps)
        b = be - m * s
        return y * s[None, :, None, None] + b[None, :, None, None]

    out = jnp.maximum(bn(conv(xc, params["w1"]), params["g1"], params["be1"],
                         params["m1"], params["v1"]), 0.0)
    out = bn(conv(out, params["w2"]), params["g2"], params["be2"],
             params["m2"], params["v2"])
    return jnp.maximum(out + xc, 0.0)


if __name__ == "__main__":
    key = jax.random.PRNGKey(0)
    # inplanes == planes (no downsample), stride=1; W*C = 128 -> lane-dense output.
    N, C, H, W = 2, 8, 16, 16
    ks = jax.random.split(key, 8)

    x = jax.random.normal(ks[0], (N, C, H, W), jnp.float32)

    params = {
        # conv weights in HWIO layout: (3, 3, Cin, Cout)
        "w1": 0.1 * jax.random.normal(ks[1], (3, 3, C, C), jnp.float32),
        "w2": 0.1 * jax.random.normal(ks[2], (3, 3, C, C), jnp.float32),
        # BatchNorm (eval-mode) parameters / running stats
        "g1": 1.0 + 0.1 * jax.random.normal(ks[3], (C,), jnp.float32),
        "be1": 0.1 * jax.random.normal(ks[4], (C,), jnp.float32),
        "m1": 0.05 * jax.random.normal(ks[5], (C,), jnp.float32),
        "v1": 1.0 + 0.1 * jax.random.uniform(ks[6], (C,), jnp.float32),
        "g2": jnp.ones((C,), jnp.float32),
        "be2": jnp.zeros((C,), jnp.float32),
        "m2": 0.05 * jax.random.normal(ks[7], (C,), jnp.float32),
        "v2": jnp.ones((C,), jnp.float32),
    }

    out = jax.jit(basic_block_forward)(x, params)
    out = jax.block_until_ready(out)
    assert out.shape == (N, C, H, W)

    # Matched-precision reference (bf16 MXU operands, f32 accumulate): tight check.
    ref_bf16 = reference_forward(x, params, conv_dtype=jnp.bfloat16)
    assert jnp.allclose(out, ref_bf16, atol=2e-2, rtol=2e-2), "mismatch vs bf16 reference"

    # Full-f32 reference (exact PyTorch-module math): loose check — the kernel
    # intentionally uses bf16 inference precision on the MXU inputs.
    ref_f32 = reference_forward(x, params)
    assert jnp.allclose(out, ref_f32, atol=6e-2, rtol=6e-2), "mismatch vs f32 reference"

    print("KERNEL_OK")
</pallas_src>

<mosaic_0001>
module attributes {stable_mosaic.version = 11 : i64} {
  func.func @_basic_block_kernel(%arg0: i32, %arg1: memref<1x16x16x8xbf16, #tpu.memory_space<vmem>>, %arg2: memref<72x8xbf16, #tpu.memory_space<vmem>>, %arg3: memref<72x8xbf16, #tpu.memory_space<vmem>>, %arg4: memref<1x8xf32, #tpu.memory_space<vmem>>, %arg5: memref<1x8xf32, #tpu.memory_space<vmem>>, %arg6: memref<1x8xf32, #tpu.memory_space<vmem>>, %arg7: memref<1x8xf32, #tpu.memory_space<vmem>>, %arg8: memref<1x16x128xf32, #tpu.memory_space<vmem>>, %arg9: memref<18x18x8xf32, #tpu.memory_space<vmem>>) attributes {dimension_semantics = [#tpu.dimension_semantics<parallel>], iteration_bounds = array<i64: 2>, scalar_prefetch = 0 : i64, scratch_operands = 1 : i64, tpu.core_type = #tpu.core_type<tc>, window_params = [{transform_indices = @transform_0, window_bounds = array<i64: 1, 16, 16, 8>}, {pipeline_mode = #tpu.pipeline_mode<synchronous>, transform_indices = @transform_1, window_bounds = array<i64: 72, 8>}, {pipeline_mode = #tpu.pipeline_mode<synchronous>, transform_indices = @transform_2, window_bounds = array<i64: 72, 8>}, {pipeline_mode = #tpu.pipeline_mode<synchronous>, transform_indices = @transform_3, window_bounds = array<i64: 1, 8>}, {pipeline_mode = #tpu.pipeline_mode<synchronous>, transform_indices = @transform_4, window_bounds = array<i64: 1, 8>}, {pipeline_mode = #tpu.pipeline_mode<synchronous>, transform_indices = @transform_5, window_bounds = array<i64: 1, 8>}, {pipeline_mode = #tpu.pipeline_mode<synchronous>, transform_indices = @transform_6, window_bounds = array<i64: 1, 8>}, {transform_indices = @transform_7, window_bounds = array<i64: 1, 16, 128>}]} {
    %cst = arith.constant 0.000000e+00 : f32
    %0 = vector.broadcast %cst : f32 to vector<18x18x8xf32>
    %c0 = arith.constant 0 : index
    %c0_0 = arith.constant 0 : index
    %c0_1 = arith.constant 0 : index
    %1 = vector.load %arg9[%c0, %c0_0, %c0_1] : memref<18x18x8xf32, #tpu.memory_space<vmem>>, vector<18x18x8xf32>
    tpu.vector_store %arg9[%c0, %c0_0, %c0_1], %0 {strides = array<i32>} : memref<18x18x8xf32, #tpu.memory_space<vmem>>, vector<18x18x8xf32>,
    %c0_2 = arith.constant 0 : index
    %c0_3 = arith.constant 0 : index
    %c0_4 = arith.constant 0 : index
    %c0_5 = arith.constant 0 : index
    %2 = vector.load %arg1[%c0_2, %c0_3, %c0_4, %c0_5] : memref<1x16x16x8xbf16, #tpu.memory_space<vmem>>, vector<1x16x16x8xbf16>
    %3 = vector.shape_cast %2 : vector<1x16x16x8xbf16> to vector<16x16x8xbf16>
    %4 = arith.extf %3 : vector<16x16x8xbf16> to vector<16x16x8xf32>
    %c1 = arith.constant 1 : index
    %c1_6 = arith.constant 1 : index
    %c0_7 = arith.constant 0 : index
    %5 = vector.load %arg9[%c1, %c1_6, %c0_7] : memref<18x18x8xf32, #tpu.memory_space<vmem>>, vector<16x16x8xf32>
    tpu.vector_store %arg9[%c1, %c1_6, %c0_7], %4 {strides = array<i32>} : memref<18x18x8xf32, #tpu.memory_space<vmem>>, vector<16x16x8xf32>,
    %c0_8 = arith.constant 0 : index
    %c0_9 = arith.constant 0 : index
    %c0_10 = arith.constant 0 : index
    %6 = vector.load %arg9[%c0_8, %c0_9, %c0_10] : memref<18x18x8xf32, #tpu.memory_space<vmem>>, vector<16x16x8xf32>
    %c0_11 = arith.constant 0 : index
    %c1_12 = arith.constant 1 : index
    %c0_13 = arith.constant 0 : index
    %7 = vector.load %arg9[%c0_11, %c1_12, %c0_13] : memref<18x18x8xf32, #tpu.memory_space<vmem>>, vector<16x16x8xf32>
    %c0_14 = arith.constant 0 : index
    %c2 = arith.constant 2 : index
    %c0_15 = arith.constant 0 : index
    %8 = vector.load %arg9[%c0_14, %c2, %c0_15] : memref<18x18x8xf32, #tpu.memory_space<vmem>>, vector<16x16x8xf32>
    %c1_16 = arith.constant 1 : index
    %c0_17 = arith.constant 0 : index
    %c0_18 = arith.constant 0 : index
    %9 = vector.load %arg9[%c1_16, %c0_17, %c0_18] : memref<18x18x8xf32, #tpu.memory_space<vmem>>, vector<16x16x8xf32>
    %c1_19 = arith.constant 1 : index
    %c1_20 = arith.constant 1 : index
    %c0_21 = arith.constant 0 : index
    %10 = vector.load %arg9[%c1_19, %c1_20, %c0_21] : memref<18x18x8xf32, #tpu.memory_space<vmem>>, vector<16x16x8xf32>
    %c1_22 = arith.constant 1 : index
    %c2_23 = arith.constant 2 : index
    %c0_24 = arith.constant 0 : index
    %11 = vector.load %arg9[%c1_22, %c2_23, %c0_24] : memref<18x18x8xf32, #tpu.memory_space<vmem>>, vector<16x16x8xf32>
    %c2_25 = arith.constant 2 : index
    %c0_26 = arith.constant 0 : index
    %c0_27 = arith.constant 0 : index
    %12 = vector.load %arg9[%c2_25, %c0_26, %c0_27] : memref<18x18x8xf32, #tpu.memory_space<vmem>>, vector<16x16x8xf32>
    %c2_28 = arith.constant 2 : index
    %c1_29 = arith.constant 1 : index
    %c0_30 = arith.constant 0 : index
    %13 = vector.load %arg9[%c2_28, %c1_29, %c0_30] : memref<18x18x8xf32, #tpu.memory_space<vmem>>, vector<16x16x8xf32>
    %c2_31 = arith.constant 2 : index
    %c2_32 = arith.constant 2 : index
    %c0_33 = arith.constant 0 : index
    %14 = vector.load %arg9[%c2_31, %c2_32, %c0_33] : memref<18x18x8xf32, #tpu.memory_space<vmem>>, vector<16x16x8xf32>
    %15 = tpu.concatenate %6, %7, %8, %9, %10, %11, %12, %13, %14 in 2 : vector<16x16x8xf32>, vector<16x16x8xf32>, vector<16x16x8xf32>, vector<16x16x8xf32>, vector<16x16x8xf32>, vector<16x16x8xf32>, vector<16x16x8xf32>, vector<16x16x8xf32>, vector<16x16x8xf32> -> vector<16x16x72xf32>
    %16 = vector.shape_cast %15 : vector<16x16x72xf32> to vector<256x72xf32>
    %17 = arith.truncf %16 : vector<256x72xf32> to vector<256x72xbf16>
    %c0_34 = arith.constant 0 : index
    %c0_35 = arith.constant 0 : index
    %18 = vector.load %arg2[%c0_34, %c0_35] : memref<72x8xbf16, #tpu.memory_space<vmem>>, vector<72x8xbf16>
    %cst_36 = arith.constant dense<0.000000e+00> : vector<256x8xf32>
    %19 = tpu.matmul %17, %18, %cst_36 {dimension_numbers = #tpu.dot_dimension_numbers<[1], [0], [0], [1], [0, 0, 1, 1], [], []>} : vector<256x72xbf16>, vector<72x8xbf16>, vector<256x8xf32> -> vector<256x8xf32>
    %c0_37 = arith.constant 0 : index
    %c0_38 = arith.constant 0 : index
    %20 = vector.load %arg4[%c0_37, %c0_38] : memref<1x8xf32, #tpu.memory_space<vmem>>, vector<1x8xf32>
    %21 = vector.shape_cast %20 : vector<1x8xf32> to vector<8xf32>
    %22 = vector.shape_cast %21 : vector<8xf32> to vector<1x8xf32>
    %23 = vector.broadcast %22 : vector<1x8xf32> to vector<256x8xf32>
    %24 = arith.mulf %19, %23 : vector<256x8xf32>
    %c0_39 = arith.constant 0 : index
    %c0_40 = arith.constant 0 : index
    %25 = vector.load %arg5[%c0_39, %c0_40] : memref<1x8xf32, #tpu.memory_space<vmem>>, vector<1x8xf32>
    %26 = vector.shape_cast %25 : vector<1x8xf32> to vector<8xf32>
    %27 = vector.shape_cast %26 : vector<8xf32> to vector<1x8xf32>
    %28 = vector.broadcast %27 : vector<1x8xf32> to vector<256x8xf32>
    %29 = arith.addf %24, %28 : vector<256x8xf32>
    %cst_41 = arith.constant 0.000000e+00 : f32
    %30 = vector.broadcast %cst_41 : f32 to vector<256x8xf32>
    %31 = arith.maximumf %29, %30 : vector<256x8xf32>
    %32 = vector.shape_cast %31 : vector<256x8xf32> to vector<16x16x8xf32>
    %c1_42 = arith.constant 1 : index
    %c1_43 = arith.constant 1 : index
    %c0_44 = arith.constant 0 : index
    %33 = vector.load %arg9[%c1_42, %c1_43, %c0_44] : memref<18x18x8xf32, #tpu.memory_space<vmem>>, vector<16x16x8xf32>
    tpu.vector_store %arg9[%c1_42, %c1_43, %c0_44], %32 {strides = array<i32>} : memref<18x18x8xf32, #tpu.memory_space<vmem>>, vector<16x16x8xf32>,
    %c0_45 = arith.constant 0 : index
    %c0_46 = arith.constant 0 : index
    %c0_47 = arith.constant 0 : index
    %34 = vector.load %arg9[%c0_45, %c0_46, %c0_47] : memref<18x18x8xf32, #tpu.memory_space<vmem>>, vector<16x16x8xf32>
    %c0_48 = arith.constant 0 : index
    %c1_49 = arith.constant 1 : index
    %c0_50 = arith.constant 0 : index
    %35 = vector.load %arg9[%c0_48, %c1_49, %c0_50] : memref<18x18x8xf32, #tpu.memory_space<vmem>>, vector<16x16x8xf32>
    %c0_51 = arith.constant 0 : index
    %c2_52 = arith.constant 2 : index
    %c0_53 = arith.constant 0 : index
    %36 = vector.load %arg9[%c0_51, %c2_52, %c0_53] : memref<18x18x8xf32, #tpu.memory_space<vmem>>, vector<16x16x8xf32>
    %c1_54 = arith.constant 1 : index
    %c0_55 = arith.constant 0 : index
    %c0_56 = arith.constant 0 : index
    %37 = vector.load %arg9[%c1_54, %c0_55, %c0_56] : memref<18x18x8xf32, #tpu.memory_space<vmem>>, vector<16x16x8xf32>
    %c1_57 = arith.constant 1 : index
    %c1_58 = arith.constant 1 : index
    %c0_59 = arith.constant 0 : index
    %38 = vector.load %arg9[%c1_57, %c1_58, %c0_59] : memref<18x18x8xf32, #tpu.memory_space<vmem>>, vector<16x16x8xf32>
    %c1_60 = arith.constant 1 : index
    %c2_61 = arith.constant 2 : index
    %c0_62 = arith.constant 0 : index
    %39 = vector.load %arg9[%c1_60, %c2_61, %c0_62] : memref<18x18x8xf32, #tpu.memory_space<vmem>>, vector<16x16x8xf32>
    %c2_63 = arith.constant 2 : index
    %c0_64 = arith.constant 0 : index
    %c0_65 = arith.constant 0 : index
    %40 = vector.load %arg9[%c2_63, %c0_64, %c0_65] : memref<18x18x8xf32, #tpu.memory_space<vmem>>, vector<16x16x8xf32>
    %c2_66 = arith.constant 2 : index
    %c1_67 = arith.constant 1 : index
    %c0_68 = arith.constant 0 : index
    %41 = vector.load %arg9[%c2_66, %c1_67, %c0_68] : memref<18x18x8xf32, #tpu.memory_space<vmem>>, vector<16x16x8xf32>
    %c2_69 = arith.constant 2 : index
    %c2_70 = arith.constant 2 : index
    %c0_71 = arith.constant 0 : index
    %42 = vector.load %arg9[%c2_69, %c2_70, %c0_71] : memref<18x18x8xf32, #tpu.memory_space<vmem>>, vector<16x16x8xf32>
    %43 = tpu.concatenate %34, %35, %36, %37, %38, %39, %40, %41, %42 in 2 : vector<16x16x8xf32>, vector<16x16x8xf32>, vector<16x16x8xf32>, vector<16x16x8xf32>, vector<16x16x8xf32>, vector<16x16x8xf32>, vector<16x16x8xf32>, vector<16x16x8xf32>, vector<16x16x8xf32> -> vector<16x16x72xf32>
    %44 = vector.shape_cast %43 : vector<16x16x72xf32> to vector<256x72xf32>
    %45 = arith.truncf %44 : vector<256x72xf32> to vector<256x72xbf16>
    %c0_72 = arith.constant 0 : index
    %c0_73 = arith.constant 0 : index
    %46 = vector.load %arg3[%c0_72, %c0_73] : memref<72x8xbf16, #tpu.memory_space<vmem>>, vector<72x8xbf16>
    %cst_74 = arith.constant dense<0.000000e+00> : vector<256x8xf32>
    %47 = tpu.matmul %45, %46, %cst_74 {dimension_numbers = #tpu.dot_dimension_numbers<[1], [0], [0], [1], [0, 0, 1, 1], [], []>} : vector<256x72xbf16>, vector<72x8xbf16>, vector<256x8xf32> -> vector<256x8xf32>
    %c0_75 = arith.constant 0 : index
    %c0_76 = arith.constant 0 : index
    %48 = vector.load %arg6[%c0_75, %c0_76] : memref<1x8xf32, #tpu.memory_space<vmem>>, vector<1x8xf32>
    %49 = vector.shape_cast %48 : vector<1x8xf32> to vector<8xf32>
    %50 = vector.shape_cast %49 : vector<8xf32> to vector<1x8xf32>
    %51 = vector.broadcast %50 : vector<1x8xf32> to vector<256x8xf32>
    %52 = arith.mulf %47, %51 : vector<256x8xf32>
    %c0_77 = arith.constant 0 : index
    %c0_78 = arith.constant 0 : index
    %53 = vector.load %arg7[%c0_77, %c0_78] : memref<1x8xf32, #tpu.memory_space<vmem>>, vector<1x8xf32>
    %54 = vector.shape_cast %53 : vector<1x8xf32> to vector<8xf32>
    %55 = vector.shape_cast %54 : vector<8xf32> to vector<1x8xf32>
    %56 = vector.broadcast %55 : vector<1x8xf32> to vector<256x8xf32>
    %57 = arith.addf %52, %56 : vector<256x8xf32>
    %58 = vector.shape_cast %57 : vector<256x8xf32> to vector<16x16x8xf32>
    %59 = arith.addf %58, %4 : vector<16x16x8xf32>
    %cst_79 = arith.constant 0.000000e+00 : f32
    %60 = vector.broadcast %cst_79 : f32 to vector<16x16x8xf32>
    %61 = arith.maximumf %59, %60 : vector<16x16x8xf32>
    %62 = vector.shape_cast %61 : vector<16x16x8xf32> to vector<1x16x128xf32>
    %c0_80 = arith.constant 0 : index
    %c0_81 = arith.constant 0 : index
    %c0_82 = arith.constant 0 : index
    %63 = vector.load %arg8[%c0_80, %c0_81, %c0_82] : memref<1x16x128xf32, #tpu.memory_space<vmem>>, vector<1x16x128xf32>
    tpu.vector_store %arg8[%c0_80, %c0_81, %c0_82], %62 {strides = array<i32>} : memref<1x16x128xf32, #tpu.memory_space<vmem>>, vector<1x16x128xf32>,
    return
  }
  func.func @transform_0(%arg0: i32) -> (i32, i32, i32, i32) {
    %c0_i32 = arith.constant 0 : i32
    %c0_i32_0 = arith.constant 0 : i32
    %c0_i32_1 = arith.constant 0 : i32
    %c0_i32_2 = arith.constant 0 : i32
    return %arg0, %c0_i32, %c0_i32_0, %c0_i32_1 : i32, i32, i32, i32
  }
  func.func @transform_1(%arg0: i32) -> (i32, i32) {
    %c0_i32 = arith.constant 0 : i32
    %c0_i32_0 = arith.constant 0 : i32
    %c0_i32_1 = arith.constant 0 : i32
    return %c0_i32, %c0_i32_0 : i32, i32
  }
  func.func @transform_2(%arg0: i32) -> (i32, i32) {
    %c0_i32 = arith.constant 0 : i32
    %c0_i32_0 = arith.constant 0 : i32
    %c0_i32_1 = arith.constant 0 : i32
    return %c0_i32, %c0_i32_0 : i32, i32
  }
  func.func @transform_3(%arg0: i32) -> (i32, i32) {
    %c0_i32 = arith.constant 0 : i32
    %c0_i32_0 = arith.constant 0 : i32
    %c0_i32_1 = arith.constant 0 : i32
    return %c0_i32, %c0_i32_0 : i32, i32
  }
  func.func @transform_4(%arg0: i32) -> (i32, i32) {
    %c0_i32 = arith.constant 0 : i32
    %c0_i32_0 = arith.constant 0 : i32
    %c0_i32_1 = arith.constant 0 : i32
    return %c0_i32, %c0_i32_0 : i32, i32
  }
  func.func @transform_5(%arg0: i32) -> (i32, i32) {
    %c0_i32 = arith.constant 0 : i32
    %c0_i32_0 = arith.constant 0 : i32
    %c0_i32_1 = arith.constant 0 : i32
    return %c0_i32, %c0_i32_0 : i32, i32
  }
  func.func @transform_6(%arg0: i32) -> (i32, i32) {
    %c0_i32 = arith.constant 0 : i32
    %c0_i32_0 = arith.constant 0 : i32
    %c0_i32_1 = arith.constant 0 : i32
    return %c0_i32, %c0_i32_0 : i32, i32
  }
  func.func @transform_7(%arg0: i32) -> (i32, i32, i32) {
    %c0_i32 = arith.constant 0 : i32
    %c0_i32_0 = arith.constant 0 : i32
    %c0_i32_1 = arith.constant 0 : i32
    return %arg0, %c0_i32, %c0_i32_0 : i32, i32, i32
  }
}

</mosaic_0001>

<llo_original>
// kernel: basic_block_forward.1
$region0: #{basic_block_forward.1}
  #allocation0 [shape = 'u32[]', space=smem, size = 0x4, offset = 0x4, fixed_abs, tag = 'smem constant byte address 0x4 - core index']
  #allocation1 [shape = 'u32[144,128]{1,0:T(1,128)}', space=vmem, size = 0x12000, scoped, tag = 'internal scratch']
  #allocation2 [shape = 'f32[18,18,8]{2,1,0:T(8,128)}', space=vmem, size = 0x36000, scoped, tag = 'scratch operand']
  %s0 = inlined_call_operand.vmem [shape: bf16[2,16,16,8], index: 0, kind: input, shape index: {}]
  %s1 = inlined_call_operand.vmem [shape: bf16[72,8], index: 1, kind: input, shape index: {}]
  %s2 = inlined_call_operand.vmem [shape: bf16[72,8], index: 2, kind: input, shape index: {}]
  %s3 = inlined_call_operand.vmem [shape: f32[1,8], index: 3, kind: input, shape index: {}]
  %s4 = inlined_call_operand.vmem [shape: f32[1,8], index: 4, kind: input, shape index: {}]
  %s5 = inlined_call_operand.vmem [shape: f32[1,8], index: 5, kind: input, shape index: {}]
  %s6 = inlined_call_operand.vmem [shape: f32[1,8], index: 6, kind: input, shape index: {}]
  %s7 = inlined_call_operand.vmem [shape: f32[2,16,128], index: 7, kind: output, shape index: {}]
  %s8 = sld [smem:[#allocation0]]
  $region61: #{basic_block_forward.1} parent=0
    _
  %s10 = ssub.s32 1, %s8
  %s11 = scalar_select 0, %s10, %s8
  loop: start=0, step=1, limit=4
  $region2: #{basic_block_forward.1} parent=0 // loop_pre_header
    _
  $region3: #{basic_block_forward.1} parent=0 // loop_header
    %s13 = sphi 0, %s17
    %p14 = scmp.ge.s32.totalorder %s13, 4
    %s23 = sphi 0, %s25
    %s26 = sphi 0, %s23
    %s27 = sphi 0, %s26
    %s43 = sphi 0, %s27
    %s47 = sphi 0, %s47
    %s49 = sphi 0, %s47
    %s50 = sphi 0, %s49
    %s64 = sphi 0, %s50
    %s68 = sphi 0, %s68
    %s70 = sphi 0, %s68
    %s71 = sphi 0, %s70
    %s85 = sphi 0, %s71
    %s89 = sphi 0, %s89
    %s91 = sphi 0, %s89
    %s92 = sphi 0, %s91
    %s106 = sphi 0, %s92
    %s110 = sphi 0, %s110
    %s112 = sphi 0, %s110
    %s113 = sphi 0, %s112
    %s127 = sphi 0, %s113
    %s131 = sphi 0, %s131
    %s133 = sphi 0, %s131
    %s134 = sphi 0, %s133
    %s148 = sphi 0, %s134
    %s152 = sphi 0, %s152
    %s154 = sphi 0, %s152
    %s155 = sphi 0, %s154
    %s169 = sphi 0, %s155
    %s175 = sphi 0, %s177
    %s178 = sphi 0, %s175
    %s179 = sphi 0, %s178
    %s195 = sphi 0, %s179
  $region4: #{basic_block_forward.1} parent=0 // loop_header_branch
    %16 = sbr.rel (%p14) target = $region8
  $region5: #{basic_block_forward.1} parent=0 // loop_body
    %s18 = ssub.s32 %s13, 1
    %s19 = ssub.s32 %s13, 2
    %s20 = sadd.s32 %s13, 1
    %s21 = ssub.s32 %s13, %s20
    %p22 = scmp.eq.s32.totalorder %s21, 0
    %s24 = sadd.s32 %s23, 1
    %s25 = scalar_select %p22, %s23, %s24
    %p28 = pneg %p22
    %p29 = scmp.eq.s32.totalorder %s13, 1
    %p30 = por %p28, %p29
    %p31 = scmp.ne.s32.totalorder %s23, %s26
    %p32 = scmp.eq.s32.totalorder %s13, 0
    %p33 = por %p31, %p32
    %p34 = scmp.ne.s32.totalorder %s23, %s26
    %p35 = scmp.eq.s32.totalorder %s18, 1
    %p36 = por %p34, %p35
    %p37 = scmp.ne.s32.totalorder %s26, %s27
    %p38 = scmp.eq.s32.totalorder %s18, 0
    %p39 = por %p37, %p38
    %p40 = scmp.ne.s32.totalorder %s26, %s27
    %p41 = scmp.eq.s32.totalorder %s19, 1
    %p42 = por %p40, %p41
    %p44 = scmp.ne.s32.totalorder %s27, %s43
    %p45 = scmp.eq.s32.totalorder %s19, 0
    %p46 = por %p44, %p45
    %s48 = sadd.s32 %s47, 1
    %p51 = scmp.eq.s32.totalorder %s13, 1
    %p52 = scmp.ne.s32.totalorder %s47, %s49
    %p53 = scmp.eq.s32.totalorder %s13, 0
    %p54 = por %p52, %p53
    %p55 = scmp.ne.s32.totalorder %s47, %s49
    %p56 = scmp.eq.s32.totalorder %s18, 1
    %p57 = por %p55, %p56
    %p58 = scmp.ne.s32.totalorder %s49, %s50
    %p59 = scmp.eq.s32.totalorder %s18, 0
    %p60 = por %p58, %p59
    %p61 = scmp.ne.s32.totalorder %s49, %s50
    %p62 = scmp.eq.s32.totalorder %s19, 1
    %p63 = por %p61, %p62
    %p65 = scmp.ne.s32.totalorder %s50, %s64
    %p66 = scmp.eq.s32.totalorder %s19, 0
    %p67 = por %p65, %p66
    %s69 = sadd.s32 %s68, 1
    %p72 = scmp.eq.s32.totalorder %s13, 1
    %p73 = scmp.ne.s32.totalorder %s68, %s70
    %p74 = scmp.eq.s32.totalorder %s13, 0
    %p75 = por %p73, %p74
    %p76 = scmp.ne.s32.totalorder %s68, %s70
    %p77 = scmp.eq.s32.totalorder %s18, 1
    %p78 = por %p76, %p77
    %p79 = scmp.ne.s32.totalorder %s70, %s71
    %p80 = scmp.eq.s32.totalorder %s18, 0
    %p81 = por %p79, %p80
    %p82 = scmp.ne.s32.totalorder %s70, %s71
    %p83 = scmp.eq.s32.totalorder %s19, 1
    %p84 = por %p82, %p83
    %p86 = scmp.ne.s32.totalorder %s71, %s85
    %p87 = scmp.eq.s32.totalorder %s19, 0
    %p88 = por %p86, %p87
    %s90 = sadd.s32 %s89, 1
    %p93 = scmp.eq.s32.totalorder %s13, 1
    %p94 = scmp.ne.s32.totalorder %s89, %s91
    %p95 = scmp.eq.s32.totalorder %s13, 0
    %p96 = por %p94, %p95
    %p97 = scmp.ne.s32.totalorder %s89, %s91
    %p98 = scmp.eq.s32.totalorder %s18, 1
    %p99 = por %p97, %p98
    %p100 = scmp.ne.s32.totalorder %s91, %s92
    %p101 = scmp.eq.s32.totalorder %s18, 0
    %p102 = por %p100, %p101
    %p103 = scmp.ne.s32.totalorder %s91, %s92
    %p104 = scmp.eq.s32.totalorder %s19, 1
    %p105 = por %p103, %p104
    %p107 = scmp.ne.s32.totalorder %s92, %s106
    %p108 = scmp.eq.s32.totalorder %s19, 0
    %p109 = por %p107, %p108
    %s111 = sadd.s32 %s110, 1
    %p114 = scmp.eq.s32.totalorder %s13, 1
    %p115 = scmp.ne.s32.totalorder %s110, %s112
    %p116 = scmp.eq.s32.totalorder %s13, 0
    %p117 = por %p115, %p116
    %p118 = scmp.ne.s32.totalorder %s110, %s112
    %p119 = scmp.eq.s32.totalorder %s18, 1
    %p120 = por %p118, %p119
    %p121 = scmp.ne.s32.totalorder %s112, %s113
    %p122 = scmp.eq.s32.totalorder %s18, 0
    %p123 = por %p121, %p122
    %p124 = scmp.ne.s32.totalorder %s112, %s113
    %p125 = scmp.eq.s32.totalorder %s19, 1
    %p126 = por %p124, %p125
    %p128 = scmp.ne.s32.totalorder %s113, %s127
    %p129 = scmp.eq.s32.totalorder %s19, 0
    %p130 = por %p128, %p129
    %s132 = sadd.s32 %s131, 1
    %p135 = scmp.eq.s32.totalorder %s13, 1
    %p136 = scmp.ne.s32.totalorder %s131, %s133
    %p137 = scmp.eq.s32.totalorder %s13, 0
    %p138 = por %p136, %p137
    %p139 = scmp.ne.s32.totalorder %s131, %s133
    %p140 = scmp.eq.s32.totalorder %s18, 1
    %p141 = por %p139, %p140
    %p142 = scmp.ne.s32.totalorder %s133, %s134
    %p143 = scmp.eq.s32.totalorder %s18, 0
    %p144 = por %p142, %p143
    %p145 = scmp.ne.s32.totalorder %s133, %s134
    %p146 = scmp.eq.s32.totalorder %s19, 1
    %p147 = por %p145, %p146
    %p149 = scmp.ne.s32.totalorder %s134, %s148
    %p150 = scmp.eq.s32.totalorder %s19, 0
    %p151 = por %p149, %p150
    %s153 = sadd.s32 %s152, 1
    %p156 = scmp.eq.s32.totalorder %s13, 1
    %p157 = scmp.ne.s32.totalorder %s152, %s154
    %p158 = scmp.eq.s32.totalorder %s13, 0
    %p159 = por %p157, %p158
    %p160 = scmp.ne.s32.totalorder %s152, %s154
    %p161 = scmp.eq.s32.totalorder %s18, 1
    %p162 = por %p160, %p161
    %p163 = scmp.ne.s32.totalorder %s154, %s155
    %p164 = scmp.eq.s32.totalorder %s18, 0
    %p165 = por %p163, %p164
    %p166 = scmp.ne.s32.totalorder %s154, %s155
    %p167 = scmp.eq.s32.totalorder %s19, 1
    %p168 = por %p166, %p167
    %p170 = scmp.ne.s32.totalorder %s155, %s169
    %p171 = scmp.eq.s32.totalorder %s19, 0
    %p172 = por %p170, %p171
    %s173 = ssub.s32 %s13, %s20
    %p174 = scmp.eq.s32.totalorder %s173, 0
    %s176 = sadd.s32 %s175, 1
    %s177 = scalar_select %p174, %s175, %s176
    %p180 = pneg %p174
    %p181 = scmp.eq.s32.totalorder %s13, 1
    %p182 = por %p180, %p181
    %p183 = scmp.ne.s32.totalorder %s175, %s178
    %p184 = scmp.eq.s32.totalorder %s13, 0
    %p185 = por %p183, %p184
    %p186 = scmp.ne.s32.totalorder %s175, %s178
    %p187 = scmp.eq.s32.totalorder %s18, 1
    %p188 = por %p186, %p187
    %p189 = scmp.ne.s32.totalorder %s178, %s179
    %p190 = scmp.eq.s32.totalorder %s18, 0
    %p191 = por %p189, %p190
    %p192 = scmp.ne.s32.totalorder %s178, %s179
    %p193 = scmp.eq.s32.totalorder %s19, 1
    %p194 = por %p192, %p193
    %p196 = scmp.ne.s32.totalorder %s179, %s195
    %p197 = scmp.eq.s32.totalorder %s19, 0
    %p198 = por %p196, %p197
    %p199 = scmp.le.s32.totalorder 1, %s13
    %p200 = scmp.lt.s32.totalorder %s13, 3
    %p201 = pnand %p199, %p200
    %p202 = pneg %p201
    // Predicated region
    $region9: #{basic_block_forward.1} parent=5 // pred_check
      _
    $region10: #{basic_block_forward.1} parent=5 // pred_check_branch
      %204 = sbr.rel (%p201) target = $region12
    $region11: #{basic_block_forward.1} parent=5 // pred_region
      %s205 = ssub.s32 %s13, 1
      // Predicated region
      $region13: #{basic_block_forward.1} parent=11 // pred_check
        %p206 = pneg %p60
      $region14: #{basic_block_forward.1} parent=11 // pred_check_branch
        %208 = sbr.rel (%p206) target = $region16
      $region15: #{basic_block_forward.1} parent=11 // pred_region
        _
      $region16: #{basic_block_forward.1} parent=11 // pred_fallthru
        _
      // Predicated region
      $region17: #{basic_block_forward.1} parent=11 // pred_check
        %p209 = pneg %p81
      $region18: #{basic_block_forward.1} parent=11 // pred_check_branch
        %211 = sbr.rel (%p209) target = $region20
      $region19: #{basic_block_forward.1} parent=11 // pred_region
        _
      $region20: #{basic_block_forward.1} parent=11 // pred_fallthru
        _
      // Predicated region
      $region21: #{basic_block_forward.1} parent=11 // pred_check
        %p212 = pneg %p102
      $region22: #{basic_block_forward.1} parent=11 // pred_check_branch
        %214 = sbr.rel (%p212) target = $region24
      $region23: #{basic_block_forward.1} parent=11 // pred_region
        _
      $region24: #{basic_block_forward.1} parent=11 // pred_fallthru
        _
      // Predicated region
      $region25: #{basic_block_forward.1} parent=11 // pred_check
        %p215 = pneg %p123
      $region26: #{basic_block_forward.1} parent=11 // pred_check_branch
        %217 = sbr.rel (%p215) target = $region28
      $region27: #{basic_block_forward.1} parent=11 // pred_region
        _
      $region28: #{basic_block_forward.1} parent=11 // pred_fallthru
        _
      // Predicated region
      $region29: #{basic_block_forward.1} parent=11 // pred_check
        %p218 = pneg %p144
      $region30: #{basic_block_forward.1} parent=11 // pred_check_branch
        %220 = sbr.rel (%p218) target = $region32
      $region31: #{basic_block_forward.1} parent=11 // pred_region
        _
      $region32: #{basic_block_forward.1} parent=11 // pred_fallthru
        _
      // Predicated region
      $region33: #{basic_block_forward.1} parent=11 // pred_check
        %p221 = pneg %p165
      $region34: #{basic_block_forward.1} parent=11 // pred_check_branch
        %223 = sbr.rel (%p221) target = $region36
      $region35: #{basic_block_forward.1} parent=11 // pred_region
        _
      $region36: #{basic_block_forward.1} parent=11 // pred_fallthru
        _
    $region12: #{basic_block_forward.1} parent=5 // pred_fallthru
      _
    %p224 = scmp.lt.s32.totalorder %s13, 2
    // Predicated region
    $region37: #{basic_block_forward.1} parent=5 // pred_check
      %p225 = pneg %p224
    $region38: #{basic_block_forward.1} parent=5 // pred_check_branch
      %227 = sbr.rel (%p225) target = $region40
    $region39: #{basic_block_forward.1} parent=5 // pred_region
      // Predicated region
      $region41: #{basic_block_forward.1} parent=39 // pred_check
        %p228 = pneg %p33
      $region42: #{basic_block_forward.1} parent=39 // pred_check_branch
        %230 = sbr.rel (%p228) target = $region44
      $region43: #{basic_block_forward.1} parent=39 // pred_region
        %p231 = scmp.lt.s32.totalorder %s13, 1
        %s232 = scalar_select %p231, %s13, 1
        %s233 = smul.addr %s232, 32
        %s234 = smul.addr %s233, 4
        %s235 = scalar_lea.vmem %s0, %s234
      $region44: #{basic_block_forward.1} parent=39 // pred_fallthru
        _
    $region40: #{basic_block_forward.1} parent=5 // pred_fallthru
      _
    %p236 = scmp.le.s32.totalorder 1, %s13
    %p237 = scmp.lt.s32.totalorder %s13, 3
    %p238 = pnand %p236, %p237
    %p239 = pneg %p238
    // Predicated region
    $region45: #{basic_block_forward.1} parent=5 // pred_check
      _
    $region46: #{basic_block_forward.1} parent=5 // pred_check_branch
      %241 = sbr.rel (%p238) target = $region48
    $region47: #{basic_block_forward.1} parent=5 // pred_region
      %s242 = ssub.s32 %s13, 1
      %p243 = scmp.lt.s32.totalorder %s18, 1
      %s244 = scalar_select %p243, %s18, 1
      %s245 = smul.addr %s244, 32
      %s246 = smul.addr %s245, 4
      %s247 = scalar_lea.vmem %s0, %s246
      %p248 = pneg %p39
      %p249 = pneg %p36
      %p250 = pneg %p60
      %p251 = pneg %p57
      %p252 = pneg %p81
      %p253 = pneg %p78
      %p254 = pneg %p102
      %p255 = pneg %p99
      %p256 = pneg %p123
      %p257 = pneg %p120
      %p258 = pneg %p144
      %p259 = pneg %p141
      %p260 = pneg %p165
      %p261 = pneg %p162
      %p262 = pneg %p191
      %p263 = pneg %p188
      %p264 = scmp.lt.s32.totalorder %s18, 1
      %s265 = scalar_select %p264, %s18, 1
      %s266 = smul.addr %s265, 2
      %s267 = smul.addr %s266, 8
      %s268 = scalar_lea.vmem %s7, %s267
      %p269 = scmp.lt.s32.totalorder %s18, 1
      %s270 = scalar_select %p269, %s18, 1
      %s271 = smul.addr %s270, 32
      %s272 = smul.addr %s271, 4
      %s273 = scalar_lea.vmem %s0, %s272
      %p274 = scmp.lt.s32.totalorder %s18, 1
      %s275 = scalar_select %p274, %s18, 1
      %s276 = smul.addr %s275, 2
      %s277 = smul.addr %s276, 8
      %s278 = scalar_lea.vmem %s7, %s277
      %vm280 = vcmask 64512
      %281 = vst.msk [vmem:[#allocation2] sm:$0xff] %vm280, 0.0
      %282 = vst.msk [vmem:[#allocation2 + $0x8] sm:$0xff] %vm280, 0.0
      %vm283 = vcmask 58368
      %284 = vst.msk [vmem:[#allocation2 + $0x10] sm:$0x3] %vm283, 0.0
      %285 = vst.msk [vmem:[#allocation2 + $0x18] sm:$0xff] %vm280, 0.0
      %286 = vst.msk [vmem:[#allocation2 + $0x20] sm:$0xff] %vm280, 0.0
      %287 = vst.msk [vmem:[#allocation2 + $0x28] sm:$0x3] %vm283, 0.0
      %288 = vst.msk [vmem:[#allocation2 + $0x30] sm:$0xff] %vm280, 0.0
      %289 = vst.msk [vmem:[#allocation2 + $0x38] sm:$0xff] %vm280, 0.0
      %290 = vst.msk [vmem:[#allocation2 + $0x40] sm:$0x3] %vm283, 0.0
      %291 = vst.msk [vmem:[#allocation2 + $0x48] sm:$0xff] %vm280, 0.0
      %292 = vst.msk [vmem:[#allocation2 + $0x50] sm:$0xff] %vm280, 0.0
      %293 = vst.msk [vmem:[#allocation2 + $0x58] sm:$0x3] %vm283, 0.0
      %294 = vst.msk [vmem:[#allocation2 + $0x60] sm:$0xff] %vm280, 0.0
      %295 = vst.msk [vmem:[#allocation2 + $0x68] sm:$0xff] %vm280, 0.0
      %296 = vst.msk [vmem:[#allocation2 + $0x70] sm:$0x3] %vm283, 0.0
      %297 = vst.msk [vmem:[#allocation2 + $0x78] sm:$0xff] %vm280, 0.0
      %298 = vst.msk [vmem:[#allocation2 + $0x80] sm:$0xff] %vm280, 0.0
      %299 = vst.msk [vmem:[#allocation2 + $0x88] sm:$0x3] %vm283, 0.0
      %300 = vst.msk [vmem:[#allocation2 + $0x90] sm:$0xff] %vm280, 0.0
      %301 = vst.msk [vmem:[#allocation2 + $0x98] sm:$0xff] %vm280, 0.0
      %302 = vst.msk [vmem:[#allocation2 + $0xa0] sm:$0x3] %vm283, 0.0
      %303 = vst.msk [vmem:[#allocation2 + $0xa8] sm:$0xff] %vm280, 0.0
      %304 = vst.msk [vmem:[#allocation2 + $0xb0] sm:$0xff] %vm280, 0.0
      %305 = vst.msk [vmem:[#allocation2 + $0xb8] sm:$0x3] %vm283, 0.0
      %306 = vst.msk [vmem:[#allocation2 + $0xc0] sm:$0xff] %vm280, 0.0
      %307 = vst.msk [vmem:[#allocation2 + $0xc8] sm:$0xff] %vm280, 0.0
      %308 = vst.msk [vmem:[#allocation2 + $0xd0] sm:$0x3] %vm283, 0.0
      %309 = vst.msk [vmem:[#allocation2 + $0xd8] sm:$0xff] %vm280, 0.0
      %310 = vst.msk [vmem:[#allocation2 + $0xe0] sm:$0xff] %vm280, 0.0
      %311 = vst.msk [vmem:[#allocation2 + $0xe8] sm:$0x3] %vm283, 0.0
      %312 = vst.msk [vmem:[#allocation2 + $0xf0] sm:$0xff] %vm280, 0.0
      %313 = vst.msk [vmem:[#allocation2 + $0xf8] sm:$0xff] %vm280, 0.0
      %314 = vst.msk [vmem:[#allocation2 + $0x100] sm:$0x3] %vm283, 0.0
      %315 = vst.msk [vmem:[#allocation2 + $0x108] sm:$0xff] %vm280, 0.0
      %316 = vst.msk [vmem:[#allocation2 + $0x110] sm:$0xff] %vm280, 0.0
      %317 = vst.msk [vmem:[#allocation2 + $0x118] sm:$0x3] %vm283, 0.0
      %318 = vst.msk [vmem:[#allocation2 + $0x120] sm:$0xff] %vm280, 0.0
      %319 = vst.msk [vmem:[#allocation2 + $0x128] sm:$0xff] %vm280, 0.0
      %320 = vst.msk [vmem:[#allocation2 + $0x130] sm:$0x3] %vm283, 0.0
      %321 = vst.msk [vmem:[#allocation2 + $0x138] sm:$0xff] %vm280, 0.0
      %322 = vst.msk [vmem:[#allocation2 + $0x140] sm:$0xff] %vm280, 0.0
      %323 = vst.msk [vmem:[#allocation2 + $0x148] sm:$0x3] %vm283, 0.0
      %324 = vst.msk [vmem:[#allocation2 + $0x150] sm:$0xff] %vm280, 0.0
      %325 = vst.msk [vmem:[#allocation2 + $0x158] sm:$0xff] %vm280, 0.0
      %326 = vst.msk [vmem:[#allocation2 + $0x160] sm:$0x3] %vm283, 0.0
      %327 = vst.msk [vmem:[#allocation2 + $0x168] sm:$0xff] %vm280, 0.0
      %328 = vst.msk [vmem:[#allocation2 + $0x170] sm:$0xff] %vm280, 0.0
      %329 = vst.msk [vmem:[#allocation2 + $0x178] sm:$0x3] %vm283, 0.0
      %330 = vst.msk [vmem:[#allocation2 + $0x180] sm:$0xff] %vm280, 0.0
      %331 = vst.msk [vmem:[#allocation2 + $0x188] sm:$0xff] %vm280, 0.0
      %332 = vst.msk [vmem:[#allocation2 + $0x190] sm:$0x3] %vm283, 0.0
      %333 = vst.msk [vmem:[#allocation2 + $0x198] sm:$0xff] %vm280, 0.0
      %334 = vst.msk [vmem:[#allocation2 + $0x1a0] sm:$0xff] %vm280, 0.0
      %335 = vst.msk [vmem:[#allocation2 + $0x1a8] sm:$0x3] %vm283, 0.0
      %v336 = vld [vmem:[%s273] sm:$0xf]
      %v337 = vld [vmem:[%s273 + $0x4] sm:$0xf]
      %v338 = vld [vmem:[%s273 + $0x8] sm:$0xf]
      %v339 = vld [vmem:[%s273 + $0xc] sm:$0xf]
      %v340 = vld [vmem:[%s273 + $0x10] sm:$0xf]
      %v341 = vld [vmem:[%s273 + $0x14] sm:$0xf]
      %v342 = vld [vmem:[%s273 + $0x18] sm:$0xf]
      %v343 = vld [vmem:[%s273 + $0x1c] sm:$0xf]
      %v344 = vld [vmem:[%s273 + $0x20] sm:$0xf]
      %v345 = vld [vmem:[%s273 + $0x24] sm:$0xf]
      %v346 = vld [vmem:[%s273 + $0x28] sm:$0xf]
      %v347 = vld [vmem:[%s273 + $0x2c] sm:$0xf]
      %v348 = vld [vmem:[%s273 + $0x30] sm:$0xf]
      %v349 = vld [vmem:[%s273 + $0x34] sm:$0xf]
      %v350 = vld [vmem:[%s273 + $0x38] sm:$0xf]
      %v351 = vld [vmem:[%s273 + $0x3c] sm:$0xf]
      %v352 = vld [vmem:[%s273 + $0x40] sm:$0xf]
      %v353 = vld [vmem:[%s273 + $0x44] sm:$0xf]
      %v354 = vld [vmem:[%s273 + $0x48] sm:$0xf]
      %v355 = vld [vmem:[%s273 + $0x4c] sm:$0xf]
      %v356 = vld [vmem:[%s273 + $0x50] sm:$0xf]
      %v357 = vld [vmem:[%s273 + $0x54] sm:$0xf]
      %v358 = vld [vmem:[%s273 + $0x58] sm:$0xf]
      %v359 = vld [vmem:[%s273 + $0x5c] sm:$0xf]
      %v360 = vld [vmem:[%s273 + $0x60] sm:$0xf]
      %v361 = vld [vmem:[%s273 + $0x64] sm:$0xf]
      %v362 = vld [vmem:[%s273 + $0x68] sm:$0xf]
      %v363 = vld [vmem:[%s273 + $0x6c] sm:$0xf]
      %v364 = vld [vmem:[%s273 + $0x70] sm:$0xf]
      %v365 = vld [vmem:[%s273 + $0x74] sm:$0xf]
      %v366 = vld [vmem:[%s273 + $0x78] sm:$0xf]
      %v367 = vld [vmem:[%s273 + $0x7c] sm:$0xf]
      %v368 = vunpack.c.l.bf16 %v336
      %v369 = vunpack.c.l.bf16 %v337
      %v370 = vunpack.c.l.bf16 %v338
      %v371 = vunpack.c.l.bf16 %v339
      %v372 = vunpack.c.l.bf16 %v340
      %v373 = vunpack.c.l.bf16 %v341
      %v374 = vunpack.c.l.bf16 %v342
      %v375 = vunpack.c.l.bf16 %v343
      %v376 = vunpack.c.l.bf16 %v344
      %v377 = vunpack.c.l.bf16 %v345
      %v378 = vunpack.c.l.bf16 %v346
      %v379 = vunpack.c.l.bf16 %v347
      %v380 = vunpack.c.l.bf16 %v348
      %v381 = vunpack.c.l.bf16 %v349
      %v382 = vunpack.c.l.bf16 %v350
      %v383 = vunpack.c.l.bf16 %v351
      %v384 = vunpack.c.l.bf16 %v352
      %v385 = vunpack.c.l.bf16 %v353
      %v386 = vunpack.c.l.bf16 %v354
      %v387 = vunpack.c.l.bf16 %v355
      %v388 = vunpack.c.l.bf16 %v356
      %v389 = vunpack.c.l.bf16 %v357
      %v390 = vunpack.c.l.bf16 %v358
      %v391 = vunpack.c.l.bf16 %v359
      %v392 = vunpack.c.l.bf16 %v360
      %v393 = vunpack.c.l.bf16 %v361
      %v394 = vunpack.c.l.bf16 %v362
      %v395 = vunpack.c.l.bf16 %v363
      %v396 = vunpack.c.l.bf16 %v364
      %v397 = vunpack.c.l.bf16 %v365
      %v398 = vunpack.c.l.bf16 %v366
      %v399 = vunpack.c.l.bf16 %v367
      %s400 = scalar_lea.vmem [#allocation2], 24
      %401 = vst.msk [vmem:[%s400 + $0x1] sm:$0xff] %vm280, %v368
      %402 = vst.msk [vmem:[%s400 + $0x9] sm:$0xff] %vm280, %v369
      %403 = vst.msk [vmem:[%s400 + $0x19] sm:$0xff] %vm280, %v370
      %404 = vst.msk [vmem:[%s400 + $0x21] sm:$0xff] %vm280, %v371
      %405 = vst.msk [vmem:[%s400 + $0x31] sm:$0xff] %vm280, %v372
      %406 = vst.msk [vmem:[%s400 + $0x39] sm:$0xff] %vm280, %v373
      %407 = vst.msk [vmem:[%s400 + $0x49] sm:$0xff] %vm280, %v374
      %408 = vst.msk [vmem:[%s400 + $0x51] sm:$0xff] %vm280, %v375
      %409 = vst.msk [vmem:[%s400 + $0x61] sm:$0xff] %vm280, %v376
      %410 = vst.msk [vmem:[%s400 + $0x69] sm:$0xff] %vm280, %v377
      %411 = vst.msk [vmem:[%s400 + $0x79] sm:$0xff] %vm280, %v378
      %412 = vst.msk [vmem:[%s400 + $0x81] sm:$0xff] %vm280, %v379
      %413 = vst.msk [vmem:[%s400 + $0x91] sm:$0xff] %vm280, %v380
      %414 = vst.msk [vmem:[%s400 + $0x99] sm:$0xff] %vm280, %v381
      %415 = vst.msk [vmem:[%s400 + $0xa9] sm:$0xff] %vm280, %v382
      %416 = vst.msk [vmem:[%s400 + $0xb1] sm:$0xff] %vm280, %v383
      %417 = vst.msk [vmem:[%s400 + $0xc1] sm:$0xff] %vm280, %v384
      %418 = vst.msk [vmem:[%s400 + $0xc9] sm:$0xff] %vm280, %v385
      %419 = vst.msk [vmem:[%s400 + $0xd9] sm:$0xff] %vm280, %v386
      %420 = vst.msk [vmem:[%s400 + $0xe1] sm:$0xff] %vm280, %v387
      %421 = vst.msk [vmem:[%s400 + $0xf1] sm:$0xff] %vm280, %v388
      %422 = vst.msk [vmem:[%s400 + $0xf9] sm:$0xff] %vm280, %v389
      %423 = vst.msk [vmem:[%s400 + $0x109] sm:$0xff] %vm280, %v390
      %424 = vst.msk [vmem:[%s400 + $0x111] sm:$0xff] %vm280, %v391
      %425 = vst.msk [vmem:[%s400 + $0x121] sm:$0xff] %vm280, %v392
      %426 = vst.msk [vmem:[%s400 + $0x129] sm:$0xff] %vm280, %v393
      %427 = vst.msk [vmem:[%s400 + $0x139] sm:$0xff] %vm280, %v394
      %428 = vst.msk [vmem:[%s400 + $0x141] sm:$0xff] %vm280, %v395
      %429 = vst.msk [vmem:[%s400 + $0x151] sm:$0xff] %vm280, %v396
      %430 = vst.msk [vmem:[%s400 + $0x159] sm:$0xff] %vm280, %v397
      %431 = vst.msk [vmem:[%s400 + $0x169] sm:$0xff] %vm280, %v398
      %432 = vst.msk [vmem:[%s400 + $0x171] sm:$0xff] %vm280, %v399
      %v433 = vld [vmem:[#allocation2] sm:$0xff]
      %v434 = vld [vmem:[#allocation2 + $0x8] sm:$0xff]
      %v435 = vld [vmem:[#allocation2 + $0x18] sm:$0xff]
      %v436 = vld [vmem:[#allocation2 + $0x20] sm:$0xff]
      %v437 = vld [vmem:[#allocation2 + $0x30] sm:$0xff]
      %v438 = vld [vmem:[#allocation2 + $0x38] sm:$0xff]
      %v439 = vld [vmem:[#allocation2 + $0x48] sm:$0xff]
      %v440 = vld [vmem:[#allocation2 + $0x50] sm:$0xff]
      %v441 = vld [vmem:[#allocation2 + $0x60] sm:$0xff]
      %v442 = vld [vmem:[#allocation2 + $0x68] sm:$0xff]
      %v443 = vld [vmem:[#allocation2 + $0x78] sm:$0xff]
      %v444 = vld [vmem:[#allocation2 + $0x80] sm:$0xff]
      %v445 = vld [vmem:[#allocation2 + $0x90] sm:$0xff]
      %v446 = vld [vmem:[#allocation2 + $0x98] sm:$0xff]
      %v447 = vld [vmem:[#allocation2 + $0xa8] sm:$0xff]
      %v448 = vld [vmem:[#allocation2 + $0xb0] sm:$0xff]
      %v449 = vld [vmem:[#allocation2 + $0xc0] sm:$0xff]
      %v450 = vld [vmem:[#allocation2 + $0xc8] sm:$0xff]
      %v451 = vld [vmem:[#allocation2 + $0xd8] sm:$0xff]
      %v452 = vld [vmem:[#allocation2 + $0xe0] sm:$0xff]
      %v453 = vld [vmem:[#allocation2 + $0xf0] sm:$0xff]
      %v454 = vld [vmem:[#allocation2 + $0xf8] sm:$0xff]
      %v455 = vld [vmem:[#allocation2 + $0x108] sm:$0xff]
      %v456 = vld [vmem:[#allocation2 + $0x110] sm:$0xff]
      %v457 = vld [vmem:[#allocation2 + $0x120] sm:$0xff]
      %v458 = vld [vmem:[#allocation2 + $0x128] sm:$0xff]
      %v459 = vld [vmem:[#allocation2 + $0x138] sm:$0xff]
      %v460 = vld [vmem:[#allocation2 + $0x140] sm:$0xff]
      %v461 = vld [vmem:[#allocation2 + $0x150] sm:$0xff]
      %v462 = vld [vmem:[#allocation2 + $0x158] sm:$0xff]
      %v463 = vld [vmem:[#allocation2 + $0x168] sm:$0xff]
      %v464 = vld [vmem:[#allocation2 + $0x170] sm:$0xff]
      %v465 = vld [vmem:[#allocation2 + $0x1] sm:$0xff]
      %v466 = vld [vmem:[#allocation2 + $0x9] sm:$0xff]
      %v467 = vld [vmem:[#allocation2 + $0x19] sm:$0xff]
      %v468 = vld [vmem:[#allocation2 + $0x21] sm:$0xff]
      %v469 = vld [vmem:[#allocation2 + $0x31] sm:$0xff]
      %v470 = vld [vmem:[#allocation2 + $0x39] sm:$0xff]
      %v471 = vld [vmem:[#allocation2 + $0x49] sm:$0xff]
      %v472 = vld [vmem:[#allocation2 + $0x51] sm:$0xff]
      %v473 = vld [vmem:[#allocation2 + $0x61] sm:$0xff]
      %v474 = vld [vmem:[#allocation2 + $0x69] sm:$0xff]
      %v475 = vld [vmem:[#allocation2 + $0x79] sm:$0xff]
      %v476 = vld [vmem:[#allocation2 + $0x81] sm:$0xff]
      %v477 = vld [vmem:[#allocation2 + $0x91] sm:$0xff]
      %v478 = vld [vmem:[#allocation2 + $0x99] sm:$0xff]
      %v479 = vld [vmem:[#allocation2 + $0xa9] sm:$0xff]
      %v480 = vld [vmem:[#allocation2 + $0xb1] sm:$0xff]
      %v481 = vld [vmem:[#allocation2 + $0xc1] sm:$0xff]
      %v482 = vld [vmem:[#allocation2 + $0xc9] sm:$0xff]
      %v483 = vld [vmem:[#allocation2 + $0xd9] sm:$0xff]
      %v484 = vld [vmem:[#allocation2 + $0xe1] sm:$0xff]
      %v485 = vld [vmem:[#allocation2 + $0xf1] sm:$0xff]
      %v486 = vld [vmem:[#allocation2 + $0xf9] sm:$0xff]
      %v487 = vld [vmem:[#allocation2 + $0x109] sm:$0xff]
      %v488 = vld [vmem:[#allocation2 + $0x111] sm:$0xff]
      %v489 = vld [vmem:[#allocation2 + $0x121] sm:$0xff]
      %v490 = vld [vmem:[#allocation2 + $0x129] sm:$0xff]
      %v491 = vld [vmem:[#allocation2 + $0x139] sm:$0xff]
      %v492 = vld [vmem:[#allocation2 + $0x141] sm:$0xff]
      %v493 = vld [vmem:[#allocation2 + $0x151] sm:$0xff]
      %v494 = vld [vmem:[#allocation2 + $0x159] sm:$0xff]
      %v495 = vld [vmem:[#allocation2 + $0x169] sm:$0xff]
      %v496 = vld [vmem:[#allocation2 + $0x171] sm:$0xff]
      %v497 = vld [vmem:[#allocation2 + $0x2] sm:$0xff]
      %v498 = vld [vmem:[#allocation2 + $0xa] sm:$0xff]
      %v499 = vld [vmem:[#allocation2 + $0x1a] sm:$0xff]
      %v500 = vld [vmem:[#allocation2 + $0x22] sm:$0xff]
      %v501 = vld [vmem:[#allocation2 + $0x32] sm:$0xff]
      %v502 = vld [vmem:[#allocation2 + $0x3a] sm:$0xff]
      %v503 = vld [vmem:[#allocation2 + $0x4a] sm:$0xff]
      %v504 = vld [vmem:[#allocation2 + $0x52] sm:$0xff]
      %v505 = vld [vmem:[#allocation2 + $0x62] sm:$0xff]
      %v506 = vld [vmem:[#allocation2 + $0x6a] sm:$0xff]
      %v507 = vld [vmem:[#allocation2 + $0x7a] sm:$0xff]
      %v508 = vld [vmem:[#allocation2 + $0x82] sm:$0xff]
      %v509 = vld [vmem:[#allocation2 + $0x92] sm:$0xff]
      %v510 = vld [vmem:[#allocation2 + $0x9a] sm:$0xff]
      %v511 = vld [vmem:[#allocation2 + $0xaa] sm:$0xff]
      %v512 = vld [vmem:[#allocation2 + $0xb2] sm:$0xff]
      %v513 = vld [vmem:[#allocation2 + $0xc2] sm:$0xff]
      %v514 = vld [vmem:[#allocation2 + $0xca] sm:$0xff]
      %v515 = vld [vmem:[#allocation2 + $0xda] sm:$0xff]
      %v516 = vld [vmem:[#allocation2 + $0xe2] sm:$0xff]
      %v517 = vld [vmem:[#allocation2 + $0xf2] sm:$0xff]
      %v518 = vld [vmem:[#allocation2 + $0xfa] sm:$0xff]
      %v519 = vld [vmem:[#allocation2 + $0x10a] sm:$0xff]
      %v520 = vld [vmem:[#allocation2 + $0x112] sm:$0xff]
      %v521 = vld [vmem:[#allocation2 + $0x122] sm:$0xff]
      %v522 = vld [vmem:[#allocation2 + $0x12a] sm:$0xff]
      %v523 = vld [vmem:[#allocation2 + $0x13a] sm:$0xff]
      %v524 = vld [vmem:[#allocation2 + $0x142] sm:$0xff]
      %v525 = vld [vmem:[#allocation2 + $0x152] sm:$0xff]
      %v526 = vld [vmem:[#allocation2 + $0x15a] sm:$0xff]
      %v527 = vld [vmem:[#allocation2 + $0x16a] sm:$0xff]
      %v528 = vld [vmem:[#allocation2 + $0x172] sm:$0xff]
      %v529 = vld [vmem:[%s400] sm:$0xff]
      %v530 = vld [vmem:[%s400 + $0x8] sm:$0xff]
      %v531 = vld [vmem:[%s400 + $0x18] sm:$0xff]
      %v532 = vld [vmem:[%s400 + $0x20] sm:$0xff]
      %v533 = vld [vmem:[%s400 + $0x30] sm:$0xff]
      %v534 = vld [vmem:[%s400 + $0x38] sm:$0xff]
      %v535 = vld [vmem:[%s400 + $0x48] sm:$0xff]
      %v536 = vld [vmem:[%s400 + $0x50] sm:$0xff]
      %v537 = vld [vmem:[%s400 + $0x60] sm:$0xff]
      %v538 = vld [vmem:[%s400 + $0x68] sm:$0xff]
      %v539 = vld [vmem:[%s400 + $0x78] sm:$0xff]
      %v540 = vld [vmem:[%s400 + $0x80] sm:$0xff]
      %v541 = vld [vmem:[%s400 + $0x90] sm:$0xff]
      %v542 = vld [vmem:[%s400 + $0x98] sm:$0xff]
      %v543 = vld [vmem:[%s400 + $0xa8] sm:$0xff]
      %v544 = vld [vmem:[%s400 + $0xb0] sm:$0xff]
      %v545 = vld [vmem:[%s400 + $0xc0] sm:$0xff]
      %v546 = vld [vmem:[%s400 + $0xc8] sm:$0xff]
      %v547 = vld [vmem:[%s400 + $0xd8] sm:$0xff]
      %v548 = vld [vmem:[%s400 + $0xe0] sm:$0xff]
      %v549 = vld [vmem:[%s400 + $0xf0] sm:$0xff]
      %v550 = vld [vmem:[%s400 + $0xf8] sm:$0xff]
      %v551 = vld [vmem:[%s400 + $0x108] sm:$0xff]
      %v552 = vld [vmem:[%s400 + $0x110] sm:$0xff]
      %v553 = vld [vmem:[%s400 + $0x120] sm:$0xff]
      %v554 = vld [vmem:[%s400 + $0x128] sm:$0xff]
      %v555 = vld [vmem:[%s400 + $0x138] sm:$0xff]
      %v556 = vld [vmem:[%s400 + $0x140] sm:$0xff]
      %v557 = vld [vmem:[%s400 + $0x150] sm:$0xff]
      %v558 = vld [vmem:[%s400 + $0x158] sm:$0xff]
      %v559 = vld [vmem:[%s400 + $0x168] sm:$0xff]
      %v560 = vld [vmem:[%s400 + $0x170] sm:$0xff]
      %v561 = vld [vmem:[%s400 + $0x1] sm:$0xff]
      %v562 = vld [vmem:[%s400 + $0x9] sm:$0xff]
      %v563 = vld [vmem:[%s400 + $0x19] sm:$0xff]
      %v564 = vld [vmem:[%s400 + $0x21] sm:$0xff]
      %v565 = vld [vmem:[%s400 + $0x31] sm:$0xff]
      %v566 = vld [vmem:[%s400 + $0x39] sm:$0xff]
      %v567 = vld [vmem:[%s400 + $0x49] sm:$0xff]
      %v568 = vld [vmem:[%s400 + $0x51] sm:$0xff]
      %v569 = vld [vmem:[%s400 + $0x61] sm:$0xff]
      %v570 = vld [vmem:[%s400 + $0x69] sm:$0xff]
      %v571 = vld [vmem:[%s400 + $0x79] sm:$0xff]
      %v572 = vld [vmem:[%s400 + $0x81] sm:$0xff]
      %v573 = vld [vmem:[%s400 + $0x91] sm:$0xff]
      %v574 = vld [vmem:[%s400 + $0x99] sm:$0xff]
      %v575 = vld [vmem:[%s400 + $0xa9] sm:$0xff]
      %v576 = vld [vmem:[%s400 + $0xb1] sm:$0xff]
      %v577 = vld [vmem:[%s400 + $0xc1] sm:$0xff]
      %v578 = vld [vmem:[%s400 + $0xc9] sm:$0xff]
      %v579 = vld [vmem:[%s400 + $0xd9] sm:$0xff]
      %v580 = vld [vmem:[%s400 + $0xe1] sm:$0xff]
      %v581 = vld [vmem:[%s400 + $0xf1] sm:$0xff]
      %v582 = vld [vmem:[%s400 + $0xf9] sm:$0xff]
      %v583 = vld [vmem:[%s400 + $0x109] sm:$0xff]
      %v584 = vld [vmem:[%s400 + $0x111] sm:$0xff]
      %v585 = vld [vmem:[%s400 + $0x121] sm:$0xff]
      %v586 = vld [vmem:[%s400 + $0x129] sm:$0xff]
      %v587 = vld [vmem:[%s400 + $0x139] sm:$0xff]
      %v588 = vld [vmem:[%s400 + $0x141] sm:$0xff]
      %v589 = vld [vmem:[%s400 + $0x151] sm:$0xff]
      %v590 = vld [vmem:[%s400 + $0x159] sm:$0xff]
      %v591 = vld [vmem:[%s400 + $0x169] sm:$0xff]
      %v592 = vld [vmem:[%s400 + $0x171] sm:$0xff]
      %v593 = vld [vmem:[%s400 + $0x2] sm:$0xff]
      %v594 = vld [vmem:[%s400 + $0xa] sm:$0xff]
      %v595 = vld [vmem:[%s400 + $0x1a] sm:$0xff]
      %v596 = vld [vmem:[%s400 + $0x22] sm:$0xff]
      %v597 = vld [vmem:[%s400 + $0x32] sm:$0xff]
      %v598 = vld [vmem:[%s400 + $0x3a] sm:$0xff]
      %v599 = vld [vmem:[%s400 + $0x4a] sm:$0xff]
      %v600 = vld [vmem:[%s400 + $0x52] sm:$0xff]
      %v601 = vld [vmem:[%s400 + $0x62] sm:$0xff]
      %v602 = vld [vmem:[%s400 + $0x6a] sm:$0xff]
      %v603 = vld [vmem:[%s400 + $0x7a] sm:$0xff]
      %v604 = vld [vmem:[%s400 + $0x82] sm:$0xff]
      %v605 = vld [vmem:[%s400 + $0x92] sm:$0xff]
      %v606 = vld [vmem:[%s400 + $0x9a] sm:$0xff]
      %v607 = vld [vmem:[%s400 + $0xaa] sm:$0xff]
      %v608 = vld [vmem:[%s400 + $0xb2] sm:$0xff]
      %v609 = vld [vmem:[%s400 + $0xc2] sm:$0xff]
      %v610 = vld [vmem:[%s400 + $0xca] sm:$0xff]
      %v611 = vld [vmem:[%s400 + $0xda] sm:$0xff]
      %v612 = vld [vmem:[%s400 + $0xe2] sm:$0xff]
      %v613 = vld [vmem:[%s400 + $0xf2] sm:$0xff]
      %v614 = vld [vmem:[%s400 + $0xfa] sm:$0xff]
      %v615 = vld [vmem:[%s400 + $0x10a] sm:$0xff]
      %v616 = vld [vmem:[%s400 + $0x112] sm:$0xff]
      %v617 = vld [vmem:[%s400 + $0x122] sm:$0xff]
      %v618 = vld [vmem:[%s400 + $0x12a] sm:$0xff]
      %v619 = vld [vmem:[%s400 + $0x13a] sm:$0xff]
      %v620 = vld [vmem:[%s400 + $0x142] sm:$0xff]
      %v621 = vld [vmem:[%s400 + $0x152] sm:$0xff]
      %v622 = vld [vmem:[%s400 + $0x15a] sm:$0xff]
      %v623 = vld [vmem:[%s400 + $0x16a] sm:$0xff]
      %v624 = vld [vmem:[%s400 + $0x172] sm:$0xff]
      %s625 = scalar_lea.vmem [#allocation2], 48
      %v626 = vld [vmem:[%s625] sm:$0xff]
      %v627 = vld [vmem:[%s625 + $0x8] sm:$0xff]
      %v628 = vld [vmem:[%s625 + $0x18] sm:$0xff]
      %v629 = vld [vmem:[%s625 + $0x20] sm:$0xff]
      %v630 = vld [vmem:[%s625 + $0x30] sm:$0xff]
      %v631 = vld [vmem:[%s625 + $0x38] sm:$0xff]
      %v632 = vld [vmem:[%s625 + $0x48] sm:$0xff]
      %v633 = vld [vmem:[%s625 + $0x50] sm:$0xff]
      %v634 = vld [vmem:[%s625 + $0x60] sm:$0xff]
      %v635 = vld [vmem:[%s625 + $0x68] sm:$0xff]
      %v636 = vld [vmem:[%s625 + $0x78] sm:$0xff]
      %v637 = vld [vmem:[%s625 + $0x80] sm:$0xff]
      %v638 = vld [vmem:[%s625 + $0x90] sm:$0xff]
      %v639 = vld [vmem:[%s625 + $0x98] sm:$0xff]
      %v640 = vld [vmem:[%s625 + $0xa8] sm:$0xff]
      %v641 = vld [vmem:[%s625 + $0xb0] sm:$0xff]
      %v642 = vld [vmem:[%s625 + $0xc0] sm:$0xff]
      %v643 = vld [vmem:[%s625 + $0xc8] sm:$0xff]
      %v644 = vld [vmem:[%s625 + $0xd8] sm:$0xff]
      %v645 = vld [vmem:[%s625 + $0xe0] sm:$0xff]
      %v646 = vld [vmem:[%s625 + $0xf0] sm:$0xff]
      %v647 = vld [vmem:[%s625 + $0xf8] sm:$0xff]
      %v648 = vld [vmem:[%s625 + $0x108] sm:$0xff]
      %v649 = vld [vmem:[%s625 + $0x110] sm:$0xff]
      %v650 = vld [vmem:[%s625 + $0x120] sm:$0xff]
      %v651 = vld [vmem:[%s625 + $0x128] sm:$0xff]
      %v652 = vld [vmem:[%s625 + $0x138] sm:$0xff]
      %v653 = vld [vmem:[%s625 + $0x140] sm:$0xff]
      %v654 = vld [vmem:[%s625 + $0x150] sm:$0xff]
      %v655 = vld [vmem:[%s625 + $0x158] sm:$0xff]
      %v656 = vld [vmem:[%s625 + $0x168] sm:$0xff]
      %v657 = vld [vmem:[%s625 + $0x170] sm:$0xff]
      %v658 = vld [vmem:[%s625 + $0x1] sm:$0xff]
      %v659 = vld [vmem:[%s625 + $0x9] sm:$0xff]
      %v660 = vld [vmem:[%s625 + $0x19] sm:$0xff]
      %v661 = vld [vmem:[%s625 + $0x21] sm:$0xff]
      %v662 = vld [vmem:[%s625 + $0x31] sm:$0xff]
      %v663 = vld [vmem:[%s625 + $0x39] sm:$0xff]
      %v664 = vld [vmem:[%s625 + $0x49] sm:$0xff]
      %v665 = vld [vmem:[%s625 + $0x51] sm:$0xff]
      %v666 = vld [vmem:[%s625 + $0x61] sm:$0xff]
      %v667 = vld [vmem:[%s625 + $0x69] sm:$0xff]
      %v668 = vld [vmem:[%s625 + $0x79] sm:$0xff]
      %v669 = vld [vmem:[%s625 + $0x81] sm:$0xff]
      %v670 = vld [vmem:[%s625 + $0x91] sm:$0xff]
      %v671 = vld [vmem:[%s625 + $0x99] sm:$0xff]
      %v672 = vld [vmem:[%s625 + $0xa9] sm:$0xff]
      %v673 = vld [vmem:[%s625 + $0xb1] sm:$0xff]
      %v674 = vld [vmem:[%s625 + $0xc1] sm:$0xff]
      %v675 = vld [vmem:[%s625 + $0xc9] sm:$0xff]
      %v676 = vld [vmem:[%s625 + $0xd9] sm:$0xff]
      %v677 = vld [vmem:[%s625 + $0xe1] sm:$0xff]
      %v678 = vld [vmem:[%s625 + $0xf1] sm:$0xff]
      %v679 = vld [vmem:[%s625 + $0xf9] sm:$0xff]
      %v680 = vld [vmem:[%s625 + $0x109] sm:$0xff]
      %v681 = vld [vmem:[%s625 + $0x111] sm:$0xff]
      %v682 = vld [vmem:[%s625 + $0x121] sm:$0xff]
      %v683 = vld [vmem:[%s625 + $0x129] sm:$0xff]
      %v684 = vld [vmem:[%s625 + $0x139] sm:$0xff]
      %v685 = vld [vmem:[%s625 + $0x141] sm:$0xff]
      %v686 = vld [vmem:[%s625 + $0x151] sm:$0xff]
      %v687 = vld [vmem:[%s625 + $0x159] sm:$0xff]
      %v688 = vld [vmem:[%s625 + $0x169] sm:$0xff]
      %v689 = vld [vmem:[%s625 + $0x171] sm:$0xff]
      %v690 = vld [vmem:[%s625 + $0x2] sm:$0xff]
      %v691 = vld [vmem:[%s625 + $0xa] sm:$0xff]
      %v692 = vld [vmem:[%s625 + $0x1a] sm:$0xff]
      %v693 = vld [vmem:[%s625 + $0x22] sm:$0xff]
      %v694 = vld [vmem:[%s625 + $0x32] sm:$0xff]
      %v695 = vld [vmem:[%s625 + $0x3a] sm:$0xff]
      %v696 = vld [vmem:[%s625 + $0x4a] sm:$0xff]
      %v697 = vld [vmem:[%s625 + $0x52] sm:$0xff]
      %v698 = vld [vmem:[%s625 + $0x62] sm:$0xff]
      %v699 = vld [vmem:[%s625 + $0x6a] sm:$0xff]
      %v700 = vld [vmem:[%s625 + $0x7a] sm:$0xff]
      %v701 = vld [vmem:[%s625 + $0x82] sm:$0xff]
      %v702 = vld [vmem:[%s625 + $0x92] sm:$0xff]
      %v703 = vld [vmem:[%s625 + $0x9a] sm:$0xff]
      %v704 = vld [vmem:[%s625 + $0xaa] sm:$0xff]
      %v705 = vld [vmem:[%s625 + $0xb2] sm:$0xff]
      %v706 = vld [vmem:[%s625 + $0xc2] sm:$0xff]
      %v707 = vld [vmem:[%s625 + $0xca] sm:$0xff]
      %v708 = vld [vmem:[%s625 + $0xda] sm:$0xff]
      %v709 = vld [vmem:[%s625 + $0xe2] sm:$0xff]
      %v710 = vld [vmem:[%s625 + $0xf2] sm:$0xff]
      %v711 = vld [vmem:[%s625 + $0xfa] sm:$0xff]
      %v712 = vld [vmem:[%s625 + $0x10a] sm:$0xff]
      %v713 = vld [vmem:[%s625 + $0x112] sm:$0xff]
      %v714 = vld [vmem:[%s625 + $0x122] sm:$0xff]
      %v715 = vld [vmem:[%s625 + $0x12a] sm:$0xff]
      %v716 = vld [vmem:[%s625 + $0x13a] sm:$0xff]
      %v717 = vld [vmem:[%s625 + $0x142] sm:$0xff]
      %v718 = vld [vmem:[%s625 + $0x152] sm:$0xff]
      %v719 = vld [vmem:[%s625 + $0x15a] sm:$0xff]
      %v720 = vld [vmem:[%s625 + $0x16a] sm:$0xff]
      %v721 = vld [vmem:[%s625 + $0x172] sm:$0xff]
      %754 = vrot.lane.b32.xlu0 %v465, 8
      %v755 = vpop.permute.xlu0 %754
      %756 = vrot.lane.b32.xlu0 %v466, 8
      %v757 = vpop.permute.xlu0 %756
      %758 = vrot.lane.b32.xlu0 %v467, 8
      %v759 = vpop.permute.xlu0 %758
      %760 = vrot.lane.b32.xlu0 %v468, 8
      %v761 = vpop.permute.xlu0 %760
      %762 = vrot.lane.b32.xlu0 %v469, 8
      %v763 = vpop.permute.xlu0 %762
      %764 = vrot.lane.b32.xlu0 %v470, 8
      %v765 = vpop.permute.xlu0 %764
      %766 = vrot.lane.b32.xlu0 %v471, 8
      %v767 = vpop.permute.xlu0 %766
      %768 = vrot.lane.b32.xlu0 %v472, 8
      %v769 = vpop.permute.xlu0 %768
      %770 = vrot.lane.b32.xlu0 %v473, 8
      %v771 = vpop.permute.xlu0 %770
      %772 = vrot.lane.b32.xlu0 %v474, 8
      %v773 = vpop.permute.xlu0 %772
      %774 = vrot.lane.b32.xlu0 %v475, 8
      %v775 = vpop.permute.xlu0 %774
      %776 = vrot.lane.b32.xlu0 %v476, 8
      %v777 = vpop.permute.xlu0 %776
      %778 = vrot.lane.b32.xlu0 %v477, 8
      %v779 = vpop.permute.xlu0 %778
      %780 = vrot.lane.b32.xlu0 %v478, 8
      %v781 = vpop.permute.xlu0 %780
      %782 = vrot.lane.b32.xlu0 %v479, 8
      %v783 = vpop.permute.xlu0 %782
      %784 = vrot.lane.b32.xlu0 %v480, 8
      %v785 = vpop.permute.xlu0 %784
      %786 = vrot.lane.b32.xlu0 %v481, 8
      %v787 = vpop.permute.xlu0 %786
      %788 = vrot.lane.b32.xlu0 %v482, 8
      %v789 = vpop.permute.xlu0 %788
      %790 = vrot.lane.b32.xlu0 %v483, 8
      %v791 = vpop.permute.xlu0 %790
      %792 = vrot.lane.b32.xlu0 %v484, 8
      %v793 = vpop.permute.xlu0 %792
      %794 = vrot.lane.b32.xlu0 %v485, 8
      %v795 = vpop.permute.xlu0 %794
      %796 = vrot.lane.b32.xlu0 %v486, 8
      %v797 = vpop.permute.xlu0 %796
      %798 = vrot.lane.b32.xlu0 %v487, 8
      %v799 = vpop.permute.xlu0 %798
      %800 = vrot.lane.b32.xlu0 %v488, 8
      %v801 = vpop.permute.xlu0 %800
      %802 = vrot.lane.b32.xlu0 %v489, 8
      %v803 = vpop.permute.xlu0 %802
      %804 = vrot.lane.b32.xlu0 %v490, 8
      %v805 = vpop.permute.xlu0 %804
      %806 = vrot.lane.b32.xlu0 %v491, 8
      %v807 = vpop.permute.xlu0 %806
      %808 = vrot.lane.b32.xlu0 %v492, 8
      %v809 = vpop.permute.xlu0 %808
      %810 = vrot.lane.b32.xlu0 %v493, 8
      %v811 = vpop.permute.xlu0 %810
      %812 = vrot.lane.b32.xlu0 %v494, 8
      %v813 = vpop.permute.xlu0 %812
      %814 = vrot.lane.b32.xlu0 %v495, 8
      %v815 = vpop.permute.xlu0 %814
      %816 = vrot.lane.b32.xlu0 %v496, 8
      %v817 = vpop.permute.xlu0 %816
      %882 = vrot.lane.b32.xlu0 %v497, 16
      %v883 = vpop.permute.xlu0 %882
      %884 = vrot.lane.b32.xlu0 %v498, 16
      %v885 = vpop.permute.xlu0 %884
      %886 = vrot.lane.b32.xlu0 %v499, 16
      %v887 = vpop.permute.xlu0 %886
      %888 = vrot.lane.b32.xlu0 %v500, 16
      %v889 = vpop.permute.xlu0 %888
      %890 = vrot.lane.b32.xlu0 %v501, 16
      %v891 = vpop.permute.xlu0 %890
      %892 = vrot.lane.b32.xlu0 %v502, 16
      %v893 = vpop.permute.xlu0 %892
      %894 = vrot.lane.b32.xlu0 %v503, 16
      %v895 = vpop.permute.xlu0 %894
      %896 = vrot.lane.b32.xlu0 %v504, 16
      %v897 = vpop.permute.xlu0 %896
      %898 = vrot.lane.b32.xlu0 %v505, 16
      %v899 = vpop.permute.xlu0 %898
      %900 = vrot.lane.b32.xlu0 %v506, 16
      %v901 = vpop.permute.xlu0 %900
      %902 = vrot.lane.b32.xlu0 %v507, 16
      %v903 = vpop.permute.xlu0 %902
      %904 = vrot.lane.b32.xlu0 %v508, 16
      %v905 = vpop.permute.xlu0 %904
      %906 = vrot.lane.b32.xlu0 %v509, 16
      %v907 = vpop.permute.xlu0 %906
      %908 = vrot.lane.b32.xlu0 %v510, 16
      %v909 = vpop.permute.xlu0 %908
      %910 = vrot.lane.b32.xlu0 %v511, 16
      %v911 = vpop.permute.xlu0 %910
      %912 = vrot.lane.b32.xlu0 %v512, 16
      %v913 = vpop.permute.xlu0 %912
      %914 = vrot.lane.b32.xlu0 %v513, 16
      %v915 = vpop.permute.xlu0 %914
      %916 = vrot.lane.b32.xlu0 %v514, 16
      %v917 = vpop.permute.xlu0 %916
      %918 = vrot.lane.b32.xlu0 %v515, 16
      %v919 = vpop.permute.xlu0 %918
      %920 = vrot.lane.b32.xlu0 %v516, 16
      %v921 = vpop.permute.xlu0 %920
      %922 = vrot.lane.b32.xlu0 %v517, 16
      %v923 = vpop.permute.xlu0 %922
      %924 = vrot.lane.b32.xlu0 %v518, 16
      %v925 = vpop.permute.xlu0 %924
      %926 = vrot.lane.b32.xlu0 %v519, 16
      %v927 = vpop.permute.xlu0 %926
      %928 = vrot.lane.b32.xlu0 %v520, 16
      %v929 = vpop.permute.xlu0 %928
      %930 = vrot.lane.b32.xlu0 %v521, 16
      %v931 = vpop.permute.xlu0 %930
      %932 = vrot.lane.b32.xlu0 %v522, 16
      %v933 = vpop.permute.xlu0 %932
      %934 = vrot.lane.b32.xlu0 %v523, 16
      %v935 = vpop.permute.xlu0 %934
      %936 = vrot.lane.b32.xlu0 %v524, 16
      %v937 = vpop.permute.xlu0 %936
      %938 = vrot.lane.b32.xlu0 %v525, 16
      %v939 = vpop.permute.xlu0 %938
      %940 = vrot.lane.b32.xlu0 %v526, 16
      %v941 = vpop.permute.xlu0 %940
      %942 = vrot.lane.b32.xlu0 %v527, 16
      %v943 = vpop.permute.xlu0 %942
      %944 = vrot.lane.b32.xlu0 %v528, 16
      %v945 = vpop.permute.xlu0 %944
      %1010 = vrot.lane.b32.xlu0 %v529, 24
      %v1011 = vpop.permute.xlu0 %1010
      %1012 = vrot.lane.b32.xlu0 %v530, 24
      %v1013 = vpop.permute.xlu0 %1012
      %1014 = vrot.lane.b32.xlu0 %v531, 24
      %v1015 = vpop.permute.xlu0 %1014
      %1016 = vrot.lane.b32.xlu0 %v532, 24
      %v1017 = vpop.permute.xlu0 %1016
      %1018 = vrot.lane.b32.xlu0 %v533, 24
      %v1019 = vpop.permute.xlu0 %1018
      %1020 = vrot.lane.b32.xlu0 %v534, 24
      %v1021 = vpop.permute.xlu0 %1020
      %1022 = vrot.lane.b32.xlu0 %v535, 24
      %v1023 = vpop.permute.xlu0 %1022
      %1024 = vrot.lane.b32.xlu0 %v536, 24
      %v1025 = vpop.permute.xlu0 %1024
      %1026 = vrot.lane.b32.xlu0 %v537, 24
      %v1027 = vpop.permute.xlu0 %1026
      %1028 = vrot.lane.b32.xlu0 %v538, 24
      %v1029 = vpop.permute.xlu0 %1028
      %1030 = vrot.lane.b32.xlu0 %v539, 24
      %v1031 = vpop.permute.xlu0 %1030
      %1032 = vrot.lane.b32.xlu0 %v540, 24
      %v1033 = vpop.permute.xlu0 %1032
      %1034 = vrot.lane.b32.xlu0 %v541, 24
      %v1035 = vpop.permute.xlu0 %1034
      %1036 = vrot.lane.b32.xlu0 %v542, 24
      %v1037 = vpop.permute.xlu0 %1036
      %1038 = vrot.lane.b32.xlu0 %v543, 24
      %v1039 = vpop.permute.xlu0 %1038
      %1040 = vrot.lane.b32.xlu0 %v544, 24
      %v1041 = vpop.permute.xlu0 %1040
      %1042 = vrot.lane.b32.xlu0 %v545, 24
      %v1043 = vpop.permute.xlu0 %1042
      %1044 = vrot.lane.b32.xlu0 %v546, 24
      %v1045 = vpop.permute.xlu0 %1044
      %1046 = vrot.lane.b32.xlu0 %v547, 24
      %v1047 = vpop.permute.xlu0 %1046
      %1048 = vrot.lane.b32.xlu0 %v548, 24
      %v1049 = vpop.permute.xlu0 %1048
      %1050 = vrot.lane.b32.xlu0 %v549, 24
      %v1051 = vpop.permute.xlu0 %1050
      %1052 = vrot.lane.b32.xlu0 %v550, 24
      %v1053 = vpop.permute.xlu0 %1052
      %1054 = vrot.lane.b32.xlu0 %v551, 24
      %v1055 = vpop.permute.xlu0 %1054
      %1056 = vrot.lane.b32.xlu0 %v552, 24
      %v1057 = vpop.permute.xlu0 %1056
      %1058 = vrot.lane.b32.xlu0 %v553, 24
      %v1059 = vpop.permute.xlu0 %1058
      %1060 = vrot.lane.b32.xlu0 %v554, 24
      %v1061 = vpop.permute.xlu0 %1060
      %1062 = vrot.lane.b32.xlu0 %v555, 24
      %v1063 = vpop.permute.xlu0 %1062
      %1064 = vrot.lane.b32.xlu0 %v556, 24
      %v1065 = vpop.permute.xlu0 %1064
      %1066 = vrot.lane.b32.xlu0 %v557, 24
      %v1067 = vpop.permute.xlu0 %1066
      %1068 = vrot.lane.b32.xlu0 %v558, 24
      %v1069 = vpop.permute.xlu0 %1068
      %1070 = vrot.lane.b32.xlu0 %v559, 24
      %v1071 = vpop.permute.xlu0 %1070
      %1072 = vrot.lane.b32.xlu0 %v560, 24
      %v1073 = vpop.permute.xlu0 %1072
      %1138 = vrot.lane.b32.xlu0 %v561, 32
      %v1139 = vpop.permute.xlu0 %1138
      %1140 = vrot.lane.b32.xlu0 %v562, 32
      %v1141 = vpop.permute.xlu0 %1140
      %1142 = vrot.lane.b32.xlu0 %v563, 32
      %v1143 = vpop.permute.xlu0 %1142
      %1144 = vrot.lane.b32.xlu0 %v564, 32
      %v1145 = vpop.permute.xlu0 %1144
      %1146 = vrot.lane.b32.xlu0 %v565, 32
      %v1147 = vpop.permute.xlu0 %1146
      %1148 = vrot.lane.b32.xlu0 %v566, 32
      %v1149 = vpop.permute.xlu0 %1148
      %1150 = vrot.lane.b32.xlu0 %v567, 32
      %v1151 = vpop.permute.xlu0 %1150
      %1152 = vrot.lane.b32.xlu0 %v568, 32
      %v1153 = vpop.permute.xlu0 %1152
      %1154 = vrot.lane.b32.xlu0 %v569, 32
      %v1155 = vpop.permute.xlu0 %1154
      %1156 = vrot.lane.b32.xlu0 %v570, 32
      %v1157 = vpop.permute.xlu0 %1156
      %1158 = vrot.lane.b32.xlu0 %v571, 32
      %v1159 = vpop.permute.xlu0 %1158
      %1160 = vrot.lane.b32.xlu0 %v572, 32
      %v1161 = vpop.permute.xlu0 %1160
      %1162 = vrot.lane.b32.xlu0 %v573, 32
      %v1163 = vpop.permute.xlu0 %1162
      %1164 = vrot.lane.b32.xlu0 %v574, 32
      %v1165 = vpop.permute.xlu0 %1164
      %1166 = vrot.lane.b32.xlu0 %v575, 32
      %v1167 = vpop.permute.xlu0 %1166
      %1168 = vrot.lane.b32.xlu0 %v576, 32
      %v1169 = vpop.permute.xlu0 %1168
      %1170 = vrot.lane.b32.xlu0 %v577, 32
      %v1171 = vpop.permute.xlu0 %1170
      %1172 = vrot.lane.b32.xlu0 %v578, 32
      %v1173 = vpop.permute.xlu0 %1172
      %1174 = vrot.lane.b32.xlu0 %v579, 32
      %v1175 = vpop.permute.xlu0 %1174
      %1176 = vrot.lane.b32.xlu0 %v580, 32
      %v1177 = vpop.permute.xlu0 %1176
      %1178 = vrot.lane.b32.xlu0 %v581, 32
      %v1179 = vpop.permute.xlu0 %1178
      %1180 = vrot.lane.b32.xlu0 %v582, 32
      %v1181 = vpop.permute.xlu0 %1180
      %1182 = vrot.lane.b32.xlu0 %v583, 32
      %v1183 = vpop.permute.xlu0 %1182
      %1184 = vrot.lane.b32.xlu0 %v584, 32
      %v1185 = vpop.permute.xlu0 %1184
      %1186 = vrot.lane.b32.xlu0 %v585, 32
      %v1187 = vpop.permute.xlu0 %1186
      %1188 = vrot.lane.b32.xlu0 %v586, 32
      %v1189 = vpop.permute.xlu0 %1188
      %1190 = vrot.lane.b32.xlu0 %v587, 32
      %v1191 = vpop.permute.xlu0 %1190
      %1192 = vrot.lane.b32.xlu0 %v588, 32
      %v1193 = vpop.permute.xlu0 %1192
      %1194 = vrot.lane.b32.xlu0 %v589, 32
      %v1195 = vpop.permute.xlu0 %1194
      %1196 = vrot.lane.b32.xlu0 %v590, 32
      %v1197 = vpop.permute.xlu0 %1196
      %1198 = vrot.lane.b32.xlu0 %v591, 32
      %v1199 = vpop.permute.xlu0 %1198
      %1200 = vrot.lane.b32.xlu0 %v592, 32
      %v1201 = vpop.permute.xlu0 %1200
      %1266 = vrot.lane.b32.xlu0 %v593, 40
      %v1267 = vpop.permute.xlu0 %1266
      %1268 = vrot.lane.b32.xlu0 %v594, 40
      %v1269 = vpop.permute.xlu0 %1268
      %1270 = vrot.lane.b32.xlu0 %v595, 40
      %v1271 = vpop.permute.xlu0 %1270
      %1272 = vrot.lane.b32.xlu0 %v596, 40
      %v1273 = vpop.permute.xlu0 %1272
      %1274 = vrot.lane.b32.xlu0 %v597, 40
      %v1275 = vpop.permute.xlu0 %1274
      %1276 = vrot.lane.b32.xlu0 %v598, 40
      %v1277 = vpop.permute.xlu0 %1276
      %1278 = vrot.lane.b32.xlu0 %v599, 40
      %v1279 = vpop.permute.xlu0 %1278
      %1280 = vrot.lane.b32.xlu0 %v600, 40
      %v1281 = vpop.permute.xlu0 %1280
      %1282 = vrot.lane.b32.xlu0 %v601, 40
      %v1283 = vpop.permute.xlu0 %1282
      %1284 = vrot.lane.b32.xlu0 %v602, 40
      %v1285 = vpop.permute.xlu0 %1284
      %1286 = vrot.lane.b32.xlu0 %v603, 40
      %v1287 = vpop.permute.xlu0 %1286
      %1288 = vrot.lane.b32.xlu0 %v604, 40
      %v1289 = vpop.permute.xlu0 %1288
      %1290 = vrot.lane.b32.xlu0 %v605, 40
      %v1291 = vpop.permute.xlu0 %1290
      %1292 = vrot.lane.b32.xlu0 %v606, 40
      %v1293 = vpop.permute.xlu0 %1292
      %1294 = vrot.lane.b32.xlu0 %v607, 40
      %v1295 = vpop.permute.xlu0 %1294
      %1296 = vrot.lane.b32.xlu0 %v608, 40
      %v1297 = vpop.permute.xlu0 %1296
      %1298 = vrot.lane.b32.xlu0 %v609, 40
      %v1299 = vpop.permute.xlu0 %1298
      %1300 = vrot.lane.b32.xlu0 %v610, 40
      %v1301 = vpop.permute.xlu0 %1300
      %1302 = vrot.lane.b32.xlu0 %v611, 40
      %v1303 = vpop.permute.xlu0 %1302
      %1304 = vrot.lane.b32.xlu0 %v612, 40
      %v1305 = vpop.permute.xlu0 %1304
      %1306 = vrot.lane.b32.xlu0 %v613, 40
      %v1307 = vpop.permute.xlu0 %1306
      %1308 = vrot.lane.b32.xlu0 %v614, 40
      %v1309 = vpop.permute.xlu0 %1308
      %1310 = vrot.lane.b32.xlu0 %v615, 40
      %v1311 = vpop.permute.xlu0 %1310
      %1312 = vrot.lane.b32.xlu0 %v616, 40
      %v1313 = vpop.permute.xlu0 %1312
      %1314 = vrot.lane.b32.xlu0 %v617, 40
      %v1315 = vpop.permute.xlu0 %1314
      %1316 = vrot.lane.b32.xlu0 %v618, 40
      %v1317 = vpop.permute.xlu0 %1316
      %1318 = vrot.lane.b32.xlu0 %v619, 40
      %v1319 = vpop.permute.xlu0 %1318
      %1320 = vrot.lane.b32.xlu0 %v620, 40
      %v1321 = vpop.permute.xlu0 %1320
      %1322 = vrot.lane.b32.xlu0 %v621, 40
      %v1323 = vpop.permute.xlu0 %1322
      %1324 = vrot.lane.b32.xlu0 %v622, 40
      %v1325 = vpop.permute.xlu0 %1324
      %1326 = vrot.lane.b32.xlu0 %v623, 40
      %v1327 = vpop.permute.xlu0 %1326
      %1328 = vrot.lane.b32.xlu0 %v624, 40
      %v1329 = vpop.permute.xlu0 %1328
      %1394 = vrot.lane.b32.xlu0 %v626, 48
      %v1395 = vpop.permute.xlu0 %1394
      %1396 = vrot.lane.b32.xlu0 %v627, 48
      %v1397 = vpop.permute.xlu0 %1396
      %1398 = vrot.lane.b32.xlu0 %v628, 48
      %v1399 = vpop.permute.xlu0 %1398
      %1400 = vrot.lane.b32.xlu0 %v629, 48
      %v1401 = vpop.permute.xlu0 %1400
      %1402 = vrot.lane.b32.xlu0 %v630, 48
      %v1403 = vpop.permute.xlu0 %1402
      %1404 = vrot.lane.b32.xlu0 %v631, 48
      %v1405 = vpop.permute.xlu0 %1404
      %1406 = vrot.lane.b32.xlu0 %v632, 48
      %v1407 = vpop.permute.xlu0 %1406
      %1408 = vrot.lane.b32.xlu0 %v633, 48
      %v1409 = vpop.permute.xlu0 %1408
      %1410 = vrot.lane.b32.xlu0 %v634, 48
      %v1411 = vpop.permute.xlu0 %1410
      %1412 = vrot.lane.b32.xlu0 %v635, 48
      %v1413 = vpop.permute.xlu0 %1412
      %1414 = vrot.lane.b32.xlu0 %v636, 48
      %v1415 = vpop.permute.xlu0 %1414
      %1416 = vrot.lane.b32.xlu0 %v637, 48
      %v1417 = vpop.permute.xlu0 %1416
      %1418 = vrot.lane.b32.xlu0 %v638, 48
      %v1419 = vpop.permute.xlu0 %1418
      %1420 = vrot.lane.b32.xlu0 %v639, 48
      %v1421 = vpop.permute.xlu0 %1420
      %1422 = vrot.lane.b32.xlu0 %v640, 48
      %v1423 = vpop.permute.xlu0 %1422
      %1424 = vrot.lane.b32.xlu0 %v641, 48
      %v1425 = vpop.permute.xlu0 %1424
      %1426 = vrot.lane.b32.xlu0 %v642, 48
      %v1427 = vpop.permute.xlu0 %1426
      %1428 = vrot.lane.b32.xlu0 %v643, 48
      %v1429 = vpop.permute.xlu0 %1428
      %1430 = vrot.lane.b32.xlu0 %v644, 48
      %v1431 = vpop.permute.xlu0 %1430
      %1432 = vrot.lane.b32.xlu0 %v645, 48
      %v1433 = vpop.permute.xlu0 %1432
      %1434 = vrot.lane.b32.xlu0 %v646, 48
      %v1435 = vpop.permute.xlu0 %1434
      %1436 = vrot.lane.b32.xlu0 %v647, 48
      %v1437 = vpop.permute.xlu0 %1436
      %1438 = vrot.lane.b32.xlu0 %v648, 48
      %v1439 = vpop.permute.xlu0 %1438
      %1440 = vrot.lane.b32.xlu0 %v649, 48
      %v1441 = vpop.permute.xlu0 %1440
      %1442 = vrot.lane.b32.xlu0 %v650, 48
      %v1443 = vpop.permute.xlu0 %1442
      %1444 = vrot.lane.b32.xlu0 %v651, 48
      %v1445 = vpop.permute.xlu0 %1444
      %1446 = vrot.lane.b32.xlu0 %v652, 48
      %v1447 = vpop.permute.xlu0 %1446
      %1448 = vrot.lane.b32.xlu0 %v653, 48
      %v1449 = vpop.permute.xlu0 %1448
      %1450 = vrot.lane.b32.xlu0 %v654, 48
      %v1451 = vpop.permute.xlu0 %1450
      %1452 = vrot.lane.b32.xlu0 %v655, 48
      %v1453 = vpop.permute.xlu0 %1452
      %1454 = vrot.lane.b32.xlu0 %v656, 48
      %v1455 = vpop.permute.xlu0 %1454
      %1456 = vrot.lane.b32.xlu0 %v657, 48
      %v1457 = vpop.permute.xlu0 %1456
      %1522 = vrot.lane.b32.xlu0 %v658, 56
      %v1523 = vpop.permute.xlu0 %1522
      %1524 = vrot.lane.b32.xlu0 %v659, 56
      %v1525 = vpop.permute.xlu0 %1524
      %1526 = vrot.lane.b32.xlu0 %v660, 56
      %v1527 = vpop.permute.xlu0 %1526
      %1528 = vrot.lane.b32.xlu0 %v661, 56
      %v1529 = vpop.permute.xlu0 %1528
      %1530 = vrot.lane.b32.xlu0 %v662, 56
      %v1531 = vpop.permute.xlu0 %1530
      %1532 = vrot.lane.b32.xlu0 %v663, 56
      %v1533 = vpop.permute.xlu0 %1532
      %1534 = vrot.lane.b32.xlu0 %v664, 56
      %v1535 = vpop.permute.xlu0 %1534
      %1536 = vrot.lane.b32.xlu0 %v665, 56
      %v1537 = vpop.permute.xlu0 %1536
      %1538 = vrot.lane.b32.xlu0 %v666, 56
      %v1539 = vpop.permute.xlu0 %1538
      %1540 = vrot.lane.b32.xlu0 %v667, 56
      %v1541 = vpop.permute.xlu0 %1540
      %1542 = vrot.lane.b32.xlu0 %v668, 56
      %v1543 = vpop.permute.xlu0 %1542
      %1544 = vrot.lane.b32.xlu0 %v669, 56
      %v1545 = vpop.permute.xlu0 %1544
      %1546 = vrot.lane.b32.xlu0 %v670, 56
      %v1547 = vpop.permute.xlu0 %1546
      %1548 = vrot.lane.b32.xlu0 %v671, 56
      %v1549 = vpop.permute.xlu0 %1548
      %1550 = vrot.lane.b32.xlu0 %v672, 56
      %v1551 = vpop.permute.xlu0 %1550
      %1552 = vrot.lane.b32.xlu0 %v673, 56
      %v1553 = vpop.permute.xlu0 %1552
      %1554 = vrot.lane.b32.xlu0 %v674, 56
      %v1555 = vpop.permute.xlu0 %1554
      %1556 = vrot.lane.b32.xlu0 %v675, 56
      %v1557 = vpop.permute.xlu0 %1556
      %1558 = vrot.lane.b32.xlu0 %v676, 56
      %v1559 = vpop.permute.xlu0 %1558
      %1560 = vrot.lane.b32.xlu0 %v677, 56
      %v1561 = vpop.permute.xlu0 %1560
      %1562 = vrot.lane.b32.xlu0 %v678, 56
      %v1563 = vpop.permute.xlu0 %1562
      %1564 = vrot.lane.b32.xlu0 %v679, 56
      %v1565 = vpop.permute.xlu0 %1564
      %1566 = vrot.lane.b32.xlu0 %v680, 56
      %v1567 = vpop.permute.xlu0 %1566
      %1568 = vrot.lane.b32.xlu0 %v681, 56
      %v1569 = vpop.permute.xlu0 %1568
      %1570 = vrot.lane.b32.xlu0 %v682, 56
      %v1571 = vpop.permute.xlu0 %1570
      %1572 = vrot.lane.b32.xlu0 %v683, 56
      %v1573 = vpop.permute.xlu0 %1572
      %1574 = vrot.lane.b32.xlu0 %v684, 56
      %v1575 = vpop.permute.xlu0 %1574
      %1576 = vrot.lane.b32.xlu0 %v685, 56
      %v1577 = vpop.permute.xlu0 %1576
      %1578 = vrot.lane.b32.xlu0 %v686, 56
      %v1579 = vpop.permute.xlu0 %1578
      %1580 = vrot.lane.b32.xlu0 %v687, 56
      %v1581 = vpop.permute.xlu0 %1580
      %1582 = vrot.lane.b32.xlu0 %v688, 56
      %v1583 = vpop.permute.xlu0 %1582
      %1584 = vrot.lane.b32.xlu0 %v689, 56
      %v1585 = vpop.permute.xlu0 %1584
      %1650 = vrot.lane.b32.xlu0 %v690, 64
      %v1651 = vpop.permute.xlu0 %1650
      %1652 = vrot.lane.b32.xlu0 %v691, 64
      %v1653 = vpop.permute.xlu0 %1652
      %1654 = vrot.lane.b32.xlu0 %v692, 64
      %v1655 = vpop.permute.xlu0 %1654
      %1656 = vrot.lane.b32.xlu0 %v693, 64
      %v1657 = vpop.permute.xlu0 %1656
      %1658 = vrot.lane.b32.xlu0 %v694, 64
      %v1659 = vpop.permute.xlu0 %1658
      %1660 = vrot.lane.b32.xlu0 %v695, 64
      %v1661 = vpop.permute.xlu0 %1660
      %1662 = vrot.lane.b32.xlu0 %v696, 64
      %v1663 = vpop.permute.xlu0 %1662
      %1664 = vrot.lane.b32.xlu0 %v697, 64
      %v1665 = vpop.permute.xlu0 %1664
      %1666 = vrot.lane.b32.xlu0 %v698, 64
      %v1667 = vpop.permute.xlu0 %1666
      %1668 = vrot.lane.b32.xlu0 %v699, 64
      %v1669 = vpop.permute.xlu0 %1668
      %1670 = vrot.lane.b32.xlu0 %v700, 64
      %v1671 = vpop.permute.xlu0 %1670
      %1672 = vrot.lane.b32.xlu0 %v701, 64
      %v1673 = vpop.permute.xlu0 %1672
      %1674 = vrot.lane.b32.xlu0 %v702, 64
      %v1675 = vpop.permute.xlu0 %1674
      %1676 = vrot.lane.b32.xlu0 %v703, 64
      %v1677 = vpop.permute.xlu0 %1676
      %1678 = vrot.lane.b32.xlu0 %v704, 64
      %v1679 = vpop.permute.xlu0 %1678
      %1680 = vrot.lane.b32.xlu0 %v705, 64
      %v1681 = vpop.permute.xlu0 %1680
      %1682 = vrot.lane.b32.xlu0 %v706, 64
      %v1683 = vpop.permute.xlu0 %1682
      %1684 = vrot.lane.b32.xlu0 %v707, 64
      %v1685 = vpop.permute.xlu0 %1684
      %1686 = vrot.lane.b32.xlu0 %v708, 64
      %v1687 = vpop.permute.xlu0 %1686
      %1688 = vrot.lane.b32.xlu0 %v709, 64
      %v1689 = vpop.permute.xlu0 %1688
      %1690 = vrot.lane.b32.xlu0 %v710, 64
      %v1691 = vpop.permute.xlu0 %1690
      %1692 = vrot.lane.b32.xlu0 %v711, 64
      %v1693 = vpop.permute.xlu0 %1692
      %1694 = vrot.lane.b32.xlu0 %v712, 64
      %v1695 = vpop.permute.xlu0 %1694
      %1696 = vrot.lane.b32.xlu0 %v713, 64
      %v1697 = vpop.permute.xlu0 %1696
      %1698 = vrot.lane.b32.xlu0 %v714, 64
      %v1699 = vpop.permute.xlu0 %1698
      %1700 = vrot.lane.b32.xlu0 %v715, 64
      %v1701 = vpop.permute.xlu0 %1700
      %1702 = vrot.lane.b32.xlu0 %v716, 64
      %v1703 = vpop.permute.xlu0 %1702
      %1704 = vrot.lane.b32.xlu0 %v717, 64
      %v1705 = vpop.permute.xlu0 %1704
      %1706 = vrot.lane.b32.xlu0 %v718, 64
      %v1707 = vpop.permute.xlu0 %1706
      %1708 = vrot.lane.b32.xlu0 %v719, 64
      %v1709 = vpop.permute.xlu0 %1708
      %1710 = vrot.lane.b32.xlu0 %v720, 64
      %v1711 = vpop.permute.xlu0 %1710
      %1712 = vrot.lane.b32.xlu0 %v721, 64
      %v1713 = vpop.permute.xlu0 %1712
      %v1746 = vsel %vm280, %v433, %v755
      %v1747 = vsel %vm280, %v434, %v757
      %v1748 = vsel %vm280, %v435, %v759
      %v1749 = vsel %vm280, %v436, %v761
      %v1750 = vsel %vm280, %v437, %v763
      %v1751 = vsel %vm280, %v438, %v765
      %v1752 = vsel %vm280, %v439, %v767
      %v1753 = vsel %vm280, %v440, %v769
      %v1754 = vsel %vm280, %v441, %v771
      %v1755 = vsel %vm280, %v442, %v773
      %v1756 = vsel %vm280, %v443, %v775
      %v1757 = vsel %vm280, %v444, %v777
      %v1758 = vsel %vm280, %v445, %v779
      %v1759 = vsel %vm280, %v446, %v781
      %v1760 = vsel %vm280, %v447, %v783
      %v1761 = vsel %vm280, %v448, %v785
      %v1762 = vsel %vm280, %v449, %v787
      %v1763 = vsel %vm280, %v450, %v789
      %v1764 = vsel %vm280, %v451, %v791
      %v1765 = vsel %vm280, %v452, %v793
      %v1766 = vsel %vm280, %v453, %v795
      %v1767 = vsel %vm280, %v454, %v797
      %v1768 = vsel %vm280, %v455, %v799
      %v1769 = vsel %vm280, %v456, %v801
      %v1770 = vsel %vm280, %v457, %v803
      %v1771 = vsel %vm280, %v458, %v805
      %v1772 = vsel %vm280, %v459, %v807
      %v1773 = vsel %vm280, %v460, %v809
      %v1774 = vsel %vm280, %v461, %v811
      %v1775 = vsel %vm280, %v462, %v813
      %v1776 = vsel %vm280, %v463, %v815
      %v1777 = vsel %vm280, %v464, %v817
      %vm1778 = vcmask 130048
      %v1779 = vsel %vm1778, %v1746, %v883
      %v1780 = vsel %vm1778, %v1747, %v885
      %v1781 = vsel %vm1778, %v1748, %v887
      %v1782 = vsel %vm1778, %v1749, %v889
      %v1783 = vsel %vm1778, %v1750, %v891
      %v1784 = vsel %vm1778, %v1751, %v893
      %v1785 = vsel %vm1778, %v1752, %v895
      %v1786 = vsel %vm1778, %v1753, %v897
      %v1787 = vsel %vm1778, %v1754, %v899
      %v1788 = vsel %vm1778, %v1755, %v901
      %v1789 = vsel %vm1778, %v1756, %v903
      %v1790 = vsel %vm1778, %v1757, %v905
      %v1791 = vsel %vm1778, %v1758, %v907
      %v1792 = vsel %vm1778, %v1759, %v909
      %v1793 = vsel %vm1778, %v1760, %v911
      %v1794 = vsel %vm1778, %v1761, %v913
      %v1795 = vsel %vm1778, %v1762, %v915
      %v1796 = vsel %vm1778, %v1763, %v917
      %v1797 = vsel %vm1778, %v1764, %v919
      %v1798 = vsel %vm1778, %v1765, %v921
      %v1799 = vsel %vm1778, %v1766, %v923
      %v1800 = vsel %vm1778, %v1767, %v925
      %v1801 = vsel %vm1778, %v1768, %v927
      %v1802 = vsel %vm1778, %v1769, %v929
      %v1803 = vsel %vm1778, %v1770, %v931
      %v1804 = vsel %vm1778, %v1771, %v933
      %v1805 = vsel %vm1778, %v1772, %v935
      %v1806 = vsel %vm1778, %v1773, %v937
      %v1807 = vsel %vm1778, %v1774, %v939
      %v1808 = vsel %vm1778, %v1775, %v941
      %v1809 = vsel %vm1778, %v1776, %v943
      %v1810 = vsel %vm1778, %v1777, %v945
      %vm1811 = vcmask 195584
      %v1812 = vsel %vm1811, %v1779, %v1011
      %v1813 = vsel %vm1811, %v1780, %v1013
      %v1814 = vsel %vm1811, %v1781, %v1015
      %v1815 = vsel %vm1811, %v1782, %v1017
      %v1816 = vsel %vm1811, %v1783, %v1019
      %v1817 = vsel %vm1811, %v1784, %v1021
      %v1818 = vsel %vm1811, %v1785, %v1023
      %v1819 = vsel %vm1811, %v1786, %v1025
      %v1820 = vsel %vm1811, %v1787, %v1027
      %v1821 = vsel %vm1811, %v1788, %v1029
      %v1822 = vsel %vm1811, %v1789, %v1031
      %v1823 = vsel %vm1811, %v1790, %v1033
      %v1824 = vsel %vm1811, %v1791, %v1035
      %v1825 = vsel %vm1811, %v1792, %v1037
      %v1826 = vsel %vm1811, %v1793, %v1039
      %v1827 = vsel %vm1811, %v1794, %v1041
      %v1828 = vsel %vm1811, %v1795, %v1043
      %v1829 = vsel %vm1811, %v1796, %v1045
      %v1830 = vsel %vm1811, %v1797, %v1047
      %v1831 = vsel %vm1811, %v1798, %v1049
      %v1832 = vsel %vm1811, %v1799, %v1051
      %v1833 = vsel %vm1811, %v1800, %v1053
      %v1834 = vsel %vm1811, %v1801, %v1055
      %v1835 = vsel %vm1811, %v1802, %v1057
      %v1836 = vsel %vm1811, %v1803, %v1059
      %v1837 = vsel %vm1811, %v1804, %v1061
      %v1838 = vsel %vm1811, %v1805, %v1063
      %v1839 = vsel %vm1811, %v1806, %v1065
      %v1840 = vsel %vm1811, %v1807, %v1067
      %v1841 = vsel %vm1811, %v1808, %v1069
      %v1842 = vsel %vm1811, %v1809, %v1071
      %v1843 = vsel %vm1811, %v1810, %v1073
      %vm1844 = vcmask 261120
      %v1845 = vsel %vm1844, %v1812, %v1139
      %v1846 = vsel %vm1844, %v1813, %v1141
      %v1847 = vsel %vm1844, %v1814, %v1143
      %v1848 = vsel %vm1844, %v1815, %v1145
      %v1849 = vsel %vm1844, %v1816, %v1147
      %v1850 = vsel %vm1844, %v1817, %v1149
      %v1851 = vsel %vm1844, %v1818, %v1151
      %v1852 = vsel %vm1844, %v1819, %v1153
      %v1853 = vsel %vm1844, %v1820, %v1155
      %v1854 = vsel %vm1844, %v1821, %v1157
      %v1855 = vsel %vm1844, %v1822, %v1159
      %v1856 = vsel %vm1844, %v1823, %v1161
      %v1857 = vsel %vm1844, %v1824, %v1163
      %v1858 = vsel %vm1844, %v1825, %v1165
      %v1859 = vsel %vm1844, %v1826, %v1167
      %v1860 = vsel %vm1844, %v1827, %v1169
      %v1861 = vsel %vm1844, %v1828, %v1171
      %v1862 = vsel %vm1844, %v1829, %v1173
      %v1863 = vsel %vm1844, %v1830, %v1175
      %v1864 = vsel %vm1844, %v1831, %v1177
      %v1865 = vsel %vm1844, %v1832, %v1179
      %v1866 = vsel %vm1844, %v1833, %v1181
      %v1867 = vsel %vm1844, %v1834, %v1183
      %v1868 = vsel %vm1844, %v1835, %v1185
      %v1869 = vsel %vm1844, %v1836, %v1187
      %v1870 = vsel %vm1844, %v1837, %v1189
      %v1871 = vsel %vm1844, %v1838, %v1191
      %v1872 = vsel %vm1844, %v1839, %v1193
      %v1873 = vsel %vm1844, %v1840, %v1195
      %v1874 = vsel %vm1844, %v1841, %v1197
      %v1875 = vsel %vm1844, %v1842, %v1199
      %v1876 = vsel %vm1844, %v1843, %v1201
      %vm1877 = vcmask 326656
      %v1878 = vsel %vm1877, %v1845, %v1267
      %v1879 = vsel %vm1877, %v1846, %v1269
      %v1880 = vsel %vm1877, %v1847, %v1271
      %v1881 = vsel %vm1877, %v1848, %v1273
      %v1882 = vsel %vm1877, %v1849, %v1275
      %v1883 = vsel %vm1877, %v1850, %v1277
      %v1884 = vsel %vm1877, %v1851, %v1279
      %v1885 = vsel %vm1877, %v1852, %v1281
      %v1886 = vsel %vm1877, %v1853, %v1283
      %v1887 = vsel %vm1877, %v1854, %v1285
      %v1888 = vsel %vm1877, %v1855, %v1287
      %v1889 = vsel %vm1877, %v1856, %v1289
      %v1890 = vsel %vm1877, %v1857, %v1291
      %v1891 = vsel %vm1877, %v1858, %v1293
      %v1892 = vsel %vm1877, %v1859, %v1295
      %v1893 = vsel %vm1877, %v1860, %v1297
      %v1894 = vsel %vm1877, %v1861, %v1299
      %v1895 = vsel %vm1877, %v1862, %v1301
      %v1896 = vsel %vm1877, %v1863, %v1303
      %v1897 = vsel %vm1877, %v1864, %v1305
      %v1898 = vsel %vm1877, %v1865, %v1307
      %v1899 = vsel %vm1877, %v1866, %v1309
      %v1900 = vsel %vm1877, %v1867, %v1311
      %v1901 = vsel %vm1877, %v1868, %v1313
      %v1902 = vsel %vm1877, %v1869, %v1315
      %v1903 = vsel %vm1877, %v1870, %v1317
      %v1904 = vsel %vm1877, %v1871, %v1319
      %v1905 = vsel %vm1877, %v1872, %v1321
      %v1906 = vsel %vm1877, %v1873, %v1323
      %v1907 = vsel %vm1877, %v1874, %v1325
      %v1908 = vsel %vm1877, %v1875, %v1327
      %v1909 = vsel %vm1877, %v1876, %v1329
      %vm1910 = vcmask 392192
      %v1911 = vsel %vm1910, %v1878, %v1395
      %v1912 = vsel %vm1910, %v1879, %v1397
      %v1913 = vsel %vm1910, %v1880, %v1399
      %v1914 = vsel %vm1910, %v1881, %v1401
      %v1915 = vsel %vm1910, %v1882, %v1403
      %v1916 = vsel %vm1910, %v1883, %v1405
      %v1917 = vsel %vm1910, %v1884, %v1407
      %v1918 = vsel %vm1910, %v1885, %v1409
      %v1919 = vsel %vm1910, %v1886, %v1411
      %v1920 = vsel %vm1910, %v1887, %v1413
      %v1921 = vsel %vm1910, %v1888, %v1415
      %v1922 = vsel %vm1910, %v1889, %v1417
      %v1923 = vsel %vm1910, %v1890, %v1419
      %v1924 = vsel %vm1910, %v1891, %v1421
      %v1925 = vsel %vm1910, %v1892, %v1423
      %v1926 = vsel %vm1910, %v1893, %v1425
      %v1927 = vsel %vm1910, %v1894, %v1427
      %v1928 = vsel %vm1910, %v1895, %v1429
      %v1929 = vsel %vm1910, %v1896, %v1431
      %v1930 = vsel %vm1910, %v1897, %v1433
      %v1931 = vsel %vm1910, %v1898, %v1435
      %v1932 = vsel %vm1910, %v1899, %v1437
      %v1933 = vsel %vm1910, %v1900, %v1439
      %v1934 = vsel %vm1910, %v1901, %v1441
      %v1935 = vsel %vm1910, %v1902, %v1443
      %v1936 = vsel %vm1910, %v1903, %v1445
      %v1937 = vsel %vm1910, %v1904, %v1447
      %v1938 = vsel %vm1910, %v1905, %v1449
      %v1939 = vsel %vm1910, %v1906, %v1451
      %v1940 = vsel %vm1910, %v1907, %v1453
      %v1941 = vsel %vm1910, %v1908, %v1455
      %v1942 = vsel %vm1910, %v1909, %v1457
      %vm1943 = vcmask 457728
      %v1944 = vsel %vm1943, %v1911, %v1523
      %v1945 = vsel %vm1943, %v1912, %v1525
      %v1946 = vsel %vm1943, %v1913, %v1527
      %v1947 = vsel %vm1943, %v1914, %v1529
      %v1948 = vsel %vm1943, %v1915, %v1531
      %v1949 = vsel %vm1943, %v1916, %v1533
      %v1950 = vsel %vm1943, %v1917, %v1535
      %v1951 = vsel %vm1943, %v1918, %v1537
      %v1952 = vsel %vm1943, %v1919, %v1539
      %v1953 = vsel %vm1943, %v1920, %v1541
      %v1954 = vsel %vm1943, %v1921, %v1543
      %v1955 = vsel %vm1943, %v1922, %v1545
      %v1956 = vsel %vm1943, %v1923, %v1547
      %v1957 = vsel %vm1943, %v1924, %v1549
      %v1958 = vsel %vm1943, %v1925, %v1551
      %v1959 = vsel %vm1943, %v1926, %v1553
      %v1960 = vsel %vm1943, %v1927, %v1555
      %v1961 = vsel %vm1943, %v1928, %v1557
      %v1962 = vsel %vm1943, %v1929, %v1559
      %v1963 = vsel %vm1943, %v1930, %v1561
      %v1964 = vsel %vm1943, %v1931, %v1563
      %v1965 = vsel %vm1943, %v1932, %v1565
      %v1966 = vsel %vm1943, %v1933, %v1567
      %v1967 = vsel %vm1943, %v1934, %v1569
      %v1968 = vsel %vm1943, %v1935, %v1571
      %v1969 = vsel %vm1943, %v1936, %v1573
      %v1970 = vsel %vm1943, %v1937, %v1575
      %v1971 = vsel %vm1943, %v1938, %v1577
      %v1972 = vsel %vm1943, %v1939, %v1579
      %v1973 = vsel %vm1943, %v1940, %v1581
      %v1974 = vsel %vm1943, %v1941, %v1583
      %v1975 = vsel %vm1943, %v1942, %v1585
      %vm1976 = vcmask 523264
      %v1977 = vsel %vm1976, %v1944, %v1651
      %v1978 = vsel %vm1976, %v1945, %v1653
      %v1979 = vsel %vm1976, %v1946, %v1655
      %v1980 = vsel %vm1976, %v1947, %v1657
      %v1981 = vsel %vm1976, %v1948, %v1659
      %v1982 = vsel %vm1976, %v1949, %v1661
      %v1983 = vsel %vm1976, %v1950, %v1663
      %v1984 = vsel %vm1976, %v1951, %v1665
      %v1985 = vsel %vm1976, %v1952, %v1667
      %v1986 = vsel %vm1976, %v1953, %v1669
      %v1987 = vsel %vm1976, %v1954, %v1671
      %v1988 = vsel %vm1976, %v1955, %v1673
      %v1989 = vsel %vm1976, %v1956, %v1675
      %v1990 = vsel %vm1976, %v1957, %v1677
      %v1991 = vsel %vm1976, %v1958, %v1679
      %v1992 = vsel %vm1976, %v1959, %v1681
      %v1993 = vsel %vm1976, %v1960, %v1683
      %v1994 = vsel %vm1976, %v1961, %v1685
      %v1995 = vsel %vm1976, %v1962, %v1687
      %v1996 = vsel %vm1976, %v1963, %v1689
      %v1997 = vsel %vm1976, %v1964, %v1691
      %v1998 = vsel %vm1976, %v1965, %v1693
      %v1999 = vsel %vm1976, %v1966, %v1695
      %v2000 = vsel %vm1976, %v1967, %v1697
      %v2001 = vsel %vm1976, %v1968, %v1699
      %v2002 = vsel %vm1976, %v1969, %v1701
      %v2003 = vsel %vm1976, %v1970, %v1703
      %v2004 = vsel %vm1976, %v1971, %v1705
      %v2005 = vsel %vm1976, %v1972, %v1707
      %v2006 = vsel %vm1976, %v1973, %v1709
      %v2007 = vsel %vm1976, %v1974, %v1711
      %v2008 = vsel %vm1976, %v1975, %v1713
      %v2009 = vpack.c.bf16 %v1978, %v1977
      %v2010 = vpack.c.bf16 %v1980, %v1979
      %v2011 = vpack.c.bf16 %v1982, %v1981
      %v2012 = vpack.c.bf16 %v1984, %v1983
      %v2013 = vpack.c.bf16 %v1986, %v1985
      %v2014 = vpack.c.bf16 %v1988, %v1987
      %v2015 = vpack.c.bf16 %v1990, %v1989
      %v2016 = vpack.c.bf16 %v1992, %v1991
      %v2017 = vpack.c.bf16 %v1994, %v1993
      %v2018 = vpack.c.bf16 %v1996, %v1995
      %v2019 = vpack.c.bf16 %v1998, %v1997
      %v2020 = vpack.c.bf16 %v2000, %v1999
      %v2021 = vpack.c.bf16 %v2002, %v2001
      %v2022 = vpack.c.bf16 %v2004, %v2003
      %v2023 = vpack.c.bf16 %v2006, %v2005
      %v2024 = vpack.c.bf16 %v2008, %v2007
      %v2025 = vld [vmem:[%s1] sm:$0xf]
      %v2026 = vld [vmem:[%s1 + $0x4] sm:$0xf]
      %v2027 = vld [vmem:[%s1 + $0x8] sm:$0xf]
      %v2028 = vld [vmem:[%s1 + $0xc] sm:$0xf]
      %v2029 = vld [vmem:[%s1 + $0x10] sm:$0xf]
      %v2030 = vld [vmem:[%s1 + $0x14] sm:$0xf]
      %v2031 = vld [vmem:[%s1 + $0x18] sm:$0xf]
      %v2032 = vld [vmem:[%s1 + $0x1c] sm:$0xf]
      %v2033 = vld [vmem:[%s1 + $0x20] sm:$0xf]
      %v2043 = vunpack.c.l.b16 %v2025
      %v2044 = vunpack.c.l.b16 %v2026
      %v2045 = vunpack.c.l.b16 %v2027
      %v2046 = vunpack.c.l.b16 %v2028
      %v2047 = vunpack.c.l.b16 %v2029
      %v2048 = vunpack.c.l.b16 %v2030
      %v2049 = vunpack.c.l.b16 %v2031
      %v2050 = vunpack.c.l.b16 %v2032
      %v2051 = vunpack.c.l.b16 %v2033
      %v2052 = vpack.c.b16 %v2044, %v2043
      %v2053 = vpack.c.b16 %v2046, %v2045
      %v2054 = vpack.c.b16 %v2048, %v2047
      %v2055 = vpack.c.b16 %v2050, %v2049
      %v2056 = vpack.c.b16 %v2051, %v2051
      %vm2061 = vcmask 588800
      %v2063 = vsel %vm2061, %v2009, 0
      %v2066 = vsel %vm2061, %v2010, 0
      %v2069 = vsel %vm2061, %v2011, 0
      %v2072 = vsel %vm2061, %v2012, 0
      %v2075 = vsel %vm2061, %v2013, 0
      %v2078 = vsel %vm2061, %v2014, 0
      %v2081 = vsel %vm2061, %v2015, 0
      %v2084 = vsel %vm2061, %v2016, 0
      %v2087 = vsel %vm2061, %v2017, 0
      %v2090 = vsel %vm2061, %v2018, 0
      %v2093 = vsel %vm2061, %v2019, 0
      %v2096 = vsel %vm2061, %v2020, 0
      %v2099 = vsel %vm2061, %v2021, 0
      %v2102 = vsel %vm2061, %v2022, 0
      %v2105 = vsel %vm2061, %v2023, 0
      %v2108 = vsel %vm2061, %v2024, 0
      %vm2110 = vcmask 1043456
      %v2112 = vsel %vm2110, %v2056, 0
      %2114 = vmatprep.subr.bf16.mxu0 0
      %2115 = vmatpush1.bf16.msra.mxu0 %v2052
      %2116 = vmatprep.subr.bf16.mxu0 0
      %2117 = vmatpush1.bf16.msra.mxu0 %v2053
      %2118 = vmatprep.subr.bf16.mxu0 0
      %2119 = vmatpush1.bf16.msra.mxu0 %v2054
      %2120 = vmatprep.subr.bf16.mxu0 0
      %2121 = vmatpush1.bf16.msra.mxu0 %v2055
      %2122 = vmatprep.subr.bf16.mxu0 0
      %2123 = vmatpush1.bf16.msra.mxu0 %v2112
      %2124 = vmatprep.subr.bf16.mxu0 0
      %2125 = vmatpush1.bf16.msra.mxu0 0
      %2126 = vmatprep.subr.bf16.mxu0 0
      %2127 = vmatpush1.bf16.msra.mxu0 0
      %2128 = vmatprep.subr.bf16.mxu0 0
      %2129 = vmatpush1.bf16.msra.mxu0 0
      %2130 = vmatprep.subr.bf16.mxu0 0
      %2131 = vmatpush1.bf16.msra.mxu0 0
      %2132 = vmatprep.subr.bf16.mxu0 0
      %2133 = vmatpush1.bf16.msra.mxu0 0
      %2134 = vmatprep.subr.bf16.mxu0 0
      %2135 = vmatpush1.bf16.msra.mxu0 0
      %2136 = vmatprep.subr.bf16.mxu0 0
      %2137 = vmatpush1.bf16.msra.mxu0 0
      %2138 = vmatprep.subr.bf16.mxu0 0
      %2139 = vmatpush1.bf16.msra.mxu0 0
      %2140 = vmatprep.subr.bf16.mxu0 0
      %2141 = vmatpush1.bf16.msra.mxu0 0
      %2142 = vmatprep.subr.bf16.mxu0 0
      %2143 = vmatpush1.bf16.msra.mxu0 0
      %2144 = vmatprep.subr.bf16.mxu0 0
      %2145 = vmatpush1.bf16.msra.mxu0 0
      %2146 = vmatprep.mubr.bf16.mxu0 0
      %2147 = vmatmul.mubr.bf16.gmra.mrb[0].mxu0 %v2063
      %v2148 = vpop.f32.mrb[0].mxu0
      %v2149 = vadd.f32 0.0, %v2148
      %v2150 = vpop.f32.mrb[0].mxu0
      %v2151 = vpop.f32.mrb[0].mxu0
      %v2152 = vadd.f32 0.0, %v2151
      %v2153 = vpop.f32.mrb[0].mxu0
      %2154 = vmatprep.mubr.bf16.mxu0 0
      %2155 = vmatmul.mubr.bf16.gmra.mrb[0].mxu0 %v2066
      %v2156 = vpop.f32.mrb[0].mxu0
      %v2157 = vadd.f32 0.0, %v2156
      %v2158 = vpop.f32.mrb[0].mxu0
      %v2159 = vpop.f32.mrb[0].mxu0
      %v2160 = vadd.f32 0.0, %v2159
      %v2161 = vpop.f32.mrb[0].mxu0
      %2162 = vmatprep.mubr.bf16.mxu0 0
      %2163 = vmatmul.mubr.bf16.gmra.mrb[0].mxu0 %v2069
      %v2164 = vpop.f32.mrb[0].mxu0
      %v2165 = vadd.f32 0.0, %v2164
      %v2166 = vpop.f32.mrb[0].mxu0
      %v2167 = vpop.f32.mrb[0].mxu0
      %v2168 = vadd.f32 0.0, %v2167
      %v2169 = vpop.f32.mrb[0].mxu0
      %2170 = vmatprep.mubr.bf16.mxu0 0
      %2171 = vmatmul.mubr.bf16.gmra.mrb[0].mxu0 %v2072
      %v2172 = vpop.f32.mrb[0].mxu0
      %v2173 = vadd.f32 0.0, %v2172
      %v2174 = vpop.f32.mrb[0].mxu0
      %v2175 = vpop.f32.mrb[0].mxu0
      %v2176 = vadd.f32 0.0, %v2175
      %v2177 = vpop.f32.mrb[0].mxu0
      %2178 = vmatprep.mubr.bf16.mxu0 0
      %2179 = vmatmul.mubr.bf16.gmra.mrb[0].mxu0 %v2075
      %v2180 = vpop.f32.mrb[0].mxu0
      %v2181 = vadd.f32 0.0, %v2180
      %v2182 = vpop.f32.mrb[0].mxu0
      %v2183 = vpop.f32.mrb[0].mxu0
      %v2184 = vadd.f32 0.0, %v2183
      %v2185 = vpop.f32.mrb[0].mxu0
      %2186 = vmatprep.mubr.bf16.mxu0 0
      %2187 = vmatmul.mubr.bf16.gmra.mrb[0].mxu0 %v2078
      %v2188 = vpop.f32.mrb[0].mxu0
      %v2189 = vadd.f32 0.0, %v2188
      %v2190 = vpop.f32.mrb[0].mxu0
      %v2191 = vpop.f32.mrb[0].mxu0
      %v2192 = vadd.f32 0.0, %v2191
      %v2193 = vpop.f32.mrb[0].mxu0
      %2194 = vmatprep.mubr.bf16.mxu0 0
      %2195 = vmatmul.mubr.bf16.gmra.mrb[0].mxu0 %v2081
      %v2196 = vpop.f32.mrb[0].mxu0
      %v2197 = vadd.f32 0.0, %v2196
      %v2198 = vpop.f32.mrb[0].mxu0
      %v2199 = vpop.f32.mrb[0].mxu0
      %v2200 = vadd.f32 0.0, %v2199
      %v2201 = vpop.f32.mrb[0].mxu0
      %2202 = vmatprep.mubr.bf16.mxu0 0
      %2203 = vmatmul.mubr.bf16.gmra.mrb[0].mxu0 %v2084
      %v2204 = vpop.f32.mrb[0].mxu0
      %v2205 = vadd.f32 0.0, %v2204
      %v2206 = vpop.f32.mrb[0].mxu0
      %v2207 = vpop.f32.mrb[0].mxu0
      %v2208 = vadd.f32 0.0, %v2207
      %v2209 = vpop.f32.mrb[0].mxu0
      %2210 = vmatprep.mubr.bf16.mxu0 0
      %2211 = vmatmul.mubr.bf16.gmra.mrb[0].mxu0 %v2087
      %v2212 = vpop.f32.mrb[0].mxu0
      %v2213 = vadd.f32 0.0, %v2212
      %v2214 = vpop.f32.mrb[0].mxu0
      %v2215 = vpop.f32.mrb[0].mxu0
      %v2216 = vadd.f32 0.0, %v2215
      %v2217 = vpop.f32.mrb[0].mxu0
      %2218 = vmatprep.mubr.bf16.mxu0 0
      %2219 = vmatmul.mubr.bf16.gmra.mrb[0].mxu0 %v2090
      %v2220 = vpop.f32.mrb[0].mxu0
      %v2221 = vadd.f32 0.0, %v2220
      %v2222 = vpop.f32.mrb[0].mxu0
      %v2223 = vpop.f32.mrb[0].mxu0
      %v2224 = vadd.f32 0.0, %v2223
      %v2225 = vpop.f32.mrb[0].mxu0
      %2226 = vmatprep.mubr.bf16.mxu0 0
      %2227 = vmatmul.mubr.bf16.gmra.mrb[0].mxu0 %v2093
      %v2228 = vpop.f32.mrb[0].mxu0
      %v2229 = vadd.f32 0.0, %v2228
      %v2230 = vpop.f32.mrb[0].mxu0
      %v2231 = vpop.f32.mrb[0].mxu0
      %v2232 = vadd.f32 0.0, %v2231
      %v2233 = vpop.f32.mrb[0].mxu0
      %2234 = vmatprep.mubr.bf16.mxu0 0
      %2235 = vmatmul.mubr.bf16.gmra.mrb[0].mxu0 %v2096
      %v2236 = vpop.f32.mrb[0].mxu0
      %v2237 = vadd.f32 0.0, %v2236
      %v2238 = vpop.f32.mrb[0].mxu0
      %v2239 = vpop.f32.mrb[0].mxu0
      %v2240 = vadd.f32 0.0, %v2239
      %v2241 = vpop.f32.mrb[0].mxu0
      %2242 = vmatprep.mubr.bf16.mxu0 0
      %2243 = vmatmul.mubr.bf16.gmra.mrb[0].mxu0 %v2099
      %v2244 = vpop.f32.mrb[0].mxu0
      %v2245 = vadd.f32 0.0, %v2244
      %v2246 = vpop.f32.mrb[0].mxu0
      %v2247 = vpop.f32.mrb[0].mxu0
      %v2248 = vadd.f32 0.0, %v2247
      %v2249 = vpop.f32.mrb[0].mxu0
      %2250 = vmatprep.mubr.bf16.mxu0 0
      %2251 = vmatmul.mubr.bf16.gmra.mrb[0].mxu0 %v2102
      %v2252 = vpop.f32.mrb[0].mxu0
      %v2253 = vadd.f32 0.0, %v2252
      %v2254 = vpop.f32.mrb[0].mxu0
      %v2255 = vpop.f32.mrb[0].mxu0
      %v2256 = vadd.f32 0.0, %v2255
      %v2257 = vpop.f32.mrb[0].mxu0
      %2258 = vmatprep.mubr.bf16.mxu0 0
      %2259 = vmatmul.mubr.bf16.gmra.mrb[0].mxu0 %v2105
      %v2260 = vpop.f32.mrb[0].mxu0
      %v2261 = vadd.f32 0.0, %v2260
      %v2262 = vpop.f32.mrb[0].mxu0
      %v2263 = vpop.f32.mrb[0].mxu0
      %v2264 = vadd.f32 0.0, %v2263
      %v2265 = vpop.f32.mrb[0].mxu0
      %2266 = vmatprep.mubr.bf16.mxu0 0
      %2267 = vmatmul.mubr.bf16.gmra.mrb[0].mxu0 %v2108
      %v2268 = vpop.f32.mrb[0].mxu0
      %v2269 = vadd.f32 0.0, %v2268
      %v2270 = vpop.f32.mrb[0].mxu0
      %v2271 = vpop.f32.mrb[0].mxu0
      %v2272 = vadd.f32 0.0, %v2271
      %v2273 = vpop.f32.mrb[0].mxu0
      %2274 = vdwg.mxu0
      %v2275 = vld [vmem:[%s3] sm:$0x1]
      %v2277 = vlaneseq
      %v2278 = vshrl.u32 %v2277, 7
      %v2279 = vsub.s32 0, %v2278
      %v2280 = vrot.slane %v2275, %v2279
      %v2282 = vmul.f32 %v2149, %v2280
      %v2283 = vmul.f32 %v2152, %v2280
      %v2284 = vmul.f32 %v2157, %v2280
      %v2285 = vmul.f32 %v2160, %v2280
      %v2286 = vmul.f32 %v2165, %v2280
      %v2287 = vmul.f32 %v2168, %v2280
      %v2288 = vmul.f32 %v2173, %v2280
      %v2289 = vmul.f32 %v2176, %v2280
      %v2290 = vmul.f32 %v2181, %v2280
      %v2291 = vmul.f32 %v2184, %v2280
      %v2292 = vmul.f32 %v2189, %v2280
      %v2293 = vmul.f32 %v2192, %v2280
      %v2294 = vmul.f32 %v2197, %v2280
      %v2295 = vmul.f32 %v2200, %v2280
      %v2296 = vmul.f32 %v2205, %v2280
      %v2297 = vmul.f32 %v2208, %v2280
      %v2298 = vmul.f32 %v2213, %v2280
      %v2299 = vmul.f32 %v2216, %v2280
      %v2300 = vmul.f32 %v2221, %v2280
      %v2301 = vmul.f32 %v2224, %v2280
      %v2302 = vmul.f32 %v2229, %v2280
      %v2303 = vmul.f32 %v2232, %v2280
      %v2304 = vmul.f32 %v2237, %v2280
      %v2305 = vmul.f32 %v2240, %v2280
      %v2306 = vmul.f32 %v2245, %v2280
      %v2307 = vmul.f32 %v2248, %v2280
      %v2308 = vmul.f32 %v2253, %v2280
      %v2309 = vmul.f32 %v2256, %v2280
      %v2310 = vmul.f32 %v2261, %v2280
      %v2311 = vmul.f32 %v2264, %v2280
      %v2312 = vmul.f32 %v2269, %v2280
      %v2313 = vmul.f32 %v2272, %v2280
      %v2314 = vld [vmem:[%s4] sm:$0x1]
      %v2316 = vlaneseq
      %v2317 = vshrl.u32 %v2316, 7
      %v2318 = vsub.s32 0, %v2317
      %v2319 = vrot.slane %v2314, %v2318
      %v2321 = vadd.f32 %v2282, %v2319
      %v2322 = vadd.f32 %v2283, %v2319
      %v2323 = vadd.f32 %v2284, %v2319
      %v2324 = vadd.f32 %v2285, %v2319
      %v2325 = vadd.f32 %v2286, %v2319
      %v2326 = vadd.f32 %v2287, %v2319
      %v2327 = vadd.f32 %v2288, %v2319
      %v2328 = vadd.f32 %v2289, %v2319
      %v2329 = vadd.f32 %v2290, %v2319
      %v2330 = vadd.f32 %v2291, %v2319
      %v2331 = vadd.f32 %v2292, %v2319
      %v2332 = vadd.f32 %v2293, %v2319
      %v2333 = vadd.f32 %v2294, %v2319
      %v2334 = vadd.f32 %v2295, %v2319
      %v2335 = vadd.f32 %v2296, %v2319
      %v2336 = vadd.f32 %v2297, %v2319
      %v2337 = vadd.f32 %v2298, %v2319
      %v2338 = vadd.f32 %v2299, %v2319
      %v2339 = vadd.f32 %v2300, %v2319
      %v2340 = vadd.f32 %v2301, %v2319
      %v2341 = vadd.f32 %v2302, %v2319
      %v2342 = vadd.f32 %v2303, %v2319
      %v2343 = vadd.f32 %v2304, %v2319
      %v2344 = vadd.f32 %v2305, %v2319
      %v2345 = vadd.f32 %v2306, %v2319
      %v2346 = vadd.f32 %v2307, %v2319
      %v2347 = vadd.f32 %v2308, %v2319
      %v2348 = vadd.f32 %v2309, %v2319
      %v2349 = vadd.f32 %v2310, %v2319
      %v2350 = vadd.f32 %v2311, %v2319
      %v2351 = vadd.f32 %v2312, %v2319
      %v2352 = vadd.f32 %v2313, %v2319
      %v2353 = vmax.f32 %v2321, 0.0
      %v2354 = vmax.f32 %v2322, 0.0
      %v2355 = vmax.f32 %v2323, 0.0
      %v2356 = vmax.f32 %v2324, 0.0
      %v2357 = vmax.f32 %v2325, 0.0
      %v2358 = vmax.f32 %v2326, 0.0
      %v2359 = vmax.f32 %v2327, 0.0
      %v2360 = vmax.f32 %v2328, 0.0
      %v2361 = vmax.f32 %v2329, 0.0
      %v2362 = vmax.f32 %v2330, 0.0
      %v2363 = vmax.f32 %v2331, 0.0
      %v2364 = vmax.f32 %v2332, 0.0
      %v2365 = vmax.f32 %v2333, 0.0
      %v2366 = vmax.f32 %v2334, 0.0
      %v2367 = vmax.f32 %v2335, 0.0
      %v2368 = vmax.f32 %v2336, 0.0
      %v2369 = vmax.f32 %v2337, 0.0
      %v2370 = vmax.f32 %v2338, 0.0
      %v2371 = vmax.f32 %v2339, 0.0
      %v2372 = vmax.f32 %v2340, 0.0
      %v2373 = vmax.f32 %v2341, 0.0
      %v2374 = vmax.f32 %v2342, 0.0
      %v2375 = vmax.f32 %v2343, 0.0
      %v2376 = vmax.f32 %v2344, 0.0
      %v2377 = vmax.f32 %v2345, 0.0
      %v2378 = vmax.f32 %v2346, 0.0
      %v2379 = vmax.f32 %v2347, 0.0
      %v2380 = vmax.f32 %v2348, 0.0
      %v2381 = vmax.f32 %v2349, 0.0
      %v2382 = vmax.f32 %v2350, 0.0
      %v2383 = vmax.f32 %v2351, 0.0
      %v2384 = vmax.f32 %v2352, 0.0
      %2385 = vst.msk [vmem:[%s400 + $0x1] sm:$0xff] %vm280, %v2353
      %2386 = vst.msk [vmem:[%s400 + $0x9] sm:$0xff] %vm280, %v2354
      %2387 = vst.msk [vmem:[%s400 + $0x19] sm:$0xff] %vm280, %v2355
      %2388 = vst.msk [vmem:[%s400 + $0x21] sm:$0xff] %vm280, %v2356
      %2389 = vst.msk [vmem:[%s400 + $0x31] sm:$0xff] %vm280, %v2357
      %2390 = vst.msk [vmem:[%s400 + $0x39] sm:$0xff] %vm280, %v2358
      %2391 = vst.msk [vmem:[%s400 + $0x49] sm:$0xff] %vm280, %v2359
      %2392 = vst.msk [vmem:[%s400 + $0x51] sm:$0xff] %vm280, %v2360
      %2393 = vst.msk [vmem:[%s400 + $0x61] sm:$0xff] %vm280, %v2361
      %2394 = vst.msk [vmem:[%s400 + $0x69] sm:$0xff] %vm280, %v2362
      %2395 = vst.msk [vmem:[%s400 + $0x79] sm:$0xff] %vm280, %v2363
      %2396 = vst.msk [vmem:[%s400 + $0x81] sm:$0xff] %vm280, %v2364
      %2397 = vst.msk [vmem:[%s400 + $0x91] sm:$0xff] %vm280, %v2365
      %2398 = vst.msk [vmem:[%s400 + $0x99] sm:$0xff] %vm280, %v2366
      %2399 = vst.msk [vmem:[%s400 + $0xa9] sm:$0xff] %vm280, %v2367
      %2400 = vst.msk [vmem:[%s400 + $0xb1] sm:$0xff] %vm280, %v2368
      %2401 = vst.msk [vmem:[%s400 + $0xc1] sm:$0xff] %vm280, %v2369
      %2402 = vst.msk [vmem:[%s400 + $0xc9] sm:$0xff] %vm280, %v2370
      %2403 = vst.msk [vmem:[%s400 + $0xd9] sm:$0xff] %vm280, %v2371
      %2404 = vst.msk [vmem:[%s400 + $0xe1] sm:$0xff] %vm280, %v2372
      %2405 = vst.msk [vmem:[%s400 + $0xf1] sm:$0xff] %vm280, %v2373
      %2406 = vst.msk [vmem:[%s400 + $0xf9] sm:$0xff] %vm280, %v2374
      %2407 = vst.msk [vmem:[%s400 + $0x109] sm:$0xff] %vm280, %v2375
      %2408 = vst.msk [vmem:[%s400 + $0x111] sm:$0xff] %vm280, %v2376
      %2409 = vst.msk [vmem:[%s400 + $0x121] sm:$0xff] %vm280, %v2377
      %2410 = vst.msk [vmem:[%s400 + $0x129] sm:$0xff] %vm280, %v2378
      %2411 = vst.msk [vmem:[%s400 + $0x139] sm:$0xff] %vm280, %v2379
      %2412 = vst.msk [vmem:[%s400 + $0x141] sm:$0xff] %vm280, %v2380
      %2413 = vst.msk [vmem:[%s400 + $0x151] sm:$0xff] %vm280, %v2381
      %2414 = vst.msk [vmem:[%s400 + $0x159] sm:$0xff] %vm280, %v2382
      %2415 = vst.msk [vmem:[%s400 + $0x169] sm:$0xff] %vm280, %v2383
      %2416 = vst.msk [vmem:[%s400 + $0x171] sm:$0xff] %vm280, %v2384
      %v2417 = vld [vmem:[#allocation2] sm:$0xff]
      %v2418 = vld [vmem:[#allocation2 + $0x8] sm:$0xff]
      %v2419 = vld [vmem:[#allocation2 + $0x18] sm:$0xff]
      %v2420 = vld [vmem:[#allocation2 + $0x20] sm:$0xff]
      %v2421 = vld [vmem:[#allocation2 + $0x30] sm:$0xff]
      %v2422 = vld [vmem:[#allocation2 + $0x38] sm:$0xff]
      %v2423 = vld [vmem:[#allocation2 + $0x48] sm:$0xff]
      %v2424 = vld [vmem:[#allocation2 + $0x50] sm:$0xff]
      %v2425 = vld [vmem:[#allocation2 + $0x60] sm:$0xff]
      %v2426 = vld [vmem:[#allocation2 + $0x68] sm:$0xff]
      %v2427 = vld [vmem:[#allocation2 + $0x78] sm:$0xff]
      %v2428 = vld [vmem:[#allocation2 + $0x80] sm:$0xff]
      %v2429 = vld [vmem:[#allocation2 + $0x90] sm:$0xff]
      %v2430 = vld [vmem:[#allocation2 + $0x98] sm:$0xff]
      %v2431 = vld [vmem:[#allocation2 + $0xa8] sm:$0xff]
      %v2432 = vld [vmem:[#allocation2 + $0xb0] sm:$0xff]
      %v2433 = vld [vmem:[#allocation2 + $0xc0] sm:$0xff]
      %v2434 = vld [vmem:[#allocation2 + $0xc8] sm:$0xff]
      %v2435 = vld [vmem:[#allocation2 + $0xd8] sm:$0xff]
      %v2436 = vld [vmem:[#allocation2 + $0xe0] sm:$0xff]
      %v2437 = vld [vmem:[#allocation2 + $0xf0] sm:$0xff]
      %v2438 = vld [vmem:[#allocation2 + $0xf8] sm:$0xff]
      %v2439 = vld [vmem:[#allocation2 + $0x108] sm:$0xff]
      %v2440 = vld [vmem:[#allocation2 + $0x110] sm:$0xff]
      %v2441 = vld [vmem:[#allocation2 + $0x120] sm:$0xff]
      %v2442 = vld [vmem:[#allocation2 + $0x128] sm:$0xff]
      %v2443 = vld [vmem:[#allocation2 + $0x138] sm:$0xff]
      %v2444 = vld [vmem:[#allocation2 + $0x140] sm:$0xff]
      %v2445 = vld [vmem:[#allocation2 + $0x150] sm:$0xff]
      %v2446 = vld [vmem:[#allocation2 + $0x158] sm:$0xff]
      %v2447 = vld [vmem:[#allocation2 + $0x168] sm:$0xff]
      %v2448 = vld [vmem:[#allocation2 + $0x170] sm:$0xff]
      %v2449 = vld [vmem:[#allocation2 + $0x1] sm:$0xff]
      %v2450 = vld [vmem:[#allocation2 + $0x9] sm:$0xff]
      %v2451 = vld [vmem:[#allocation2 + $0x19] sm:$0xff]
      %v2452 = vld [vmem:[#allocation2 + $0x21] sm:$0xff]
      %v2453 = vld [vmem:[#allocation2 + $0x31] sm:$0xff]
      %v2454 = vld [vmem:[#allocation2 + $0x39] sm:$0xff]
      %v2455 = vld [vmem:[#allocation2 + $0x49] sm:$0xff]
      %v2456 = vld [vmem:[#allocation2 + $0x51] sm:$0xff]
      %v2457 = vld [vmem:[#allocation2 + $0x61] sm:$0xff]
      %v2458 = vld [vmem:[#allocation2 + $0x69] sm:$0xff]
      %v2459 = vld [vmem:[#allocation2 + $0x79] sm:$0xff]
      %v2460 = vld [vmem:[#allocation2 + $0x81] sm:$0xff]
      %v2461 = vld [vmem:[#allocation2 + $0x91] sm:$0xff]
      %v2462 = vld [vmem:[#allocation2 + $0x99] sm:$0xff]
      %v2463 = vld [vmem:[#allocation2 + $0xa9] sm:$0xff]
      %v2464 = vld [vmem:[#allocation2 + $0xb1] sm:$0xff]
      %v2465 = vld [vmem:[#allocation2 + $0xc1] sm:$0xff]
      %v2466 = vld [vmem:[#allocation2 + $0xc9] sm:$0xff]
      %v2467 = vld [vmem:[#allocation2 + $0xd9] sm:$0xff]
      %v2468 = vld [vmem:[#allocation2 + $0xe1] sm:$0xff]
      %v2469 = vld [vmem:[#allocation2 + $0xf1] sm:$0xff]
      %v2470 = vld [vmem:[#allocation2 + $0xf9] sm:$0xff]
      %v2471 = vld [vmem:[#allocation2 + $0x109] sm:$0xff]
      %v2472 = vld [vmem:[#allocation2 + $0x111] sm:$0xff]
      %v2473 = vld [vmem:[#allocation2 + $0x121] sm:$0xff]
      %v2474 = vld [vmem:[#allocation2 + $0x129] sm:$0xff]
      %v2475 = vld [vmem:[#allocation2 + $0x139] sm:$0xff]
      %v2476 = vld [vmem:[#allocation2 + $0x141] sm:$0xff]
      %v2477 = vld [vmem:[#allocation2 + $0x151] sm:$0xff]
      %v2478 = vld [vmem:[#allocation2 + $0x159] sm:$0xff]
      %v2479 = vld [vmem:[#allocation2 + $0x169] sm:$0xff]
      %v2480 = vld [vmem:[#allocation2 + $0x171] sm:$0xff]
      %v2481 = vld [vmem:[#allocation2 + $0x2] sm:$0xff]
      %v2482 = vld [vmem:[#allocation2 + $0xa] sm:$0xff]
      %v2483 = vld [vmem:[#allocation2 + $0x1a] sm:$0xff]
      %v2484 = vld [vmem:[#allocation2 + $0x22] sm:$0xff]
      %v2485 = vld [vmem:[#allocation2 + $0x32] sm:$0xff]
      %v2486 = vld [vmem:[#allocation2 + $0x3a] sm:$0xff]
      %v2487 = vld [vmem:[#allocation2 + $0x4a] sm:$0xff]
      %v2488 = vld [vmem:[#allocation2 + $0x52] sm:$0xff]
      %v2489 = vld [vmem:[#allocation2 + $0x62] sm:$0xff]
      %v2490 = vld [vmem:[#allocation2 + $0x6a] sm:$0xff]
      %v2491 = vld [vmem:[#allocation2 + $0x7a] sm:$0xff]
      %v2492 = vld [vmem:[#allocation2 + $0x82] sm:$0xff]
      %v2493 = vld [vmem:[#allocation2 + $0x92] sm:$0xff]
      %v2494 = vld [vmem:[#allocation2 + $0x9a] sm:$0xff]
      %v2495 = vld [vmem:[#allocation2 + $0xaa] sm:$0xff]
      %v2496 = vld [vmem:[#allocation2 + $0xb2] sm:$0xff]
      %v2497 = vld [vmem:[#allocation2 + $0xc2] sm:$0xff]
      %v2498 = vld [vmem:[#allocation2 + $0xca] sm:$0xff]
      %v2499 = vld [vmem:[#allocation2 + $0xda] sm:$0xff]
      %v2500 = vld [vmem:[#allocation2 + $0xe2] sm:$0xff]
      %v2501 = vld [vmem:[#allocation2 + $0xf2] sm:$0xff]
      %v2502 = vld [vmem:[#allocation2 + $0xfa] sm:$0xff]
      %v2503 = vld [vmem:[#allocation2 + $0x10a] sm:$0xff]
      %v2504 = vld [vmem:[#allocation2 + $0x112] sm:$0xff]
      %v2505 = vld [vmem:[#allocation2 + $0x122] sm:$0xff]
      %v2506 = vld [vmem:[#allocation2 + $0x12a] sm:$0xff]
      %v2507 = vld [vmem:[#allocation2 + $0x13a] sm:$0xff]
      %v2508 = vld [vmem:[#allocation2 + $0x142] sm:$0xff]
      %v2509 = vld [vmem:[#allocation2 + $0x152] sm:$0xff]
      %v2510 = vld [vmem:[#allocation2 + $0x15a] sm:$0xff]
      %v2511 = vld [vmem:[#allocation2 + $0x16a] sm:$0xff]
      %v2512 = vld [vmem:[#allocation2 + $0x172] sm:$0xff]
      %v2513 = vld [vmem:[%s400] sm:$0xff]
      %v2514 = vld [vmem:[%s400 + $0x8] sm:$0xff]
      %v2515 = vld [vmem:[%s400 + $0x18] sm:$0xff]
      %v2516 = vld [vmem:[%s400 + $0x20] sm:$0xff]
      %v2517 = vld [vmem:[%s400 + $0x30] sm:$0xff]
      %v2518 = vld [vmem:[%s400 + $0x38] sm:$0xff]
      %v2519 = vld [vmem:[%s400 + $0x48] sm:$0xff]
      %v2520 = vld [vmem:[%s400 + $0x50] sm:$0xff]
      %v2521 = vld [vmem:[%s400 + $0x60] sm:$0xff]
      %v2522 = vld [vmem:[%s400 + $0x68] sm:$0xff]
      %v2523 = vld [vmem:[%s400 + $0x78] sm:$0xff]
      %v2524 = vld [vmem:[%s400 + $0x80] sm:$0xff]
      %v2525 = vld [vmem:[%s400 + $0x90] sm:$0xff]
      %v2526 = vld [vmem:[%s400 + $0x98] sm:$0xff]
      %v2527 = vld [vmem:[%s400 + $0xa8] sm:$0xff]
      %v2528 = vld [vmem:[%s400 + $0xb0] sm:$0xff]
      %v2529 = vld [vmem:[%s400 + $0xc0] sm:$0xff]
      %v2530 = vld [vmem:[%s400 + $0xc8] sm:$0xff]
      %v2531 = vld [vmem:[%s400 + $0xd8] sm:$0xff]
      %v2532 = vld [vmem:[%s400 + $0xe0] sm:$0xff]
      %v2533 = vld [vmem:[%s400 + $0xf0] sm:$0xff]
      %v2534 = vld [vmem:[%s400 + $0xf8] sm:$0xff]
      %v2535 = vld [vmem:[%s400 + $0x108] sm:$0xff]
      %v2536 = vld [vmem:[%s400 + $0x110] sm:$0xff]
      %v2537 = vld [vmem:[%s400 + $0x120] sm:$0xff]
      %v2538 = vld [vmem:[%s400 + $0x128] sm:$0xff]
      %v2539 = vld [vmem:[%s400 + $0x138] sm:$0xff]
      %v2540 = vld [vmem:[%s400 + $0x140] sm:$0xff]
      %v2541 = vld [vmem:[%s400 + $0x150] sm:$0xff]
      %v2542 = vld [vmem:[%s400 + $0x158] sm:$0xff]
      %v2543 = vld [vmem:[%s400 + $0x168] sm:$0xff]
      %v2544 = vld [vmem:[%s400 + $0x170] sm:$0xff]
      %v2545 = vld [vmem:[%s400 + $0x1] sm:$0xff]
      %v2546 = vld [vmem:[%s400 + $0x9] sm:$0xff]
      %v2547 = vld [vmem:[%s400 + $0x19] sm:$0xff]
      %v2548 = vld [vmem:[%s400 + $0x21] sm:$0xff]
      %v2549 = vld [vmem:[%s400 + $0x31] sm:$0xff]
      %v2550 = vld [vmem:[%s400 + $0x39] sm:$0xff]
      %v2551 = vld [vmem:[%s400 + $0x49] sm:$0xff]
      %v2552 = vld [vmem:[%s400 + $0x51] sm:$0xff]
      %v2553 = vld [vmem:[%s400 + $0x61] sm:$0xff]
      %v2554 = vld [vmem:[%s400 + $0x69] sm:$0xff]
      %v2555 = vld [vmem:[%s400 + $0x79] sm:$0xff]
      %v2556 = vld [vmem:[%s400 + $0x81] sm:$0xff]
      %v2557 = vld [vmem:[%s400 + $0x91] sm:$0xff]
      %v2558 = vld [vmem:[%s400 + $0x99] sm:$0xff]
      %v2559 = vld [vmem:[%s400 + $0xa9] sm:$0xff]
      %v2560 = vld [vmem:[%s400 + $0xb1] sm:$0xff]
      %v2561 = vld [vmem:[%s400 + $0xc1] sm:$0xff]
      %v2562 = vld [vmem:[%s400 + $0xc9] sm:$0xff]
      %v2563 = vld [vmem:[%s400 + $0xd9] sm:$0xff]
      %v2564 = vld [vmem:[%s400 + $0xe1] sm:$0xff]
      %v2565 = vld [vmem:[%s400 + $0xf1] sm:$0xff]
      %v2566 = vld [vmem:[%s400 + $0xf9] sm:$0xff]
      %v2567 = vld [vmem:[%s400 + $0x109] sm:$0xff]
      %v2568 = vld [vmem:[%s400 + $0x111] sm:$0xff]
      %v2569 = vld [vmem:[%s400 + $0x121] sm:$0xff]
      %v2570 = vld [vmem:[%s400 + $0x129] sm:$0xff]
      %v2571 = vld [vmem:[%s400 + $0x139] sm:$0xff]
      %v2572 = vld [vmem:[%s400 + $0x141] sm:$0xff]
      %v2573 = vld [vmem:[%s400 + $0x151] sm:$0xff]
      %v2574 = vld [vmem:[%s400 + $0x159] sm:$0xff]
      %v2575 = vld [vmem:[%s400 + $0x169] sm:$0xff]
      %v2576 = vld [vmem:[%s400 + $0x171] sm:$0xff]
      %v2577 = vld [vmem:[%s400 + $0x2] sm:$0xff]
      %v2578 = vld [vmem:[%s400 + $0xa] sm:$0xff]
      %v2579 = vld [vmem:[%s400 + $0x1a] sm:$0xff]
      %v2580 = vld [vmem:[%s400 + $0x22] sm:$0xff]
      %v2581 = vld [vmem:[%s400 + $0x32] sm:$0xff]
      %v2582 = vld [vmem:[%s400 + $0x3a] sm:$0xff]
      %v2583 = vld [vmem:[%s400 + $0x4a] sm:$0xff]
      %v2584 = vld [vmem:[%s400 + $0x52] sm:$0xff]
      %v2585 = vld [vmem:[%s400 + $0x62] sm:$0xff]
      %v2586 = vld [vmem:[%s400 + $0x6a] sm:$0xff]
      %v2587 = vld [vmem:[%s400 + $0x7a] sm:$0xff]
      %v2588 = vld [vmem:[%s400 + $0x82] sm:$0xff]
      %v2589 = vld [vmem:[%s400 + $0x92] sm:$0xff]
      %v2590 = vld [vmem:[%s400 + $0x9a] sm:$0xff]
      %v2591 = vld [vmem:[%s400 + $0xaa] sm:$0xff]
      %v2592 = vld [vmem:[%s400 + $0xb2] sm:$0xff]
      %v2593 = vld [vmem:[%s400 + $0xc2] sm:$0xff]
      %v2594 = vld [vmem:[%s400 + $0xca] sm:$0xff]
      %v2595 = vld [vmem:[%s400 + $0xda] sm:$0xff]
      %v2596 = vld [vmem:[%s400 + $0xe2] sm:$0xff]
      %v2597 = vld [vmem:[%s400 + $0xf2] sm:$0xff]
      %v2598 = vld [vmem:[%s400 + $0xfa] sm:$0xff]
      %v2599 = vld [vmem:[%s400 + $0x10a] sm:$0xff]
      %v2600 = vld [vmem:[%s400 + $0x112] sm:$0xff]
      %v2601 = vld [vmem:[%s400 + $0x122] sm:$0xff]
      %v2602 = vld [vmem:[%s400 + $0x12a] sm:$0xff]
      %v2603 = vld [vmem:[%s400 + $0x13a] sm:$0xff]
      %v2604 = vld [vmem:[%s400 + $0x142] sm:$0xff]
      %v2605 = vld [vmem:[%s400 + $0x152] sm:$0xff]
      %v2606 = vld [vmem:[%s400 + $0x15a] sm:$0xff]
      %v2607 = vld [vmem:[%s400 + $0x16a] sm:$0xff]
      %v2608 = vld [vmem:[%s400 + $0x172] sm:$0xff]
      %v2609 = vld [vmem:[%s625] sm:$0xff]
      %v2610 = vld [vmem:[%s625 + $0x8] sm:$0xff]
      %v2611 = vld [vmem:[%s625 + $0x18] sm:$0xff]
      %v2612 = vld [vmem:[%s625 + $0x20] sm:$0xff]
      %v2613 = vld [vmem:[%s625 + $0x30] sm:$0xff]
      %v2614 = vld [vmem:[%s625 + $0x38] sm:$0xff]
      %v2615 = vld [vmem:[%s625 + $0x48] sm:$0xff]
      %v2616 = vld [vmem:[%s625 + $0x50] sm:$0xff]
      %v2617 = vld [vmem:[%s625 + $0x60] sm:$0xff]
      %v2618 = vld [vmem:[%s625 + $0x68] sm:$0xff]
      %v2619 = vld [vmem:[%s625 + $0x78] sm:$0xff]
      %v2620 = vld [vmem:[%s625 + $0x80] sm:$0xff]
      %v2621 = vld [vmem:[%s625 + $0x90] sm:$0xff]
      %v2622 = vld [vmem:[%s625 + $0x98] sm:$0xff]
      %v2623 = vld [vmem:[%s625 + $0xa8] sm:$0xff]
      %v2624 = vld [vmem:[%s625 + $0xb0] sm:$0xff]
      %v2625 = vld [vmem:[%s625 + $0xc0] sm:$0xff]
      %v2626 = vld [vmem:[%s625 + $0xc8] sm:$0xff]
      %v2627 = vld [vmem:[%s625 + $0xd8] sm:$0xff]
      %v2628 = vld [vmem:[%s625 + $0xe0] sm:$0xff]
      %v2629 = vld [vmem:[%s625 + $0xf0] sm:$0xff]
      %v2630 = vld [vmem:[%s625 + $0xf8] sm:$0xff]
      %v2631 = vld [vmem:[%s625 + $0x108] sm:$0xff]
      %v2632 = vld [vmem:[%s625 + $0x110] sm:$0xff]
      %v2633 = vld [vmem:[%s625 + $0x120] sm:$0xff]
      %v2634 = vld [vmem:[%s625 + $0x128] sm:$0xff]
      %v2635 = vld [vmem:[%s625 + $0x138] sm:$0xff]
      %v2636 = vld [vmem:[%s625 + $0x140] sm:$0xff]
      %v2637 = vld [vmem:[%s625 + $0x150] sm:$0xff]
      %v2638 = vld [vmem:[%s625 + $0x158] sm:$0xff]
      %v2639 = vld [vmem:[%s625 + $0x168] sm:$0xff]
      %v2640 = vld [vmem:[%s625 + $0x170] sm:$0xff]
      %v2641 = vld [vmem:[%s625 + $0x1] sm:$0xff]
      %v2642 = vld [vmem:[%s625 + $0x9] sm:$0xff]
      %v2643 = vld [vmem:[%s625 + $0x19] sm:$0xff]
      %v2644 = vld [vmem:[%s625 + $0x21] sm:$0xff]
      %v2645 = vld [vmem:[%s625 + $0x31] sm:$0xff]
      %v2646 = vld [vmem:[%s625 + $0x39] sm:$0xff]
      %v2647 = vld [vmem:[%s625 + $0x49] sm:$0xff]
      %v2648 = vld [vmem:[%s625 + $0x51] sm:$0xff]
      %v2649 = vld [vmem:[%s625 + $0x61] sm:$0xff]
      %v2650 = vld [vmem:[%s625 + $0x69] sm:$0xff]
      %v2651 = vld [vmem:[%s625 + $0x79] sm:$0xff]
      %v2652 = vld [vmem:[%s625 + $0x81] sm:$0xff]
      %v2653 = vld [vmem:[%s625 + $0x91] sm:$0xff]
      %v2654 = vld [vmem:[%s625 + $0x99] sm:$0xff]
      %v2655 = vld [vmem:[%s625 + $0xa9] sm:$0xff]
      %v2656 = vld [vmem:[%s625 + $0xb1] sm:$0xff]
      %v2657 = vld [vmem:[%s625 + $0xc1] sm:$0xff]
      %v2658 = vld [vmem:[%s625 + $0xc9] sm:$0xff]
      %v2659 = vld [vmem:[%s625 + $0xd9] sm:$0xff]
      %v2660 = vld [vmem:[%s625 + $0xe1] sm:$0xff]
      %v2661 = vld [vmem:[%s625 + $0xf1] sm:$0xff]
      %v2662 = vld [vmem:[%s625 + $0xf9] sm:$0xff]
      %v2663 = vld [vmem:[%s625 + $0x109] sm:$0xff]
      %v2664 = vld [vmem:[%s625 + $0x111] sm:$0xff]
      %v2665 = vld [vmem:[%s625 + $0x121] sm:$0xff]
      %v2666 = vld [vmem:[%s625 + $0x129] sm:$0xff]
      %v2667 = vld [vmem:[%s625 + $0x139] sm:$0xff]
      %v2668 = vld [vmem:[%s625 + $0x141] sm:$0xff]
      %v2669 = vld [vmem:[%s625 + $0x151] sm:$0xff]
      %v2670 = vld [vmem:[%s625 + $0x159] sm:$0xff]
      %v2671 = vld [vmem:[%s625 + $0x169] sm:$0xff]
      %v2672 = vld [vmem:[%s625 + $0x171] sm:$0xff]
      %v2673 = vld [vmem:[%s625 + $0x2] sm:$0xff]
      %v2674 = vld [vmem:[%s625 + $0xa] sm:$0xff]
      %v2675 = vld [vmem:[%s625 + $0x1a] sm:$0xff]
      %v2676 = vld [vmem:[%s625 + $0x22] sm:$0xff]
      %v2677 = vld [vmem:[%s625 + $0x32] sm:$0xff]
      %v2678 = vld [vmem:[%s625 + $0x3a] sm:$0xff]
      %v2679 = vld [vmem:[%s625 + $0x4a] sm:$0xff]
      %v2680 = vld [vmem:[%s625 + $0x52] sm:$0xff]
      %v2681 = vld [vmem:[%s625 + $0x62] sm:$0xff]
      %v2682 = vld [vmem:[%s625 + $0x6a] sm:$0xff]
      %v2683 = vld [vmem:[%s625 + $0x7a] sm:$0xff]
      %v2684 = vld [vmem:[%s625 + $0x82] sm:$0xff]
      %v2685 = vld [vmem:[%s625 + $0x92] sm:$0xff]
      %v2686 = vld [vmem:[%s625 + $0x9a] sm:$0xff]
      %v2687 = vld [vmem:[%s625 + $0xaa] sm:$0xff]
      %v2688 = vld [vmem:[%s625 + $0xb2] sm:$0xff]
      %v2689 = vld [vmem:[%s625 + $0xc2] sm:$0xff]
      %v2690 = vld [vmem:[%s625 + $0xca] sm:$0xff]
      %v2691 = vld [vmem:[%s625 + $0xda] sm:$0xff]
      %v2692 = vld [vmem:[%s625 + $0xe2] sm:$0xff]
      %v2693 = vld [vmem:[%s625 + $0xf2] sm:$0xff]
      %v2694 = vld [vmem:[%s625 + $0xfa] sm:$0xff]
      %v2695 = vld [vmem:[%s625 + $0x10a] sm:$0xff]
      %v2696 = vld [vmem:[%s625 + $0x112] sm:$0xff]
      %v2697 = vld [vmem:[%s625 + $0x122] sm:$0xff]
      %v2698 = vld [vmem:[%s625 + $0x12a] sm:$0xff]
      %v2699 = vld [vmem:[%s625 + $0x13a] sm:$0xff]
      %v2700 = vld [vmem:[%s625 + $0x142] sm:$0xff]
      %v2701 = vld [vmem:[%s625 + $0x152] sm:$0xff]
      %v2702 = vld [vmem:[%s625 + $0x15a] sm:$0xff]
      %v2703 = vld [vmem:[%s625 + $0x16a] sm:$0xff]
      %v2704 = vld [vmem:[%s625 + $0x172] sm:$0xff]
      %2737 = vrot.lane.b32.xlu0 %v2449, 8
      %v2738 = vpop.permute.xlu0 %2737
      %2739 = vrot.lane.b32.xlu0 %v2450, 8
      %v2740 = vpop.permute.xlu0 %2739
      %2741 = vrot.lane.b32.xlu0 %v2451, 8
      %v2742 = vpop.permute.xlu0 %2741
      %2743 = vrot.lane.b32.xlu0 %v2452, 8
      %v2744 = vpop.permute.xlu0 %2743
      %2745 = vrot.lane.b32.xlu0 %v2453, 8
      %v2746 = vpop.permute.xlu0 %2745
      %2747 = vrot.lane.b32.xlu0 %v2454, 8
      %v2748 = vpop.permute.xlu0 %2747
      %2749 = vrot.lane.b32.xlu0 %v2455, 8
      %v2750 = vpop.permute.xlu0 %2749
      %2751 = vrot.lane.b32.xlu0 %v2456, 8
      %v2752 = vpop.permute.xlu0 %2751
      %2753 = vrot.lane.b32.xlu0 %v2457, 8
      %v2754 = vpop.permute.xlu0 %2753
      %2755 = vrot.lane.b32.xlu0 %v2458, 8
      %v2756 = vpop.permute.xlu0 %2755
      %2757 = vrot.lane.b32.xlu0 %v2459, 8
      %v2758 = vpop.permute.xlu0 %2757
      %2759 = vrot.lane.b32.xlu0 %v2460, 8
      %v2760 = vpop.permute.xlu0 %2759
      %2761 = vrot.lane.b32.xlu0 %v2461, 8
      %v2762 = vpop.permute.xlu0 %2761
      %2763 = vrot.lane.b32.xlu0 %v2462, 8
      %v2764 = vpop.permute.xlu0 %2763
      %2765 = vrot.lane.b32.xlu0 %v2463, 8
      %v2766 = vpop.permute.xlu0 %2765
      %2767 = vrot.lane.b32.xlu0 %v2464, 8
      %v2768 = vpop.permute.xlu0 %2767
      %2769 = vrot.lane.b32.xlu0 %v2465, 8
      %v2770 = vpop.permute.xlu0 %2769
      %2771 = vrot.lane.b32.xlu0 %v2466, 8
      %v2772 = vpop.permute.xlu0 %2771
      %2773 = vrot.lane.b32.xlu0 %v2467, 8
      %v2774 = vpop.permute.xlu0 %2773
      %2775 = vrot.lane.b32.xlu0 %v2468, 8
      %v2776 = vpop.permute.xlu0 %2775
      %2777 = vrot.lane.b32.xlu0 %v2469, 8
      %v2778 = vpop.permute.xlu0 %2777
      %2779 = vrot.lane.b32.xlu0 %v2470, 8
      %v2780 = vpop.permute.xlu0 %2779
      %2781 = vrot.lane.b32.xlu0 %v2471, 8
      %v2782 = vpop.permute.xlu0 %2781
      %2783 = vrot.lane.b32.xlu0 %v2472, 8
      %v2784 = vpop.permute.xlu0 %2783
      %2785 = vrot.lane.b32.xlu0 %v2473, 8
      %v2786 = vpop.permute.xlu0 %2785
      %2787 = vrot.lane.b32.xlu0 %v2474, 8
      %v2788 = vpop.permute.xlu0 %2787
      %2789 = vrot.lane.b32.xlu0 %v2475, 8
      %v2790 = vpop.permute.xlu0 %2789
      %2791 = vrot.lane.b32.xlu0 %v2476, 8
      %v2792 = vpop.permute.xlu0 %2791
      %2793 = vrot.lane.b32.xlu0 %v2477, 8
      %v2794 = vpop.permute.xlu0 %2793
      %2795 = vrot.lane.b32.xlu0 %v2478, 8
      %v2796 = vpop.permute.xlu0 %2795
      %2797 = vrot.lane.b32.xlu0 %v2479, 8
      %v2798 = vpop.permute.xlu0 %2797
      %2799 = vrot.lane.b32.xlu0 %v2480, 8
      %v2800 = vpop.permute.xlu0 %2799
      %2865 = vrot.lane.b32.xlu0 %v2481, 16
      %v2866 = vpop.permute.xlu0 %2865
      %2867 = vrot.lane.b32.xlu0 %v2482, 16
      %v2868 = vpop.permute.xlu0 %2867
      %2869 = vrot.lane.b32.xlu0 %v2483, 16
      %v2870 = vpop.permute.xlu0 %2869
      %2871 = vrot.lane.b32.xlu0 %v2484, 16
      %v2872 = vpop.permute.xlu0 %2871
      %2873 = vrot.lane.b32.xlu0 %v2485, 16
      %v2874 = vpop.permute.xlu0 %2873
      %2875 = vrot.lane.b32.xlu0 %v2486, 16
      %v2876 = vpop.permute.xlu0 %2875
      %2877 = vrot.lane.b32.xlu0 %v2487, 16
      %v2878 = vpop.permute.xlu0 %2877
      %2879 = vrot.lane.b32.xlu0 %v2488, 16
      %v2880 = vpop.permute.xlu0 %2879
      %2881 = vrot.lane.b32.xlu0 %v2489, 16
      %v2882 = vpop.permute.xlu0 %2881
      %2883 = vrot.lane.b32.xlu0 %v2490, 16
      %v2884 = vpop.permute.xlu0 %2883
      %2885 = vrot.lane.b32.xlu0 %v2491, 16
      %v2886 = vpop.permute.xlu0 %2885
      %2887 = vrot.lane.b32.xlu0 %v2492, 16
      %v2888 = vpop.permute.xlu0 %2887
      %2889 = vrot.lane.b32.xlu0 %v2493, 16
      %v2890 = vpop.permute.xlu0 %2889
      %2891 = vrot.lane.b32.xlu0 %v2494, 16
      %v2892 = vpop.permute.xlu0 %2891
      %2893 = vrot.lane.b32.xlu0 %v2495, 16
      %v2894 = vpop.permute.xlu0 %2893
      %2895 = vrot.lane.b32.xlu0 %v2496, 16
      %v2896 = vpop.permute.xlu0 %2895
      %2897 = vrot.lane.b32.xlu0 %v2497, 16
      %v2898 = vpop.permute.xlu0 %2897
      %2899 = vrot.lane.b32.xlu0 %v2498, 16
      %v2900 = vpop.permute.xlu0 %2899
      %2901 = vrot.lane.b32.xlu0 %v2499, 16
      %v2902 = vpop.permute.xlu0 %2901
      %2903 = vrot.lane.b32.xlu0 %v2500, 16
      %v2904 = vpop.permute.xlu0 %2903
      %2905 = vrot.lane.b32.xlu0 %v2501, 16
      %v2906 = vpop.permute.xlu0 %2905
      %2907 = vrot.lane.b32.xlu0 %v2502, 16
      %v2908 = vpop.permute.xlu0 %2907
      %2909 = vrot.lane.b32.xlu0 %v2503, 16
      %v2910 = vpop.permute.xlu0 %2909
      %2911 = vrot.lane.b32.xlu0 %v2504, 16
      %v2912 = vpop.permute.xlu0 %2911
      %2913 = vrot.lane.b32.xlu0 %v2505, 16
      %v2914 = vpop.permute.xlu0 %2913
      %2915 = vrot.lane.b32.xlu0 %v2506, 16
      %v2916 = vpop.permute.xlu0 %2915
      %2917 = vrot.lane.b32.xlu0 %v2507, 16
      %v2918 = vpop.permute.xlu0 %2917
      %2919 = vrot.lane.b32.xlu0 %v2508, 16
      %v2920 = vpop.permute.xlu0 %2919
      %2921 = vrot.lane.b32.xlu0 %v2509, 16
      %v2922 = vpop.permute.xlu0 %2921
      %2923 = vrot.lane.b32.xlu0 %v2510, 16
      %v2924 = vpop.permute.xlu0 %2923
      %2925 = vrot.lane.b32.xlu0 %v2511, 16
      %v2926 = vpop.permute.xlu0 %2925
      %2927 = vrot.lane.b32.xlu0 %v2512, 16
      %v2928 = vpop.permute.xlu0 %2927
      %2993 = vrot.lane.b32.xlu0 %v2513, 24
      %v2994 = vpop.permute.xlu0 %2993
      %2995 = vrot.lane.b32.xlu0 %v2514, 24
      %v2996 = vpop.permute.xlu0 %2995
      %2997 = vrot.lane.b32.xlu0 %v2515, 24
      %v2998 = vpop.permute.xlu0 %2997
      %2999 = vrot.lane.b32.xlu0 %v2516, 24
      %v3000 = vpop.permute.xlu0 %2999
      %3001 = vrot.lane.b32.xlu0 %v2517, 24
      %v3002 = vpop.permute.xlu0 %3001
      %3003 = vrot.lane.b32.xlu0 %v2518, 24
      %v3004 = vpop.permute.xlu0 %3003
      %3005 = vrot.lane.b32.xlu0 %v2519, 24
      %v3006 = vpop.permute.xlu0 %3005
      %3007 = vrot.lane.b32.xlu0 %v2520, 24
      %v3008 = vpop.permute.xlu0 %3007
      %3009 = vrot.lane.b32.xlu0 %v2521, 24
      %v3010 = vpop.permute.xlu0 %3009
      %3011 = vrot.lane.b32.xlu0 %v2522, 24
      %v3012 = vpop.permute.xlu0 %3011
      %3013 = vrot.lane.b32.xlu0 %v2523, 24
      %v3014 = vpop.permute.xlu0 %3013
      %3015 = vrot.lane.b32.xlu0 %v2524, 24
      %v3016 = vpop.permute.xlu0 %3015
      %3017 = vrot.lane.b32.xlu0 %v2525, 24
      %v3018 = vpop.permute.xlu0 %3017
      %3019 = vrot.lane.b32.xlu0 %v2526, 24
      %v3020 = vpop.permute.xlu0 %3019
      %3021 = vrot.lane.b32.xlu0 %v2527, 24
      %v3022 = vpop.permute.xlu0 %3021
      %3023 = vrot.lane.b32.xlu0 %v2528, 24
      %v3024 = vpop.permute.xlu0 %3023
      %3025 = vrot.lane.b32.xlu0 %v2529, 24
      %v3026 = vpop.permute.xlu0 %3025
      %3027 = vrot.lane.b32.xlu0 %v2530, 24
      %v3028 = vpop.permute.xlu0 %3027
      %3029 = vrot.lane.b32.xlu0 %v2531, 24
      %v3030 = vpop.permute.xlu0 %3029
      %3031 = vrot.lane.b32.xlu0 %v2532, 24
      %v3032 = vpop.permute.xlu0 %3031
      %3033 = vrot.lane.b32.xlu0 %v2533, 24
      %v3034 = vpop.permute.xlu0 %3033
      %3035 = vrot.lane.b32.xlu0 %v2534, 24
      %v3036 = vpop.permute.xlu0 %3035
      %3037 = vrot.lane.b32.xlu0 %v2535, 24
      %v3038 = vpop.permute.xlu0 %3037
      %3039 = vrot.lane.b32.xlu0 %v2536, 24
      %v3040 = vpop.permute.xlu0 %3039
      %3041 = vrot.lane.b32.xlu0 %v2537, 24
      %v3042 = vpop.permute.xlu0 %3041
      %3043 = vrot.lane.b32.xlu0 %v2538, 24
      %v3044 = vpop.permute.xlu0 %3043
      %3045 = vrot.lane.b32.xlu0 %v2539, 24
      %v3046 = vpop.permute.xlu0 %3045
      %3047 = vrot.lane.b32.xlu0 %v2540, 24
      %v3048 = vpop.permute.xlu0 %3047
      %3049 = vrot.lane.b32.xlu0 %v2541, 24
      %v3050 = vpop.permute.xlu0 %3049
      %3051 = vrot.lane.b32.xlu0 %v2542, 24
      %v3052 = vpop.permute.xlu0 %3051
      %3053 = vrot.lane.b32.xlu0 %v2543, 24
      %v3054 = vpop.permute.xlu0 %3053
      %3055 = vrot.lane.b32.xlu0 %v2544, 24
      %v3056 = vpop.permute.xlu0 %3055
      %3121 = vrot.lane.b32.xlu0 %v2545, 32
      %v3122 = vpop.permute.xlu0 %3121
      %3123 = vrot.lane.b32.xlu0 %v2546, 32
      %v3124 = vpop.permute.xlu0 %3123
      %3125 = vrot.lane.b32.xlu0 %v2547, 32
      %v3126 = vpop.permute.xlu0 %3125
      %3127 = vrot.lane.b32.xlu0 %v2548, 32
      %v3128 = vpop.permute.xlu0 %3127
      %3129 = vrot.lane.b32.xlu0 %v2549, 32
      %v3130 = vpop.permute.xlu0 %3129
      %3131 = vrot.lane.b32.xlu0 %v2550, 32
      %v3132 = vpop.permute.xlu0 %3131
      %3133 = vrot.lane.b32.xlu0 %v2551, 32
      %v3134 = vpop.permute.xlu0 %3133
      %3135 = vrot.lane.b32.xlu0 %v2552, 32
      %v3136 = vpop.permute.xlu0 %3135
      %3137 = vrot.lane.b32.xlu0 %v2553, 32
      %v3138 = vpop.permute.xlu0 %3137
      %3139 = vrot.lane.b32.xlu0 %v2554, 32
      %v3140 = vpop.permute.xlu0 %3139
      %3141 = vrot.lane.b32.xlu0 %v2555, 32
      %v3142 = vpop.permute.xlu0 %3141
      %3143 = vrot.lane.b32.xlu0 %v2556, 32
      %v3144 = vpop.permute.xlu0 %3143
      %3145 = vrot.lane.b32.xlu0 %v2557, 32
      %v3146 = vpop.permute.xlu0 %3145
      %3147 = vrot.lane.b32.xlu0 %v2558, 32
      %v3148 = vpop.permute.xlu0 %3147
      %3149 = vrot.lane.b32.xlu0 %v2559, 32
      %v3150 = vpop.permute.xlu0 %3149
      %3151 = vrot.lane.b32.xlu0 %v2560, 32
      %v3152 = vpop.permute.xlu0 %3151
      %3153 = vrot.lane.b32.xlu0 %v2561, 32
      %v3154 = vpop.permute.xlu0 %3153
      %3155 = vrot.lane.b32.xlu0 %v2562, 32
      %v3156 = vpop.permute.xlu0 %3155
      %3157 = vrot.lane.b32.xlu0 %v2563, 32
      %v3158 = vpop.permute.xlu0 %3157
      %3159 = vrot.lane.b32.xlu0 %v2564, 32
      %v3160 = vpop.permute.xlu0 %3159
      %3161 = vrot.lane.b32.xlu0 %v2565, 32
      %v3162 = vpop.permute.xlu0 %3161
      %3163 = vrot.lane.b32.xlu0 %v2566, 32
      %v3164 = vpop.permute.xlu0 %3163
      %3165 = vrot.lane.b32.xlu0 %v2567, 32
      %v3166 = vpop.permute.xlu0 %3165
      %3167 = vrot.lane.b32.xlu0 %v2568, 32
      %v3168 = vpop.permute.xlu0 %3167
      %3169 = vrot.lane.b32.xlu0 %v2569, 32
      %v3170 = vpop.permute.xlu0 %3169
      %3171 = vrot.lane.b32.xlu0 %v2570, 32
      %v3172 = vpop.permute.xlu0 %3171
      %3173 = vrot.lane.b32.xlu0 %v2571, 32
      %v3174 = vpop.permute.xlu0 %3173
      %3175 = vrot.lane.b32.xlu0 %v2572, 32
      %v3176 = vpop.permute.xlu0 %3175
      %3177 = vrot.lane.b32.xlu0 %v2573, 32
      %v3178 = vpop.permute.xlu0 %3177
      %3179 = vrot.lane.b32.xlu0 %v2574, 32
      %v3180 = vpop.permute.xlu0 %3179
      %3181 = vrot.lane.b32.xlu0 %v2575, 32
      %v3182 = vpop.permute.xlu0 %3181
      %3183 = vrot.lane.b32.xlu0 %v2576, 32
      %v3184 = vpop.permute.xlu0 %3183
      %3249 = vrot.lane.b32.xlu0 %v2577, 40
      %v3250 = vpop.permute.xlu0 %3249
      %3251 = vrot.lane.b32.xlu0 %v2578, 40
      %v3252 = vpop.permute.xlu0 %3251
      %3253 = vrot.lane.b32.xlu0 %v2579, 40
      %v3254 = vpop.permute.xlu0 %3253
      %3255 = vrot.lane.b32.xlu0 %v2580, 40
      %v3256 = vpop.permute.xlu0 %3255
      %3257 = vrot.lane.b32.xlu0 %v2581, 40
      %v3258 = vpop.permute.xlu0 %3257
      %3259 = vrot.lane.b32.xlu0 %v2582, 40
      %v3260 = vpop.permute.xlu0 %3259
      %3261 = vrot.lane.b32.xlu0 %v2583, 40
      %v3262 = vpop.permute.xlu0 %3261
      %3263 = vrot.lane.b32.xlu0 %v2584, 40
      %v3264 = vpop.permute.xlu0 %3263
      %3265 = vrot.lane.b32.xlu0 %v2585, 40
      %v3266 = vpop.permute.xlu0 %3265
      %3267 = vrot.lane.b32.xlu0 %v2586, 40
      %v3268 = vpop.permute.xlu0 %3267
      %3269 = vrot.lane.b32.xlu0 %v2587, 40
      %v3270 = vpop.permute.xlu0 %3269
      %3271 = vrot.lane.b32.xlu0 %v2588, 40
      %v3272 = vpop.permute.xlu0 %3271
      %3273 = vrot.lane.b32.xlu0 %v2589, 40
      %v3274 = vpop.permute.xlu0 %3273
      %3275 = vrot.lane.b32.xlu0 %v2590, 40
      %v3276 = vpop.permute.xlu0 %3275
      %3277 = vrot.lane.b32.xlu0 %v2591, 40
      %v3278 = vpop.permute.xlu0 %3277
      %3279 = vrot.lane.b32.xlu0 %v2592, 40
      %v3280 = vpop.permute.xlu0 %3279
      %3281 = vrot.lane.b32.xlu0 %v2593, 40
      %v3282 = vpop.permute.xlu0 %3281
      %3283 = vrot.lane.b32.xlu0 %v2594, 40
      %v3284 = vpop.permute.xlu0 %3283
      %3285 = vrot.lane.b32.xlu0 %v2595, 40
      %v3286 = vpop.permute.xlu0 %3285
      %3287 = vrot.lane.b32.xlu0 %v2596, 40
      %v3288 = vpop.permute.xlu0 %3287
      %3289 = vrot.lane.b32.xlu0 %v2597, 40
      %v3290 = vpop.permute.xlu0 %3289
      %3291 = vrot.lane.b32.xlu0 %v2598, 40
      %v3292 = vpop.permute.xlu0 %3291
      %3293 = vrot.lane.b32.xlu0 %v2599, 40
      %v3294 = vpop.permute.xlu0 %3293
      %3295 = vrot.lane.b32.xlu0 %v2600, 40
      %v3296 = vpop.permute.xlu0 %3295
      %3297 = vrot.lane.b32.xlu0 %v2601, 40
      %v3298 = vpop.permute.xlu0 %3297
      %3299 = vrot.lane.b32.xlu0 %v2602, 40
      %v3300 = vpop.permute.xlu0 %3299
      %3301 = vrot.lane.b32.xlu0 %v2603, 40
      %v3302 = vpop.permute.xlu0 %3301
      %3303 = vrot.lane.b32.xlu0 %v2604, 40
      %v3304 = vpop.permute.xlu0 %3303
      %3305 = vrot.lane.b32.xlu0 %v2605, 40
      %v3306 = vpop.permute.xlu0 %3305
      %3307 = vrot.lane.b32.xlu0 %v2606, 40
      %v3308 = vpop.permute.xlu0 %3307
      %3309 = vrot.lane.b32.xlu0 %v2607, 40
      %v3310 = vpop.permute.xlu0 %3309
      %3311 = vrot.lane.b32.xlu0 %v2608, 40
      %v3312 = vpop.permute.xlu0 %3311
      %3377 = vrot.lane.b32.xlu0 %v2609, 48
      %v3378 = vpop.permute.xlu0 %3377
      %3379 = vrot.lane.b32.xlu0 %v2610, 48
      %v3380 = vpop.permute.xlu0 %3379
      %3381 = vrot.lane.b32.xlu0 %v2611, 48
      %v3382 = vpop.permute.xlu0 %3381
      %3383 = vrot.lane.b32.xlu0 %v2612, 48
      %v3384 = vpop.permute.xlu0 %3383
      %3385 = vrot.lane.b32.xlu0 %v2613, 48
      %v3386 = vpop.permute.xlu0 %3385
      %3387 = vrot.lane.b32.xlu0 %v2614, 48
      %v3388 = vpop.permute.xlu0 %3387
      %3389 = vrot.lane.b32.xlu0 %v2615, 48
      %v3390 = vpop.permute.xlu0 %3389
      %3391 = vrot.lane.b32.xlu0 %v2616, 48
      %v3392 = vpop.permute.xlu0 %3391
      %3393 = vrot.lane.b32.xlu0 %v2617, 48
      %v3394 = vpop.permute.xlu0 %3393
      %3395 = vrot.lane.b32.xlu0 %v2618, 48
      %v3396 = vpop.permute.xlu0 %3395
      %3397 = vrot.lane.b32.xlu0 %v2619, 48
      %v3398 = vpop.permute.xlu0 %3397
      %3399 = vrot.lane.b32.xlu0 %v2620, 48
      %v3400 = vpop.permute.xlu0 %3399
      %3401 = vrot.lane.b32.xlu0 %v2621, 48
      %v3402 = vpop.permute.xlu0 %3401
      %3403 = vrot.lane.b32.xlu0 %v2622, 48
      %v3404 = vpop.permute.xlu0 %3403
      %3405 = vrot.lane.b32.xlu0 %v2623, 48
      %v3406 = vpop.permute.xlu0 %3405
      %3407 = vrot.lane.b32.xlu0 %v2624, 48
      %v3408 = vpop.permute.xlu0 %3407
      %3409 = vrot.lane.b32.xlu0 %v2625, 48
      %v3410 = vpop.permute.xlu0 %3409
      %3411 = vrot.lane.b32.xlu0 %v2626, 48
      %v3412 = vpop.permute.xlu0 %3411
      %3413 = vrot.lane.b32.xlu0 %v2627, 48
      %v3414 = vpop.permute.xlu0 %3413
      %3415 = vrot.lane.b32.xlu0 %v2628, 48
      %v3416 = vpop.permute.xlu0 %3415
      %3417 = vrot.lane.b32.xlu0 %v2629, 48
      %v3418 = vpop.permute.xlu0 %3417
      %3419 = vrot.lane.b32.xlu0 %v2630, 48
      %v3420 = vpop.permute.xlu0 %3419
      %3421 = vrot.lane.b32.xlu0 %v2631, 48
      %v3422 = vpop.permute.xlu0 %3421
      %3423 = vrot.lane.b32.xlu0 %v2632, 48
      %v3424 = vpop.permute.xlu0 %3423
      %3425 = vrot.lane.b32.xlu0 %v2633, 48
      %v3426 = vpop.permute.xlu0 %3425
      %3427 = vrot.lane.b32.xlu0 %v2634, 48
      %v3428 = vpop.permute.xlu0 %3427
      %3429 = vrot.lane.b32.xlu0 %v2635, 48
      %v3430 = vpop.permute.xlu0 %3429
      %3431 = vrot.lane.b32.xlu0 %v2636, 48
      %v3432 = vpop.permute.xlu0 %3431
      %3433 = vrot.lane.b32.xlu0 %v2637, 48
      %v3434 = vpop.permute.xlu0 %3433
      %3435 = vrot.lane.b32.xlu0 %v2638, 48
      %v3436 = vpop.permute.xlu0 %3435
      %3437 = vrot.lane.b32.xlu0 %v2639, 48
      %v3438 = vpop.permute.xlu0 %3437
      %3439 = vrot.lane.b32.xlu0 %v2640, 48
      %v3440 = vpop.permute.xlu0 %3439
      %3505 = vrot.lane.b32.xlu0 %v2641, 56
      %v3506 = vpop.permute.xlu0 %3505
      %3507 = vrot.lane.b32.xlu0 %v2642, 56
      %v3508 = vpop.permute.xlu0 %3507
      %3509 = vrot.lane.b32.xlu0 %v2643, 56
      %v3510 = vpop.permute.xlu0 %3509
      %3511 = vrot.lane.b32.xlu0 %v2644, 56
      %v3512 = vpop.permute.xlu0 %3511
      %3513 = vrot.lane.b32.xlu0 %v2645, 56
      %v3514 = vpop.permute.xlu0 %3513
      %3515 = vrot.lane.b32.xlu0 %v2646, 56
      %v3516 = vpop.permute.xlu0 %3515
      %3517 = vrot.lane.b32.xlu0 %v2647, 56
      %v3518 = vpop.permute.xlu0 %3517
      %3519 = vrot.lane.b32.xlu0 %v2648, 56
      %v3520 = vpop.permute.xlu0 %3519
      %3521 = vrot.lane.b32.xlu0 %v2649, 56
      %v3522 = vpop.permute.xlu0 %3521
      %3523 = vrot.lane.b32.xlu0 %v2650, 56
      %v3524 = vpop.permute.xlu0 %3523
      %3525 = vrot.lane.b32.xlu0 %v2651, 56
      %v3526 = vpop.permute.xlu0 %3525
      %3527 = vrot.lane.b32.xlu0 %v2652, 56
      %v3528 = vpop.permute.xlu0 %3527
      %3529 = vrot.lane.b32.xlu0 %v2653, 56
      %v3530 = vpop.permute.xlu0 %3529
      %3531 = vrot.lane.b32.xlu0 %v2654, 56
      %v3532 = vpop.permute.xlu0 %3531
      %3533 = vrot.lane.b32.xlu0 %v2655, 56
      %v3534 = vpop.permute.xlu0 %3533
      %3535 = vrot.lane.b32.xlu0 %v2656, 56
      %v3536 = vpop.permute.xlu0 %3535
      %3537 = vrot.lane.b32.xlu0 %v2657, 56
      %v3538 = vpop.permute.xlu0 %3537
      %3539 = vrot.lane.b32.xlu0 %v2658, 56
      %v3540 = vpop.permute.xlu0 %3539
      %3541 = vrot.lane.b32.xlu0 %v2659, 56
      %v3542 = vpop.permute.xlu0 %3541
      %3543 = vrot.lane.b32.xlu0 %v2660, 56
      %v3544 = vpop.permute.xlu0 %3543
      %3545 = vrot.lane.b32.xlu0 %v2661, 56
      %v3546 = vpop.permute.xlu0 %3545
      %3547 = vrot.lane.b32.xlu0 %v2662, 56
      %v3548 = vpop.permute.xlu0 %3547
      %3549 = vrot.lane.b32.xlu0 %v2663, 56
      %v3550 = vpop.permute.xlu0 %3549
      %3551 = vrot.lane.b32.xlu0 %v2664, 56
      %v3552 = vpop.permute.xlu0 %3551
      %3553 = vrot.lane.b32.xlu0 %v2665, 56
      %v3554 = vpop.permute.xlu0 %3553
      %3555 = vrot.lane.b32.xlu0 %v2666, 56
      %v3556 = vpop.permute.xlu0 %3555
      %3557 = vrot.lane.b32.xlu0 %v2667, 56
      %v3558 = vpop.permute.xlu0 %3557
      %3559 = vrot.lane.b32.xlu0 %v2668, 56
      %v3560 = vpop.permute.xlu0 %3559
      %3561 = vrot.lane.b32.xlu0 %v2669, 56
      %v3562 = vpop.permute.xlu0 %3561
      %3563 = vrot.lane.b32.xlu0 %v2670, 56
      %v3564 = vpop.permute.xlu0 %3563
      %3565 = vrot.lane.b32.xlu0 %v2671, 56
      %v3566 = vpop.permute.xlu0 %3565
      %3567 = vrot.lane.b32.xlu0 %v2672, 56
      %v3568 = vpop.permute.xlu0 %3567
      %3633 = vrot.lane.b32.xlu0 %v2673, 64
      %v3634 = vpop.permute.xlu0 %3633
      %3635 = vrot.lane.b32.xlu0 %v2674, 64
      %v3636 = vpop.permute.xlu0 %3635
      %3637 = vrot.lane.b32.xlu0 %v2675, 64
      %v3638 = vpop.permute.xlu0 %3637
      %3639 = vrot.lane.b32.xlu0 %v2676, 64
      %v3640 = vpop.permute.xlu0 %3639
      %3641 = vrot.lane.b32.xlu0 %v2677, 64
      %v3642 = vpop.permute.xlu0 %3641
      %3643 = vrot.lane.b32.xlu0 %v2678, 64
      %v3644 = vpop.permute.xlu0 %3643
      %3645 = vrot.lane.b32.xlu0 %v2679, 64
      %v3646 = vpop.permute.xlu0 %3645
      %3647 = vrot.lane.b32.xlu0 %v2680, 64
      %v3648 = vpop.permute.xlu0 %3647
      %3649 = vrot.lane.b32.xlu0 %v2681, 64
      %v3650 = vpop.permute.xlu0 %3649
      %3651 = vrot.lane.b32.xlu0 %v2682, 64
      %v3652 = vpop.permute.xlu0 %3651
      %3653 = vrot.lane.b32.xlu0 %v2683, 64
      %v3654 = vpop.permute.xlu0 %3653
      %3655 = vrot.lane.b32.xlu0 %v2684, 64
      %v3656 = vpop.permute.xlu0 %3655
      %3657 = vrot.lane.b32.xlu0 %v2685, 64
      %v3658 = vpop.permute.xlu0 %3657
      %3659 = vrot.lane.b32.xlu0 %v2686, 64
      %v3660 = vpop.permute.xlu0 %3659
      %3661 = vrot.lane.b32.xlu0 %v2687, 64
      %v3662 = vpop.permute.xlu0 %3661
      %3663 = vrot.lane.b32.xlu0 %v2688, 64
      %v3664 = vpop.permute.xlu0 %3663
      %3665 = vrot.lane.b32.xlu0 %v2689, 64
      %v3666 = vpop.permute.xlu0 %3665
      %3667 = vrot.lane.b32.xlu0 %v2690, 64
      %v3668 = vpop.permute.xlu0 %3667
      %3669 = vrot.lane.b32.xlu0 %v2691, 64
      %v3670 = vpop.permute.xlu0 %3669
      %3671 = vrot.lane.b32.xlu0 %v2692, 64
      %v3672 = vpop.permute.xlu0 %3671
      %3673 = vrot.lane.b32.xlu0 %v2693, 64
      %v3674 = vpop.permute.xlu0 %3673
      %3675 = vrot.lane.b32.xlu0 %v2694, 64
      %v3676 = vpop.permute.xlu0 %3675
      %3677 = vrot.lane.b32.xlu0 %v2695, 64
      %v3678 = vpop.permute.xlu0 %3677
      %3679 = vrot.lane.b32.xlu0 %v2696, 64
      %v3680 = vpop.permute.xlu0 %3679
      %3681 = vrot.lane.b32.xlu0 %v2697, 64
      %v3682 = vpop.permute.xlu0 %3681
      %3683 = vrot.lane.b32.xlu0 %v2698, 64
      %v3684 = vpop.permute.xlu0 %3683
      %3685 = vrot.lane.b32.xlu0 %v2699, 64
      %v3686 = vpop.permute.xlu0 %3685
      %3687 = vrot.lane.b32.xlu0 %v2700, 64
      %v3688 = vpop.permute.xlu0 %3687
      %3689 = vrot.lane.b32.xlu0 %v2701, 64
      %v3690 = vpop.permute.xlu0 %3689
      %3691 = vrot.lane.b32.xlu0 %v2702, 64
      %v3692 = vpop.permute.xlu0 %3691
      %3693 = vrot.lane.b32.xlu0 %v2703, 64
      %v3694 = vpop.permute.xlu0 %3693
      %3695 = vrot.lane.b32.xlu0 %v2704, 64
      %v3696 = vpop.permute.xlu0 %3695
      %v3729 = vsel %vm280, %v2417, %v2738
      %v3730 = vsel %vm280, %v2418, %v2740
      %v3731 = vsel %vm280, %v2419, %v2742
      %v3732 = vsel %vm280, %v2420, %v2744
      %v3733 = vsel %vm280, %v2421, %v2746
      %v3734 = vsel %vm280, %v2422, %v2748
      %v3735 = vsel %vm280, %v2423, %v2750
      %v3736 = vsel %vm280, %v2424, %v2752
      %v3737 = vsel %vm280, %v2425, %v2754
      %v3738 = vsel %vm280, %v2426, %v2756
      %v3739 = vsel %vm280, %v2427, %v2758
      %v3740 = vsel %vm280, %v2428, %v2760
      %v3741 = vsel %vm280, %v2429, %v2762
      %v3742 = vsel %vm280, %v2430, %v2764
      %v3743 = vsel %vm280, %v2431, %v2766
      %v3744 = vsel %vm280, %v2432, %v2768
      %v3745 = vsel %vm280, %v2433, %v2770
      %v3746 = vsel %vm280, %v2434, %v2772
      %v3747 = vsel %vm280, %v2435, %v2774
      %v3748 = vsel %vm280, %v2436, %v2776
      %v3749 = vsel %vm280, %v2437, %v2778
      %v3750 = vsel %vm280, %v2438, %v2780
      %v3751 = vsel %vm280, %v2439, %v2782
      %v3752 = vsel %vm280, %v2440, %v2784
      %v3753 = vsel %vm280, %v2441, %v2786
      %v3754 = vsel %vm280, %v2442, %v2788
      %v3755 = vsel %vm280, %v2443, %v2790
      %v3756 = vsel %vm280, %v2444, %v2792
      %v3757 = vsel %vm280, %v2445, %v2794
      %v3758 = vsel %vm280, %v2446, %v2796
      %v3759 = vsel %vm280, %v2447, %v2798
      %v3760 = vsel %vm280, %v2448, %v2800
      %v3761 = vsel %vm1778, %v3729, %v2866
      %v3762 = vsel %vm1778, %v3730, %v2868
      %v3763 = vsel %vm1778, %v3731, %v2870
      %v3764 = vsel %vm1778, %v3732, %v2872
      %v3765 = vsel %vm1778, %v3733, %v2874
      %v3766 = vsel %vm1778, %v3734, %v2876
      %v3767 = vsel %vm1778, %v3735, %v2878
      %v3768 = vsel %vm1778, %v3736, %v2880
      %v3769 = vsel %vm1778, %v3737, %v2882
      %v3770 = vsel %vm1778, %v3738, %v2884
      %v3771 = vsel %vm1778, %v3739, %v2886
      %v3772 = vsel %vm1778, %v3740, %v2888
      %v3773 = vsel %vm1778, %v3741, %v2890
      %v3774 = vsel %vm1778, %v3742, %v2892
      %v3775 = vsel %vm1778, %v3743, %v2894
      %v3776 = vsel %vm1778, %v3744, %v2896
      %v3777 = vsel %vm1778, %v3745, %v2898
      %v3778 = vsel %vm1778, %v3746, %v2900
      %v3779 = vsel %vm1778, %v3747, %v2902
      %v3780 = vsel %vm1778, %v3748, %v2904
      %v3781 = vsel %vm1778, %v3749, %v2906
      %v3782 = vsel %vm1778, %v3750, %v2908
      %v3783 = vsel %vm1778, %v3751, %v2910
      %v3784 = vsel %vm1778, %v3752, %v2912
      %v3785 = vsel %vm1778, %v3753, %v2914
      %v3786 = vsel %vm1778, %v3754, %v2916
      %v3787 = vsel %vm1778, %v3755, %v2918
      %v3788 = vsel %vm1778, %v3756, %v2920
      %v3789 = vsel %vm1778, %v3757, %v2922
      %v3790 = vsel %vm1778, %v3758, %v2924
      %v3791 = vsel %vm1778, %v3759, %v2926
      %v3792 = vsel %vm1778, %v3760, %v2928
      %v3793 = vsel %vm1811, %v3761, %v2994
      %v3794 = vsel %vm1811, %v3762, %v2996
      %v3795 = vsel %vm1811, %v3763, %v2998
      %v3796 = vsel %vm1811, %v3764, %v3000
      %v3797 = vsel %vm1811, %v3765, %v3002
      %v3798 = vsel %vm1811, %v3766, %v3004
      %v3799 = vsel %vm1811, %v3767, %v3006
      %v3800 = vsel %vm1811, %v3768, %v3008
      %v3801 = vsel %vm1811, %v3769, %v3010
      %v3802 = vsel %vm1811, %v3770, %v3012
      %v3803 = vsel %vm1811, %v3771, %v3014
      %v3804 = vsel %vm1811, %v3772, %v3016
      %v3805 = vsel %vm1811, %v3773, %v3018
      %v3806 = vsel %vm1811, %v3774, %v3020
      %v3807 = vsel %vm1811, %v3775, %v3022
      %v3808 = vsel %vm1811, %v3776, %v3024
      %v3809 = vsel %vm1811, %v3777, %v3026
      %v3810 = vsel %vm1811, %v3778, %v3028
      %v3811 = vsel %vm1811, %v3779, %v3030
      %v3812 = vsel %vm1811, %v3780, %v3032
      %v3813 = vsel %vm1811, %v3781, %v3034
      %v3814 = vsel %vm1811, %v3782, %v3036
      %v3815 = vsel %vm1811, %v3783, %v3038
      %v3816 = vsel %vm1811, %v3784, %v3040
      %v3817 = vsel %vm1811, %v3785, %v3042
      %v3818 = vsel %vm1811, %v3786, %v3044
      %v3819 = vsel %vm1811, %v3787, %v3046
      %v3820 = vsel %vm1811, %v3788, %v3048
      %v3821 = vsel %vm1811, %v3789, %v3050
      %v3822 = vsel %vm1811, %v3790, %v3052
      %v3823 = vsel %vm1811, %v3791, %v3054
      %v3824 = vsel %vm1811, %v3792, %v3056
      %v3825 = vsel %vm1844, %v3793, %v3122
      %v3826 = vsel %vm1844, %v3794, %v3124
      %v3827 = vsel %vm1844, %v3795, %v3126
      %v3828 = vsel %vm1844, %v3796, %v3128
      %v3829 = vsel %vm1844, %v3797, %v3130
      %v3830 = vsel %vm1844, %v3798, %v3132
      %v3831 = vsel %vm1844, %v3799, %v3134
      %v3832 = vsel %vm1844, %v3800, %v3136
      %v3833 = vsel %vm1844, %v3801, %v3138
      %v3834 = vsel %vm1844, %v3802, %v3140
      %v3835 = vsel %vm1844, %v3803, %v3142
      %v3836 = vsel %vm1844, %v3804, %v3144
      %v3837 = vsel %vm1844, %v3805, %v3146
      %v3838 = vsel %vm1844, %v3806, %v3148
      %v3839 = vsel %vm1844, %v3807, %v3150
      %v3840 = vsel %vm1844, %v3808, %v3152
      %v3841 = vsel %vm1844, %v3809, %v3154
      %v3842 = vsel %vm1844, %v3810, %v3156
      %v3843 = vsel %vm1844, %v3811, %v3158
      %v3844 = vsel %vm1844, %v3812, %v3160
      %v3845 = vsel %vm1844, %v3813, %v3162
      %v3846 = vsel %vm1844, %v3814, %v3164
      %v3847 = vsel %vm1844, %v3815, %v3166
      %v3848 = vsel %vm1844, %v3816, %v3168
      %v3849 = vsel %vm1844, %v3817, %v3170
      %v3850 = vsel %vm1844, %v3818, %v3172
      %v3851 = vsel %vm1844, %v3819, %v3174
      %v3852 = vsel %vm1844, %v3820, %v3176
      %v3853 = vsel %vm1844, %v3821, %v3178
      %v3854 = vsel %vm1844, %v3822, %v3180
      %v3855 = vsel %vm1844, %v3823, %v3182
      %v3856 = vsel %vm1844, %v3824, %v3184
      %v3857 = vsel %vm1877, %v3825, %v3250
      %v3858 = vsel %vm1877, %v3826, %v3252
      %v3859 = vsel %vm1877, %v3827, %v3254
      %v3860 = vsel %vm1877, %v3828, %v3256
      %v3861 = vsel %vm1877, %v3829, %v3258
      %v3862 = vsel %vm1877, %v3830, %v3260
      %v3863 = vsel %vm1877, %v3831, %v3262
      %v3864 = vsel %vm1877, %v3832, %v3264
      %v3865 = vsel %vm1877, %v3833, %v3266
      %v3866 = vsel %vm1877, %v3834, %v3268
      %v3867 = vsel %vm1877, %v3835, %v3270
      %v3868 = vsel %vm1877, %v3836, %v3272
      %v3869 = vsel %vm1877, %v3837, %v3274
      %v3870 = vsel %vm1877, %v3838, %v3276
      %v3871 = vsel %vm1877, %v3839, %v3278
      %v3872 = vsel %vm1877, %v3840, %v3280
      %v3873 = vsel %vm1877, %v3841, %v3282
      %v3874 = vsel %vm1877, %v3842, %v3284
      %v3875 = vsel %vm1877, %v3843, %v3286
      %v3876 = vsel %vm1877, %v3844, %v3288
      %v3877 = vsel %vm1877, %v3845, %v3290
      %v3878 = vsel %vm1877, %v3846, %v3292
      %v3879 = vsel %vm1877, %v3847, %v3294
      %v3880 = vsel %vm1877, %v3848, %v3296
      %v3881 = vsel %vm1877, %v3849, %v3298
      %v3882 = vsel %vm1877, %v3850, %v3300
      %v3883 = vsel %vm1877, %v3851, %v3302
      %v3884 = vsel %vm1877, %v3852, %v3304
      %v3885 = vsel %vm1877, %v3853, %v3306
      %v3886 = vsel %vm1877, %v3854, %v3308
      %v3887 = vsel %vm1877, %v3855, %v3310
      %v3888 = vsel %vm1877, %v3856, %v3312
      %v3889 = vsel %vm1910, %v3857, %v3378
      %v3890 = vsel %vm1910, %v3858, %v3380
      %v3891 = vsel %vm1910, %v3859, %v3382
      %v3892 = vsel %vm1910, %v3860, %v3384
      %v3893 = vsel %vm1910, %v3861, %v3386
      %v3894 = vsel %vm1910, %v3862, %v3388
      %v3895 = vsel %vm1910, %v3863, %v3390
      %v3896 = vsel %vm1910, %v3864, %v3392
      %v3897 = vsel %vm1910, %v3865, %v3394
      %v3898 = vsel %vm1910, %v3866, %v3396
      %v3899 = vsel %vm1910, %v3867, %v3398
      %v3900 = vsel %vm1910, %v3868, %v3400
      %v3901 = vsel %vm1910, %v3869, %v3402
      %v3902 = vsel %vm1910, %v3870, %v3404
      %v3903 = vsel %vm1910, %v3871, %v3406
      %v3904 = vsel %vm1910, %v3872, %v3408
      %v3905 = vsel %vm1910, %v3873, %v3410
      %v3906 = vsel %vm1910, %v3874, %v3412
      %v3907 = vsel %vm1910, %v3875, %v3414
      %v3908 = vsel %vm1910, %v3876, %v3416
      %v3909 = vsel %vm1910, %v3877, %v3418
      %v3910 = vsel %vm1910, %v3878, %v3420
      %v3911 = vsel %vm1910, %v3879, %v3422
      %v3912 = vsel %vm1910, %v3880, %v3424
      %v3913 = vsel %vm1910, %v3881, %v3426
      %v3914 = vsel %vm1910, %v3882, %v3428
      %v3915 = vsel %vm1910, %v3883, %v3430
      %v3916 = vsel %vm1910, %v3884, %v3432
      %v3917 = vsel %vm1910, %v3885, %v3434
      %v3918 = vsel %vm1910, %v3886, %v3436
      %v3919 = vsel %vm1910, %v3887, %v3438
      %v3920 = vsel %vm1910, %v3888, %v3440
      %v3921 = vsel %vm1943, %v3889, %v3506
      %v3922 = vsel %vm1943, %v3890, %v3508
      %v3923 = vsel %vm1943, %v3891, %v3510
      %v3924 = vsel %vm1943, %v3892, %v3512
      %v3925 = vsel %vm1943, %v3893, %v3514
      %v3926 = vsel %vm1943, %v3894, %v3516
      %v3927 = vsel %vm1943, %v3895, %v3518
      %v3928 = vsel %vm1943, %v3896, %v3520
      %v3929 = vsel %vm1943, %v3897, %v3522
      %v3930 = vsel %vm1943, %v3898, %v3524
      %v3931 = vsel %vm1943, %v3899, %v3526
      %v3932 = vsel %vm1943, %v3900, %v3528
      %v3933 = vsel %vm1943, %v3901, %v3530
      %v3934 = vsel %vm1943, %v3902, %v3532
      %v3935 = vsel %vm1943, %v3903, %v3534
      %v3936 = vsel %vm1943, %v3904, %v3536
      %v3937 = vsel %vm1943, %v3905, %v3538
      %v3938 = vsel %vm1943, %v3906, %v3540
      %v3939 = vsel %vm1943, %v3907, %v3542
      %v3940 = vsel %vm1943, %v3908, %v3544
      %v3941 = vsel %vm1943, %v3909, %v3546
      %v3942 = vsel %vm1943, %v3910, %v3548
      %v3943 = vsel %vm1943, %v3911, %v3550
      %v3944 = vsel %vm1943, %v3912, %v3552
      %v3945 = vsel %vm1943, %v3913, %v3554
      %v3946 = vsel %vm1943, %v3914, %v3556
      %v3947 = vsel %vm1943, %v3915, %v3558
      %v3948 = vsel %vm1943, %v3916, %v3560
      %v3949 = vsel %vm1943, %v3917, %v3562
      %v3950 = vsel %vm1943, %v3918, %v3564
      %v3951 = vsel %vm1943, %v3919, %v3566
      %v3952 = vsel %vm1943, %v3920, %v3568
      %v3953 = vsel %vm1976, %v3921, %v3634
      %v3954 = vsel %vm1976, %v3922, %v3636
      %v3955 = vsel %vm1976, %v3923, %v3638
      %v3956 = vsel %vm1976, %v3924, %v3640
      %v3957 = vsel %vm1976, %v3925, %v3642
      %v3958 = vsel %vm1976, %v3926, %v3644
      %v3959 = vsel %vm1976, %v3927, %v3646
      %v3960 = vsel %vm1976, %v3928, %v3648
      %v3961 = vsel %vm1976, %v3929, %v3650
      %v3962 = vsel %vm1976, %v3930, %v3652
      %v3963 = vsel %vm1976, %v3931, %v3654
      %v3964 = vsel %vm1976, %v3932, %v3656
      %v3965 = vsel %vm1976, %v3933, %v3658
      %v3966 = vsel %vm1976, %v3934, %v3660
      %v3967 = vsel %vm1976, %v3935, %v3662
      %v3968 = vsel %vm1976, %v3936, %v3664
      %v3969 = vsel %vm1976, %v3937, %v3666
      %v3970 = vsel %vm1976, %v3938, %v3668
      %v3971 = vsel %vm1976, %v3939, %v3670
      %v3972 = vsel %vm1976, %v3940, %v3672
      %v3973 = vsel %vm1976, %v3941, %v3674
      %v3974 = vsel %vm1976, %v3942, %v3676
      %v3975 = vsel %vm1976, %v3943, %v3678
      %v3976 = vsel %vm1976, %v3944, %v3680
      %v3977 = vsel %vm1976, %v3945, %v3682
      %v3978 = vsel %vm1976, %v3946, %v3684
      %v3979 = vsel %vm1976, %v3947, %v3686
      %v3980 = vsel %vm1976, %v3948, %v3688
      %v3981 = vsel %vm1976, %v3949, %v3690
      %v3982 = vsel %vm1976, %v3950, %v3692
      %v3983 = vsel %vm1976, %v3951, %v3694
      %v3984 = vsel %vm1976, %v3952, %v3696
      %v3985 = vpack.c.bf16 %v3954, %v3953
      %v3986 = vpack.c.bf16 %v3956, %v3955
      %v3987 = vpack.c.bf16 %v3958, %v3957
      %v3988 = vpack.c.bf16 %v3960, %v3959
      %v3989 = vpack.c.bf16 %v3962, %v3961
      %v3990 = vpack.c.bf16 %v3964, %v3963
      %v3991 = vpack.c.bf16 %v3966, %v3965
      %v3992 = vpack.c.bf16 %v3968, %v3967
      %v3993 = vpack.c.bf16 %v3970, %v3969
      %v3994 = vpack.c.bf16 %v3972, %v3971
      %v3995 = vpack.c.bf16 %v3974, %v3973
      %v3996 = vpack.c.bf16 %v3976, %v3975
      %v3997 = vpack.c.bf16 %v3978, %v3977
      %v3998 = vpack.c.bf16 %v3980, %v3979
      %v3999 = vpack.c.bf16 %v3982, %v3981
      %v4000 = vpack.c.bf16 %v3984, %v3983
      %v4001 = vld [vmem:[%s2] sm:$0xf]
      %v4002 = vld [vmem:[%s2 + $0x4] sm:$0xf]
      %v4003 = vld [vmem:[%s2 + $0x8] sm:$0xf]
      %v4004 = vld [vmem:[%s2 + $0xc] sm:$0xf]
      %v4005 = vld [vmem:[%s2 + $0x10] sm:$0xf]
      %v4006 = vld [vmem:[%s2 + $0x14] sm:$0xf]
      %v4007 = vld [vmem:[%s2 + $0x18] sm:$0xf]
      %v4008 = vld [vmem:[%s2 + $0x1c] sm:$0xf]
      %v4009 = vld [vmem:[%s2 + $0x20] sm:$0xf]
      %v4019 = vunpack.c.l.b16 %v4001
      %v4020 = vunpack.c.l.b16 %v4002
      %v4021 = vunpack.c.l.b16 %v4003
      %v4022 = vunpack.c.l.b16 %v4004
      %v4023 = vunpack.c.l.b16 %v4005
      %v4024 = vunpack.c.l.b16 %v4006
      %v4025 = vunpack.c.l.b16 %v4007
      %v4026 = vunpack.c.l.b16 %v4008
      %v4027 = vunpack.c.l.b16 %v4009
      %v4028 = vpack.c.b16 %v4020, %v4019
      %v4029 = vpack.c.b16 %v4022, %v4021
      %v4030 = vpack.c.b16 %v4024, %v4023
      %v4031 = vpack.c.b16 %v4026, %v4025
      %v4032 = vpack.c.b16 %v4027, %v4027
      %v4038 = vsel %vm2061, %v3985, 0
      %v4041 = vsel %vm2061, %v3986, 0
      %v4044 = vsel %vm2061, %v3987, 0
      %v4047 = vsel %vm2061, %v3988, 0
      %v4050 = vsel %vm2061, %v3989, 0
      %v4053 = vsel %vm2061, %v3990, 0
      %v4056 = vsel %vm2061, %v3991, 0
      %v4059 = vsel %vm2061, %v3992, 0
      %v4062 = vsel %vm2061, %v3993, 0
      %v4065 = vsel %vm2061, %v3994, 0
      %v4068 = vsel %vm2061, %v3995, 0
      %v4071 = vsel %vm2061, %v3996, 0
      %v4074 = vsel %vm2061, %v3997, 0
      %v4077 = vsel %vm2061, %v3998, 0
      %v4080 = vsel %vm2061, %v3999, 0
      %v4083 = vsel %vm2061, %v4000, 0
      %v4086 = vsel %vm2110, %v4032, 0
      %4088 = vmatprep.subr.bf16.mxu0 0
      %4089 = vmatpush1.bf16.msra.mxu0 %v4028
      %4090 = vmatprep.subr.bf16.mxu0 0
      %4091 = vmatpush1.bf16.msra.mxu0 %v4029
      %4092 = vmatprep.subr.bf16.mxu0 0
      %4093 = vmatpush1.bf16.msra.mxu0 %v4030
      %4094 = vmatprep.subr.bf16.mxu0 0
      %4095 = vmatpush1.bf16.msra.mxu0 %v4031
      %4096 = vmatprep.subr.bf16.mxu0 0
      %4097 = vmatpush1.bf16.msra.mxu0 %v4086
      %4098 = vmatprep.subr.bf16.mxu0 0
      %4099 = vmatpush1.bf16.msra.mxu0 0
      %4100 = vmatprep.subr.bf16.mxu0 0
      %4101 = vmatpush1.bf16.msra.mxu0 0
      %4102 = vmatprep.subr.bf16.mxu0 0
      %4103 = vmatpush1.bf16.msra.mxu0 0
      %4104 = vmatprep.subr.bf16.mxu0 0
      %4105 = vmatpush1.bf16.msra.mxu0 0
      %4106 = vmatprep.subr.bf16.mxu0 0
      %4107 = vmatpush1.bf16.msra.mxu0 0
      %4108 = vmatprep.subr.bf16.mxu0 0
      %4109 = vmatpush1.bf16.msra.mxu0 0
      %4110 = vmatprep.subr.bf16.mxu0 0
      %4111 = vmatpush1.bf16.msra.mxu0 0
      %4112 = vmatprep.subr.bf16.mxu0 0
      %4113 = vmatpush1.bf16.msra.mxu0 0
      %4114 = vmatprep.subr.bf16.mxu0 0
      %4115 = vmatpush1.bf16.msra.mxu0 0
      %4116 = vmatprep.subr.bf16.mxu0 0
      %4117 = vmatpush1.bf16.msra.mxu0 0
      %4118 = vmatprep.subr.bf16.mxu0 0
      %4119 = vmatpush1.bf16.msra.mxu0 0
      %4120 = vmatprep.mubr.bf16.mxu0 0
      %4121 = vmatmul.mubr.bf16.gmra.mrb[0].mxu0 %v4038
      %v4122 = vpop.f32.mrb[0].mxu0
      %v4123 = vadd.f32 0.0, %v4122
      %v4124 = vpop.f32.mrb[0].mxu0
      %v4125 = vpop.f32.mrb[0].mxu0
      %v4126 = vadd.f32 0.0, %v4125
      %v4127 = vpop.f32.mrb[0].mxu0
      %4128 = vmatprep.mubr.bf16.mxu0 0
      %4129 = vmatmul.mubr.bf16.gmra.mrb[0].mxu0 %v4041
      %v4130 = vpop.f32.mrb[0].mxu0
      %v4131 = vadd.f32 0.0, %v4130
      %v4132 = vpop.f32.mrb[0].mxu0
      %v4133 = vpop.f32.mrb[0].mxu0
      %v4134 = vadd.f32 0.0, %v4133
      %v4135 = vpop.f32.mrb[0].mxu0
      %4136 = vmatprep.mubr.bf16.mxu0 0
      %4137 = vmatmul.mubr.bf16.gmra.mrb[0].mxu0 %v4044
      %v4138 = vpop.f32.mrb[0].mxu0
      %v4139 = vadd.f32 0.0, %v4138
      %v4140 = vpop.f32.mrb[0].mxu0
      %v4141 = vpop.f32.mrb[0].mxu0
      %v4142 = vadd.f32 0.0, %v4141
      %v4143 = vpop.f32.mrb[0].mxu0
      %4144 = vmatprep.mubr.bf16.mxu0 0
      %4145 = vmatmul.mubr.bf16.gmra.mrb[0].mxu0 %v4047
      %v4146 = vpop.f32.mrb[0].mxu0
      %v4147 = vadd.f32 0.0, %v4146
      %v4148 = vpop.f32.mrb[0].mxu0
      %v4149 = vpop.f32.mrb[0].mxu0
      %v4150 = vadd.f32 0.0, %v4149
      %v4151 = vpop.f32.mrb[0].mxu0
      %4152 = vmatprep.mubr.bf16.mxu0 0
      %4153 = vmatmul.mubr.bf16.gmra.mrb[0].mxu0 %v4050
      %v4154 = vpop.f32.mrb[0].mxu0
      %v4155 = vadd.f32 0.0, %v4154
      %v4156 = vpop.f32.mrb[0].mxu0
      %v4157 = vpop.f32.mrb[0].mxu0
      %v4158 = vadd.f32 0.0, %v4157
      %v4159 = vpop.f32.mrb[0].mxu0
      %4160 = vmatprep.mubr.bf16.mxu0 0
      %4161 = vmatmul.mubr.bf16.gmra.mrb[0].mxu0 %v4053
      %v4162 = vpop.f32.mrb[0].mxu0
      %v4163 = vadd.f32 0.0, %v4162
      %v4164 = vpop.f32.mrb[0].mxu0
      %v4165 = vpop.f32.mrb[0].mxu0
      %v4166 = vadd.f32 0.0, %v4165
      %v4167 = vpop.f32.mrb[0].mxu0
      %4168 = vmatprep.mubr.bf16.mxu0 0
      %4169 = vmatmul.mubr.bf16.gmra.mrb[0].mxu0 %v4056
      %v4170 = vpop.f32.mrb[0].mxu0
      %v4171 = vadd.f32 0.0, %v4170
      %v4172 = vpop.f32.mrb[0].mxu0
      %v4173 = vpop.f32.mrb[0].mxu0
      %v4174 = vadd.f32 0.0, %v4173
      %v4175 = vpop.f32.mrb[0].mxu0
      %4176 = vmatprep.mubr.bf16.mxu0 0
      %4177 = vmatmul.mubr.bf16.gmra.mrb[0].mxu0 %v4059
      %v4178 = vpop.f32.mrb[0].mxu0
      %v4179 = vadd.f32 0.0, %v4178
      %v4180 = vpop.f32.mrb[0].mxu0
      %v4181 = vpop.f32.mrb[0].mxu0
      %v4182 = vadd.f32 0.0, %v4181
      %v4183 = vpop.f32.mrb[0].mxu0
      %4184 = vmatprep.mubr.bf16.mxu0 0
      %4185 = vmatmul.mubr.bf16.gmra.mrb[0].mxu0 %v4062
      %v4186 = vpop.f32.mrb[0].mxu0
      %v4187 = vadd.f32 0.0, %v4186
      %v4188 = vpop.f32.mrb[0].mxu0
      %v4189 = vpop.f32.mrb[0].mxu0
      %v4190 = vadd.f32 0.0, %v4189
      %v4191 = vpop.f32.mrb[0].mxu0
      %4192 = vmatprep.mubr.bf16.mxu0 0
      %4193 = vmatmul.mubr.bf16.gmra.mrb[0].mxu0 %v4065
      %v4194 = vpop.f32.mrb[0].mxu0
      %v4195 = vadd.f32 0.0, %v4194
      %v4196 = vpop.f32.mrb[0].mxu0
      %v4197 = vpop.f32.mrb[0].mxu0
      %v4198 = vadd.f32 0.0, %v4197
      %v4199 = vpop.f32.mrb[0].mxu0
      %4200 = vmatprep.mubr.bf16.mxu0 0
      %4201 = vmatmul.mubr.bf16.gmra.mrb[0].mxu0 %v4068
      %v4202 = vpop.f32.mrb[0].mxu0
      %v4203 = vadd.f32 0.0, %v4202
      %v4204 = vpop.f32.mrb[0].mxu0
      %v4205 = vpop.f32.mrb[0].mxu0
      %v4206 = vadd.f32 0.0, %v4205
      %v4207 = vpop.f32.mrb[0].mxu0
      %4208 = vmatprep.mubr.bf16.mxu0 0
      %4209 = vmatmul.mubr.bf16.gmra.mrb[0].mxu0 %v4071
      %v4210 = vpop.f32.mrb[0].mxu0
      %v4211 = vadd.f32 0.0, %v4210
      %v4212 = vpop.f32.mrb[0].mxu0
      %v4213 = vpop.f32.mrb[0].mxu0
      %v4214 = vadd.f32 0.0, %v4213
      %v4215 = vpop.f32.mrb[0].mxu0
      %4216 = vmatprep.mubr.bf16.mxu0 0
      %4217 = vmatmul.mubr.bf16.gmra.mrb[0].mxu0 %v4074
      %v4218 = vpop.f32.mrb[0].mxu0
      %v4219 = vadd.f32 0.0, %v4218
      %v4220 = vpop.f32.mrb[0].mxu0
      %v4221 = vpop.f32.mrb[0].mxu0
      %v4222 = vadd.f32 0.0, %v4221
      %v4223 = vpop.f32.mrb[0].mxu0
      %4224 = vmatprep.mubr.bf16.mxu0 0
      %4225 = vmatmul.mubr.bf16.gmra.mrb[0].mxu0 %v4077
      %v4226 = vpop.f32.mrb[0].mxu0
      %v4227 = vadd.f32 0.0, %v4226
      %v4228 = vpop.f32.mrb[0].mxu0
      %v4229 = vpop.f32.mrb[0].mxu0
      %v4230 = vadd.f32 0.0, %v4229
      %v4231 = vpop.f32.mrb[0].mxu0
      %4232 = vmatprep.mubr.bf16.mxu0 0
      %4233 = vmatmul.mubr.bf16.gmra.mrb[0].mxu0 %v4080
      %v4234 = vpop.f32.mrb[0].mxu0
      %v4235 = vadd.f32 0.0, %v4234
      %v4236 = vpop.f32.mrb[0].mxu0
      %v4237 = vpop.f32.mrb[0].mxu0
      %v4238 = vadd.f32 0.0, %v4237
      %v4239 = vpop.f32.mrb[0].mxu0
      %4240 = vmatprep.mubr.bf16.mxu0 0
      %4241 = vmatmul.mubr.bf16.gmra.mrb[0].mxu0 %v4083
      %v4242 = vpop.f32.mrb[0].mxu0
      %v4243 = vadd.f32 0.0, %v4242
      %v4244 = vpop.f32.mrb[0].mxu0
      %v4245 = vpop.f32.mrb[0].mxu0
      %v4246 = vadd.f32 0.0, %v4245
      %v4247 = vpop.f32.mrb[0].mxu0
      %4248 = vdwg.mxu0
      %v4249 = vld [vmem:[%s5] sm:$0x1]
      %v4251 = vlaneseq
      %v4252 = vshrl.u32 %v4251, 7
      %v4253 = vsub.s32 0, %v4252
      %v4254 = vrot.slane %v4249, %v4253
      %v4256 = vmul.f32 %v4123, %v4254
      %v4257 = vmul.f32 %v4126, %v4254
      %v4258 = vmul.f32 %v4131, %v4254
      %v4259 = vmul.f32 %v4134, %v4254
      %v4260 = vmul.f32 %v4139, %v4254
      %v4261 = vmul.f32 %v4142, %v4254
      %v4262 = vmul.f32 %v4147, %v4254
      %v4263 = vmul.f32 %v4150, %v4254
      %v4264 = vmul.f32 %v4155, %v4254
      %v4265 = vmul.f32 %v4158, %v4254
      %v4266 = vmul.f32 %v4163, %v4254
      %v4267 = vmul.f32 %v4166, %v4254
      %v4268 = vmul.f32 %v4171, %v4254
      %v4269 = vmul.f32 %v4174, %v4254
      %v4270 = vmul.f32 %v4179, %v4254
      %v4271 = vmul.f32 %v4182, %v4254
      %v4272 = vmul.f32 %v4187, %v4254
      %v4273 = vmul.f32 %v4190, %v4254
      %v4274 = vmul.f32 %v4195, %v4254
      %v4275 = vmul.f32 %v4198, %v4254
      %v4276 = vmul.f32 %v4203, %v4254
      %v4277 = vmul.f32 %v4206, %v4254
      %v4278 = vmul.f32 %v4211, %v4254
      %v4279 = vmul.f32 %v4214, %v4254
      %v4280 = vmul.f32 %v4219, %v4254
      %v4281 = vmul.f32 %v4222, %v4254
      %v4282 = vmul.f32 %v4227, %v4254
      %v4283 = vmul.f32 %v4230, %v4254
      %v4284 = vmul.f32 %v4235, %v4254
      %v4285 = vmul.f32 %v4238, %v4254
      %v4286 = vmul.f32 %v4243, %v4254
      %v4287 = vmul.f32 %v4246, %v4254
      %v4288 = vld [vmem:[%s6] sm:$0x1]
      %v4290 = vlaneseq
      %v4291 = vshrl.u32 %v4290, 7
      %v4292 = vsub.s32 0, %v4291
      %v4293 = vrot.slane %v4288, %v4292
      %v4295 = vadd.f32 %v4256, %v4293
      %v4296 = vadd.f32 %v4257, %v4293
      %v4297 = vadd.f32 %v4258, %v4293
      %v4298 = vadd.f32 %v4259, %v4293
      %v4299 = vadd.f32 %v4260, %v4293
      %v4300 = vadd.f32 %v4261, %v4293
      %v4301 = vadd.f32 %v4262, %v4293
      %v4302 = vadd.f32 %v4263, %v4293
      %v4303 = vadd.f32 %v4264, %v4293
      %v4304 = vadd.f32 %v4265, %v4293
      %v4305 = vadd.f32 %v4266, %v4293
      %v4306 = vadd.f32 %v4267, %v4293
      %v4307 = vadd.f32 %v4268, %v4293
      %v4308 = vadd.f32 %v4269, %v4293
      %v4309 = vadd.f32 %v4270, %v4293
      %v4310 = vadd.f32 %v4271, %v4293
      %v4311 = vadd.f32 %v4272, %v4293
      %v4312 = vadd.f32 %v4273, %v4293
      %v4313 = vadd.f32 %v4274, %v4293
      %v4314 = vadd.f32 %v4275, %v4293
      %v4315 = vadd.f32 %v4276, %v4293
      %v4316 = vadd.f32 %v4277, %v4293
      %v4317 = vadd.f32 %v4278, %v4293
      %v4318 = vadd.f32 %v4279, %v4293
      %v4319 = vadd.f32 %v4280, %v4293
      %v4320 = vadd.f32 %v4281, %v4293
      %v4321 = vadd.f32 %v4282, %v4293
      %v4322 = vadd.f32 %v4283, %v4293
      %v4323 = vadd.f32 %v4284, %v4293
      %v4324 = vadd.f32 %v4285, %v4293
      %v4325 = vadd.f32 %v4286, %v4293
      %v4326 = vadd.f32 %v4287, %v4293
      %v4327 = vadd.f32 %v4295, %v368
      %v4328 = vadd.f32 %v4296, %v369
      %v4329 = vadd.f32 %v4297, %v370
      %v4330 = vadd.f32 %v4298, %v371
      %v4331 = vadd.f32 %v4299, %v372
      %v4332 = vadd.f32 %v4300, %v373
      %v4333 = vadd.f32 %v4301, %v374
      %v4334 = vadd.f32 %v4302, %v375
      %v4335 = vadd.f32 %v4303, %v376
      %v4336 = vadd.f32 %v4304, %v377
      %v4337 = vadd.f32 %v4305, %v378
      %v4338 = vadd.f32 %v4306, %v379
      %v4339 = vadd.f32 %v4307, %v380
      %v4340 = vadd.f32 %v4308, %v381
      %v4341 = vadd.f32 %v4309, %v382
      %v4342 = vadd.f32 %v4310, %v383
      %v4343 = vadd.f32 %v4311, %v384
      %v4344 = vadd.f32 %v4312, %v385
      %v4345 = vadd.f32 %v4313, %v386
      %v4346 = vadd.f32 %v4314, %v387
      %v4347 = vadd.f32 %v4315, %v388
      %v4348 = vadd.f32 %v4316, %v389
      %v4349 = vadd.f32 %v4317, %v390
      %v4350 = vadd.f32 %v4318, %v391
      %v4351 = vadd.f32 %v4319, %v392
      %v4352 = vadd.f32 %v4320, %v393
      %v4353 = vadd.f32 %v4321, %v394
      %v4354 = vadd.f32 %v4322, %v395
      %v4355 = vadd.f32 %v4323, %v396
      %v4356 = vadd.f32 %v4324, %v397
      %v4357 = vadd.f32 %v4325, %v398
      %v4358 = vadd.f32 %v4326, %v399
      %v4359 = vmax.f32 %v4327, 0.0
      %v4360 = vmax.f32 %v4328, 0.0
      %v4361 = vmax.f32 %v4329, 0.0
      %v4362 = vmax.f32 %v4330, 0.0
      %v4363 = vmax.f32 %v4331, 0.0
      %v4364 = vmax.f32 %v4332, 0.0
      %v4365 = vmax.f32 %v4333, 0.0
      %v4366 = vmax.f32 %v4334, 0.0
      %v4367 = vmax.f32 %v4335, 0.0
      %v4368 = vmax.f32 %v4336, 0.0
      %v4369 = vmax.f32 %v4337, 0.0
      %v4370 = vmax.f32 %v4338, 0.0
      %v4371 = vmax.f32 %v4339, 0.0
      %v4372 = vmax.f32 %v4340, 0.0
      %v4373 = vmax.f32 %v4341, 0.0
      %v4374 = vmax.f32 %v4342, 0.0
      %v4375 = vmax.f32 %v4343, 0.0
      %v4376 = vmax.f32 %v4344, 0.0
      %v4377 = vmax.f32 %v4345, 0.0
      %v4378 = vmax.f32 %v4346, 0.0
      %v4379 = vmax.f32 %v4347, 0.0
      %v4380 = vmax.f32 %v4348, 0.0
      %v4381 = vmax.f32 %v4349, 0.0
      %v4382 = vmax.f32 %v4350, 0.0
      %v4383 = vmax.f32 %v4351, 0.0
      %v4384 = vmax.f32 %v4352, 0.0
      %v4385 = vmax.f32 %v4353, 0.0
      %v4386 = vmax.f32 %v4354, 0.0
      %v4387 = vmax.f32 %v4355, 0.0
      %v4388 = vmax.f32 %v4356, 0.0
      %v4389 = vmax.f32 %v4357, 0.0
      %v4390 = vmax.f32 %v4358, 0.0
      %v4391 = vcombine.low %v4359, %v4363
      %v4392 = vcombine.high %v4359, %v4363
      %v4394 = vunpack.c.l.s4 1983009808
      %v4395 = vunpack.c.0.s8 %v4394
      %v4396 = vlaneseq
      %v4397 = vshrl.u32 %v4396, 7
      %v4398 = vsub.s32 %v4395, %v4397
      %v4399 = vrot.slane %v4391, %v4398
      %v4401 = vunpack.c.l.s4 1983009808
      %v4402 = vunpack.c.0.s8 %v4401
      %v4403 = vlaneseq
      %v4404 = vshrl.u32 %v4403, 7
      %v4405 = vsub.s32 %v4402, %v4404
      %v4406 = vrot.slane %v4392, %v4405
      %v4407 = vcombine.low %v4361, %v4365
      %v4408 = vcombine.high %v4361, %v4365
      %v4410 = vunpack.c.l.s4 1983009808
      %v4411 = vunpack.c.0.s8 %v4410
      %v4412 = vlaneseq
      %v4413 = vshrl.u32 %v4412, 7
      %v4414 = vsub.s32 %v4411, %v4413
      %v4415 = vrot.slane %v4407, %v4414
      %v4417 = vunpack.c.l.s4 1983009808
      %v4418 = vunpack.c.0.s8 %v4417
      %v4419 = vlaneseq
      %v4420 = vshrl.u32 %v4419, 7
      %v4421 = vsub.s32 %v4418, %v4420
      %v4422 = vrot.slane %v4408, %v4421
      %v4423 = vcombine.low %v4367, %v4371
      %v4424 = vcombine.high %v4367, %v4371
      %v4426 = vunpack.c.l.s4 1983009808
      %v4427 = vunpack.c.0.s8 %v4426
      %v4428 = vlaneseq
      %v4429 = vshrl.u32 %v4428, 7
      %v4430 = vsub.s32 %v4427, %v4429
      %v4431 = vrot.slane %v4423, %v4430
      %v4433 = vunpack.c.l.s4 1983009808
      %v4434 = vunpack.c.0.s8 %v4433
      %v4435 = vlaneseq
      %v4436 = vshrl.u32 %v4435, 7
      %v4437 = vsub.s32 %v4434, %v4436
      %v4438 = vrot.slane %v4424, %v4437
      %v4439 = vcombine.low %v4369, %v4373
      %v4440 = vcombine.high %v4369, %v4373
      %v4442 = vunpack.c.l.s4 1983009808
      %v4443 = vunpack.c.0.s8 %v4442
      %v4444 = vlaneseq
      %v4445 = vshrl.u32 %v4444, 7
      %v4446 = vsub.s32 %v4443, %v4445
      %v4447 = vrot.slane %v4439, %v4446
      %v4449 = vunpack.c.l.s4 1983009808
      %v4450 = vunpack.c.0.s8 %v4449
      %v4451 = vlaneseq
      %v4452 = vshrl.u32 %v4451, 7
      %v4453 = vsub.s32 %v4450, %v4452
      %v4454 = vrot.slane %v4440, %v4453
      %v4455 = vcombine.low %v4399, %v4415
      %v4456 = vcombine.high %v4399, %v4415
      %v4458 = vunpack.c.l.s4 1934713408
      %v4459 = vunpack.c.0.s8 %v4458
      %v4460 = vlaneseq
      %v4461 = vshrl.u32 %v4460, 7
      %v4462 = vsub.s32 %v4459, %v4461
      %v4463 = vrot.slane %v4455, %v4462
      %v4465 = vunpack.c.l.s4 1934713408
      %v4466 = vunpack.c.0.s8 %v4465
      %v4467 = vlaneseq
      %v4468 = vshrl.u32 %v4467, 7
      %v4469 = vsub.s32 %v4466, %v4468
      %v4470 = vrot.slane %v4456, %v4469
      %v4471 = vcombine.low %v4406, %v4422
      %v4472 = vcombine.high %v4406, %v4422
      %v4474 = vunpack.c.l.s4 1934713408
      %v4475 = vunpack.c.0.s8 %v4474
      %v4476 = vlaneseq
      %v4477 = vshrl.u32 %v4476, 7
      %v4478 = vsub.s32 %v4475, %v4477
      %v4479 = vrot.slane %v4471, %v4478
      %v4481 = vunpack.c.l.s4 1934713408
      %v4482 = vunpack.c.0.s8 %v4481
      %v4483 = vlaneseq
      %v4484 = vshrl.u32 %v4483, 7
      %v4485 = vsub.s32 %v4482, %v4484
      %v4486 = vrot.slane %v4472, %v4485
      %v4487 = vcombine.low %v4431, %v4447
      %v4488 = vcombine.high %v4431, %v4447
      %v4490 = vunpack.c.l.s4 1934713408
      %v4491 = vunpack.c.0.s8 %v4490
      %v4492 = vlaneseq
      %v4493 = vshrl.u32 %v4492, 7
      %v4494 = vsub.s32 %v4491, %v4493
      %v4495 = vrot.slane %v4487, %v4494
      %v4497 = vunpack.c.l.s4 1934713408
      %v4498 = vunpack.c.0.s8 %v4497
      %v4499 = vlaneseq
      %v4500 = vshrl.u32 %v4499, 7
      %v4501 = vsub.s32 %v4498, %v4500
      %v4502 = vrot.slane %v4488, %v4501
      %v4503 = vcombine.low %v4438, %v4454
      %v4504 = vcombine.high %v4438, %v4454
      %v4506 = vunpack.c.l.s4 1934713408
      %v4507 = vunpack.c.0.s8 %v4506
      %v4508 = vlaneseq
      %v4509 = vshrl.u32 %v4508, 7
      %v4510 = vsub.s32 %v4507, %v4509
      %v4511 = vrot.slane %v4503, %v4510
      %v4513 = vunpack.c.l.s4 1934713408
      %v4514 = vunpack.c.0.s8 %v4513
      %v4515 = vlaneseq
      %v4516 = vshrl.u32 %v4515, 7
      %v4517 = vsub.s32 %v4514, %v4516
      %v4518 = vrot.slane %v4504, %v4517
      %v4519 = vcombine.low %v4463, %v4495
      %v4520 = vcombine.high %v4463, %v4495
      %v4521 = vcombine.low %v4470, %v4502
      %v4522 = vcombine.high %v4470, %v4502
      %v4523 = vcombine.low %v4479, %v4511
      %v4524 = vcombine.high %v4479, %v4511
      %v4525 = vcombine.low %v4486, %v4518
      %v4526 = vcombine.high %v4486, %v4518
      %v4527 = vcombine.low %v4375, %v4379
      %v4528 = vcombine.high %v4375, %v4379
      %v4530 = vunpack.c.l.s4 1983009808
      %v4531 = vunpack.c.0.s8 %v4530
      %v4532 = vlaneseq
      %v4533 = vshrl.u32 %v4532, 7
      %v4534 = vsub.s32 %v4531, %v4533
      %v4535 = vrot.slane %v4527, %v4534
      %v4537 = vunpack.c.l.s4 1983009808
      %v4538 = vunpack.c.0.s8 %v4537
      %v4539 = vlaneseq
      %v4540 = vshrl.u32 %v4539, 7
      %v4541 = vsub.s32 %v4538, %v4540
      %v4542 = vrot.slane %v4528, %v4541
      %v4543 = vcombine.low %v4377, %v4381
      %v4544 = vcombine.high %v4377, %v4381
      %v4546 = vunpack.c.l.s4 1983009808
      %v4547 = vunpack.c.0.s8 %v4546
      %v4548 = vlaneseq
      %v4549 = vshrl.u32 %v4548, 7
      %v4550 = vsub.s32 %v4547, %v4549
      %v4551 = vrot.slane %v4543, %v4550
      %v4553 = vunpack.c.l.s4 1983009808
      %v4554 = vunpack.c.0.s8 %v4553
      %v4555 = vlaneseq
      %v4556 = vshrl.u32 %v4555, 7
      %v4557 = vsub.s32 %v4554, %v4556
      %v4558 = vrot.slane %v4544, %v4557
      %v4559 = vcombine.low %v4383, %v4387
      %v4560 = vcombine.high %v4383, %v4387
      %v4562 = vunpack.c.l.s4 1983009808
      %v4563 = vunpack.c.0.s8 %v4562
      %v4564 = vlaneseq
      %v4565 = vshrl.u32 %v4564, 7
      %v4566 = vsub.s32 %v4563, %v4565
      %v4567 = vrot.slane %v4559, %v4566
      %v4569 = vunpack.c.l.s4 1983009808
      %v4570 = vunpack.c.0.s8 %v4569
      %v4571 = vlaneseq
      %v4572 = vshrl.u32 %v4571, 7
      %v4573 = vsub.s32 %v4570, %v4572
      %v4574 = vrot.slane %v4560, %v4573
      %v4575 = vcombine.low %v4385, %v4389
      %v4576 = vcombine.high %v4385, %v4389
      %v4578 = vunpack.c.l.s4 1983009808
      %v4579 = vunpack.c.0.s8 %v4578
      %v4580 = vlaneseq
      %v4581 = vshrl.u32 %v4580, 7
      %v4582 = vsub.s32 %v4579, %v4581
      %v4583 = vrot.slane %v4575, %v4582
      %v4585 = vunpack.c.l.s4 1983009808
      %v4586 = vunpack.c.0.s8 %v4585
      %v4587 = vlaneseq
      %v4588 = vshrl.u32 %v4587, 7
      %v4589 = vsub.s32 %v4586, %v4588
      %v4590 = vrot.slane %v4576, %v4589
      %v4591 = vcombine.low %v4535, %v4551
      %v4592 = vcombine.high %v4535, %v4551
      %v4594 = vunpack.c.l.s4 1934713408
      %v4595 = vunpack.c.0.s8 %v4594
      %v4596 = vlaneseq
      %v4597 = vshrl.u32 %v4596, 7
      %v4598 = vsub.s32 %v4595, %v4597
      %v4599 = vrot.slane %v4591, %v4598
      %v4601 = vunpack.c.l.s4 1934713408
      %v4602 = vunpack.c.0.s8 %v4601
      %v4603 = vlaneseq
      %v4604 = vshrl.u32 %v4603, 7
      %v4605 = vsub.s32 %v4602, %v4604
      %v4606 = vrot.slane %v4592, %v4605
      %v4607 = vcombine.low %v4542, %v4558
      %v4608 = vcombine.high %v4542, %v4558
      %v4610 = vunpack.c.l.s4 1934713408
      %v4611 = vunpack.c.0.s8 %v4610
      %v4612 = vlaneseq
      %v4613 = vshrl.u32 %v4612, 7
      %v4614 = vsub.s32 %v4611, %v4613
      %v4615 = vrot.slane %v4607, %v4614
      %v4617 = vunpack.c.l.s4 1934713408
      %v4618 = vunpack.c.0.s8 %v4617
      %v4619 = vlaneseq
      %v4620 = vshrl.u32 %v4619, 7
      %v4621 = vsub.s32 %v4618, %v4620
      %v4622 = vrot.slane %v4608, %v4621
      %v4623 = vcombine.low %v4567, %v4583
      %v4624 = vcombine.high %v4567, %v4583
      %v4626 = vunpack.c.l.s4 1934713408
      %v4627 = vunpack.c.0.s8 %v4626
      %v4628 = vlaneseq
      %v4629 = vshrl.u32 %v4628, 7
      %v4630 = vsub.s32 %v4627, %v4629
      %v4631 = vrot.slane %v4623, %v4630
      %v4633 = vunpack.c.l.s4 1934713408
      %v4634 = vunpack.c.0.s8 %v4633
      %v4635 = vlaneseq
      %v4636 = vshrl.u32 %v4635, 7
      %v4637 = vsub.s32 %v4634, %v4636
      %v4638 = vrot.slane %v4624, %v4637
      %v4639 = vcombine.low %v4574, %v4590
      %v4640 = vcombine.high %v4574, %v4590
      %v4642 = vunpack.c.l.s4 1934713408
      %v4643 = vunpack.c.0.s8 %v4642
      %v4644 = vlaneseq
      %v4645 = vshrl.u32 %v4644, 7
      %v4646 = vsub.s32 %v4643, %v4645
      %v4647 = vrot.slane %v4639, %v4646
      %v4649 = vunpack.c.l.s4 1934713408
      %v4650 = vunpack.c.0.s8 %v4649
      %v4651 = vlaneseq
      %v4652 = vshrl.u32 %v4651, 7
      %v4653 = vsub.s32 %v4650, %v4652
      %v4654 = vrot.slane %v4640, %v4653
      %v4655 = vcombine.low %v4599, %v4631
      %v4656 = vcombine.high %v4599, %v4631
      %v4657 = vcombine.low %v4606, %v4638
      %v4658 = vcombine.high %v4606, %v4638
      %v4659 = vcombine.low %v4615, %v4647
      %v4660 = vcombine.high %v4615, %v4647
      %v4661 = vcombine.low %v4622, %v4654
      %v4662 = vcombine.high %v4622, %v4654
      %v4663 = vcombine.low %v4360, %v4364
      %v4664 = vcombine.high %v4360, %v4364
      %v4666 = vunpack.c.l.s4 1983009808
      %v4667 = vunpack.c.0.s8 %v4666
      %v4668 = vlaneseq
      %v4669 = vshrl.u32 %v4668, 7
      %v4670 = vsub.s32 %v4667, %v4669
      %v4671 = vrot.slane %v4663, %v4670
      %v4673 = vunpack.c.l.s4 1983009808
      %v4674 = vunpack.c.0.s8 %v4673
      %v4675 = vlaneseq
      %v4676 = vshrl.u32 %v4675, 7
      %v4677 = vsub.s32 %v4674, %v4676
      %v4678 = vrot.slane %v4664, %v4677
      %v4679 = vcombine.low %v4362, %v4366
      %v4680 = vcombine.high %v4362, %v4366
      %v4682 = vunpack.c.l.s4 1983009808
      %v4683 = vunpack.c.0.s8 %v4682
      %v4684 = vlaneseq
      %v4685 = vshrl.u32 %v4684, 7
      %v4686 = vsub.s32 %v4683, %v4685
      %v4687 = vrot.slane %v4679, %v4686
      %v4689 = vunpack.c.l.s4 1983009808
      %v4690 = vunpack.c.0.s8 %v4689
      %v4691 = vlaneseq
      %v4692 = vshrl.u32 %v4691, 7
      %v4693 = vsub.s32 %v4690, %v4692
      %v4694 = vrot.slane %v4680, %v4693
      %v4695 = vcombine.low %v4368, %v4372
      %v4696 = vcombine.high %v4368, %v4372
      %v4698 = vunpack.c.l.s4 1983009808
      %v4699 = vunpack.c.0.s8 %v4698
      %v4700 = vlaneseq
      %v4701 = vshrl.u32 %v4700, 7
      %v4702 = vsub.s32 %v4699, %v4701
      %v4703 = vrot.slane %v4695, %v4702
      %v4705 = vunpack.c.l.s4 1983009808
      %v4706 = vunpack.c.0.s8 %v4705
      %v4707 = vlaneseq
      %v4708 = vshrl.u32 %v4707, 7
      %v4709 = vsub.s32 %v4706, %v4708
      %v4710 = vrot.slane %v4696, %v4709
      %v4711 = vcombine.low %v4370, %v4374
      %v4712 = vcombine.high %v4370, %v4374
      %v4714 = vunpack.c.l.s4 1983009808
      %v4715 = vunpack.c.0.s8 %v4714
      %v4716 = vlaneseq
      %v4717 = vshrl.u32 %v4716, 7
      %v4718 = vsub.s32 %v4715, %v4717
      %v4719 = vrot.slane %v4711, %v4718
      %v4721 = vunpack.c.l.s4 1983009808
      %v4722 = vunpack.c.0.s8 %v4721
      %v4723 = vlaneseq
      %v4724 = vshrl.u32 %v4723, 7
      %v4725 = vsub.s32 %v4722, %v4724
      %v4726 = vrot.slane %v4712, %v4725
      %v4727 = vcombine.low %v4671, %v4687
      %v4728 = vcombine.high %v4671, %v4687
      %v4730 = vunpack.c.l.s4 1934713408
      %v4731 = vunpack.c.0.s8 %v4730
      %v4732 = vlaneseq
      %v4733 = vshrl.u32 %v4732, 7
      %v4734 = vsub.s32 %v4731, %v4733
      %v4735 = vrot.slane %v4727, %v4734
      %v4737 = vunpack.c.l.s4 1934713408
      %v4738 = vunpack.c.0.s8 %v4737
      %v4739 = vlaneseq
      %v4740 = vshrl.u32 %v4739, 7
      %v4741 = vsub.s32 %v4738, %v4740
      %v4742 = vrot.slane %v4728, %v4741
      %v4743 = vcombine.low %v4678, %v4694
      %v4744 = vcombine.high %v4678, %v4694
      %v4746 = vunpack.c.l.s4 1934713408
      %v4747 = vunpack.c.0.s8 %v4746
      %v4748 = vlaneseq
      %v4749 = vshrl.u32 %v4748, 7
      %v4750 = vsub.s32 %v4747, %v4749
      %v4751 = vrot.slane %v4743, %v4750
      %v4753 = vunpack.c.l.s4 1934713408
      %v4754 = vunpack.c.0.s8 %v4753
      %v4755 = vlaneseq
      %v4756 = vshrl.u32 %v4755, 7
      %v4757 = vsub.s32 %v4754, %v4756
      %v4758 = vrot.slane %v4744, %v4757
      %v4759 = vcombine.low %v4703, %v4719
      %v4760 = vcombine.high %v4703, %v4719
      %v4762 = vunpack.c.l.s4 1934713408
      %v4763 = vunpack.c.0.s8 %v4762
      %v4764 = vlaneseq
      %v4765 = vshrl.u32 %v4764, 7
      %v4766 = vsub.s32 %v4763, %v4765
      %v4767 = vrot.slane %v4759, %v4766
      %v4769 = vunpack.c.l.s4 1934713408
      %v4770 = vunpack.c.0.s8 %v4769
      %v4771 = vlaneseq
      %v4772 = vshrl.u32 %v4771, 7
      %v4773 = vsub.s32 %v4770, %v4772
      %v4774 = vrot.slane %v4760, %v4773
      %v4775 = vcombine.low %v4710, %v4726
      %v4776 = vcombine.high %v4710, %v4726
      %v4778 = vunpack.c.l.s4 1934713408
      %v4779 = vunpack.c.0.s8 %v4778
      %v4780 = vlaneseq
      %v4781 = vshrl.u32 %v4780, 7
      %v4782 = vsub.s32 %v4779, %v4781
      %v4783 = vrot.slane %v4775, %v4782
      %v4785 = vunpack.c.l.s4 1934713408
      %v4786 = vunpack.c.0.s8 %v4785
      %v4787 = vlaneseq
      %v4788 = vshrl.u32 %v4787, 7
      %v4789 = vsub.s32 %v4786, %v4788
      %v4790 = vrot.slane %v4776, %v4789
      %v4791 = vcombine.low %v4735, %v4767
      %v4792 = vcombine.high %v4735, %v4767
      %v4793 = vcombine.low %v4742, %v4774
      %v4794 = vcombine.high %v4742, %v4774
      %v4795 = vcombine.low %v4751, %v4783
      %v4796 = vcombine.high %v4751, %v4783
      %v4797 = vcombine.low %v4758, %v4790
      %v4798 = vcombine.high %v4758, %v4790
      %v4799 = vcombine.low %v4376, %v4380
      %v4800 = vcombine.high %v4376, %v4380
      %v4802 = vunpack.c.l.s4 1983009808
      %v4803 = vunpack.c.0.s8 %v4802
      %v4804 = vlaneseq
      %v4805 = vshrl.u32 %v4804, 7
      %v4806 = vsub.s32 %v4803, %v4805
      %v4807 = vrot.slane %v4799, %v4806
      %v4809 = vunpack.c.l.s4 1983009808
      %v4810 = vunpack.c.0.s8 %v4809
      %v4811 = vlaneseq
      %v4812 = vshrl.u32 %v4811, 7
      %v4813 = vsub.s32 %v4810, %v4812
      %v4814 = vrot.slane %v4800, %v4813
      %v4815 = vcombine.low %v4378, %v4382
      %v4816 = vcombine.high %v4378, %v4382
      %v4818 = vunpack.c.l.s4 1983009808
      %v4819 = vunpack.c.0.s8 %v4818
      %v4820 = vlaneseq
      %v4821 = vshrl.u32 %v4820, 7
      %v4822 = vsub.s32 %v4819, %v4821
      %v4823 = vrot.slane %v4815, %v4822
      %v4825 = vunpack.c.l.s4 1983009808
      %v4826 = vunpack.c.0.s8 %v4825
      %v4827 = vlaneseq
      %v4828 = vshrl.u32 %v4827, 7
      %v4829 = vsub.s32 %v4826, %v4828
      %v4830 = vrot.slane %v4816, %v4829
      %v4831 = vcombine.low %v4384, %v4388
      %v4832 = vcombine.high %v4384, %v4388
      %v4834 = vunpack.c.l.s4 1983009808
      %v4835 = vunpack.c.0.s8 %v4834
      %v4836 = vlaneseq
      %v4837 = vshrl.u32 %v4836, 7
      %v4838 = vsub.s32 %v4835, %v4837
      %v4839 = vrot.slane %v4831, %v4838
      %v4841 = vunpack.c.l.s4 1983009808
      %v4842 = vunpack.c.0.s8 %v4841
      %v4843 = vlaneseq
      %v4844 = vshrl.u32 %v4843, 7
      %v4845 = vsub.s32 %v4842, %v4844
      %v4846 = vrot.slane %v4832, %v4845
      %v4847 = vcombine.low %v4386, %v4390
      %v4848 = vcombine.high %v4386, %v4390
      %v4850 = vunpack.c.l.s4 1983009808
      %v4851 = vunpack.c.0.s8 %v4850
      %v4852 = vlaneseq
      %v4853 = vshrl.u32 %v4852, 7
      %v4854 = vsub.s32 %v4851, %v4853
      %v4855 = vrot.slane %v4847, %v4854
      %v4857 = vunpack.c.l.s4 1983009808
      %v4858 = vunpack.c.0.s8 %v4857
      %v4859 = vlaneseq
      %v4860 = vshrl.u32 %v4859, 7
      %v4861 = vsub.s32 %v4858, %v4860
      %v4862 = vrot.slane %v4848, %v4861
      %v4863 = vcombine.low %v4807, %v4823
      %v4864 = vcombine.high %v4807, %v4823
      %v4866 = vunpack.c.l.s4 1934713408
      %v4867 = vunpack.c.0.s8 %v4866
      %v4868 = vlaneseq
      %v4869 = vshrl.u32 %v4868, 7
      %v4870 = vsub.s32 %v4867, %v4869
      %v4871 = vrot.slane %v4863, %v4870
      %v4873 = vunpack.c.l.s4 1934713408
      %v4874 = vunpack.c.0.s8 %v4873
      %v4875 = vlaneseq
      %v4876 = vshrl.u32 %v4875, 7
      %v4877 = vsub.s32 %v4874, %v4876
      %v4878 = vrot.slane %v4864, %v4877
      %v4879 = vcombine.low %v4814, %v4830
      %v4880 = vcombine.high %v4814, %v4830
      %v4882 = vunpack.c.l.s4 1934713408
      %v4883 = vunpack.c.0.s8 %v4882
      %v4884 = vlaneseq
      %v4885 = vshrl.u32 %v4884, 7
      %v4886 = vsub.s32 %v4883, %v4885
      %v4887 = vrot.slane %v4879, %v4886
      %v4889 = vunpack.c.l.s4 1934713408
      %v4890 = vunpack.c.0.s8 %v4889
      %v4891 = vlaneseq
      %v4892 = vshrl.u32 %v4891, 7
      %v4893 = vsub.s32 %v4890, %v4892
      %v4894 = vrot.slane %v4880, %v4893
      %v4895 = vcombine.low %v4839, %v4855
      %v4896 = vcombine.high %v4839, %v4855
      %v4898 = vunpack.c.l.s4 1934713408
      %v4899 = vunpack.c.0.s8 %v4898
      %v4900 = vlaneseq
      %v4901 = vshrl.u32 %v4900, 7
      %v4902 = vsub.s32 %v4899, %v4901
      %v4903 = vrot.slane %v4895, %v4902
      %v4905 = vunpack.c.l.s4 1934713408
      %v4906 = vunpack.c.0.s8 %v4905
      %v4907 = vlaneseq
      %v4908 = vshrl.u32 %v4907, 7
      %v4909 = vsub.s32 %v4906, %v4908
      %v4910 = vrot.slane %v4896, %v4909
      %v4911 = vcombine.low %v4846, %v4862
      %v4912 = vcombine.high %v4846, %v4862
      %v4914 = vunpack.c.l.s4 1934713408
      %v4915 = vunpack.c.0.s8 %v4914
      %v4916 = vlaneseq
      %v4917 = vshrl.u32 %v4916, 7
      %v4918 = vsub.s32 %v4915, %v4917
      %v4919 = vrot.slane %v4911, %v4918
      %v4921 = vunpack.c.l.s4 1934713408
      %v4922 = vunpack.c.0.s8 %v4921
      %v4923 = vlaneseq
      %v4924 = vshrl.u32 %v4923, 7
      %v4925 = vsub.s32 %v4922, %v4924
      %v4926 = vrot.slane %v4912, %v4925
      %v4927 = vcombine.low %v4871, %v4903
      %v4928 = vcombine.high %v4871, %v4903
      %v4929 = vcombine.low %v4878, %v4910
      %v4930 = vcombine.high %v4878, %v4910
      %v4931 = vcombine.low %v4887, %v4919
      %v4932 = vcombine.high %v4887, %v4919
      %v4933 = vcombine.low %v4894, %v4926
      %v4934 = vcombine.high %v4894, %v4926
      %4937 = vrot.lane.b32.xlu0 %v4520, 8
      %v4938 = vpop.permute.xlu0 %4937
      %4939 = vrot.lane.b32.xlu0 %v4656, 8
      %v4940 = vpop.permute.xlu0 %4939
      %4945 = vrot.lane.b32.xlu0 %v4521, 16
      %v4946 = vpop.permute.xlu0 %4945
      %4947 = vrot.lane.b32.xlu0 %v4657, 16
      %v4948 = vpop.permute.xlu0 %4947
      %4953 = vrot.lane.b32.xlu0 %v4522, 24
      %v4954 = vpop.permute.xlu0 %4953
      %4955 = vrot.lane.b32.xlu0 %v4658, 24
      %v4956 = vpop.permute.xlu0 %4955
      %4961 = vrot.lane.b32.xlu0 %v4523, 32
      %v4962 = vpop.permute.xlu0 %4961
      %4963 = vrot.lane.b32.xlu0 %v4659, 32
      %v4964 = vpop.permute.xlu0 %4963
      %4969 = vrot.lane.b32.xlu0 %v4524, 40
      %v4970 = vpop.permute.xlu0 %4969
      %4971 = vrot.lane.b32.xlu0 %v4660, 40
      %v4972 = vpop.permute.xlu0 %4971
      %4977 = vrot.lane.b32.xlu0 %v4525, 48
      %v4978 = vpop.permute.xlu0 %4977
      %4979 = vrot.lane.b32.xlu0 %v4661, 48
      %v4980 = vpop.permute.xlu0 %4979
      %4985 = vrot.lane.b32.xlu0 %v4526, 56
      %v4986 = vpop.permute.xlu0 %4985
      %4987 = vrot.lane.b32.xlu0 %v4662, 56
      %v4988 = vpop.permute.xlu0 %4987
      %4993 = vrot.lane.b32.xlu0 %v4791, 64
      %v4994 = vpop.permute.xlu0 %4993
      %4995 = vrot.lane.b32.xlu0 %v4927, 64
      %v4996 = vpop.permute.xlu0 %4995
      %5001 = vrot.lane.b32.xlu0 %v4792, 72
      %v5002 = vpop.permute.xlu0 %5001
      %5003 = vrot.lane.b32.xlu0 %v4928, 72
      %v5004 = vpop.permute.xlu0 %5003
      %5009 = vrot.lane.b32.xlu0 %v4793, 80
      %v5010 = vpop.permute.xlu0 %5009
      %5011 = vrot.lane.b32.xlu0 %v4929, 80
      %v5012 = vpop.permute.xlu0 %5011
      %5017 = vrot.lane.b32.xlu0 %v4794, 88
      %v5018 = vpop.permute.xlu0 %5017
      %5019 = vrot.lane.b32.xlu0 %v4930, 88
      %v5020 = vpop.permute.xlu0 %5019
      %5025 = vrot.lane.b32.xlu0 %v4795, 96
      %v5026 = vpop.permute.xlu0 %5025
      %5027 = vrot.lane.b32.xlu0 %v4931, 96
      %v5028 = vpop.permute.xlu0 %5027
      %5033 = vrot.lane.b32.xlu0 %v4796, 104
      %v5034 = vpop.permute.xlu0 %5033
      %5035 = vrot.lane.b32.xlu0 %v4932, 104
      %v5036 = vpop.permute.xlu0 %5035
      %5041 = vrot.lane.b32.xlu0 %v4797, 112
      %v5042 = vpop.permute.xlu0 %5041
      %5043 = vrot.lane.b32.xlu0 %v4933, 112
      %v5044 = vpop.permute.xlu0 %5043
      %5049 = vrot.lane.b32.xlu0 %v4798, 120
      %v5050 = vpop.permute.xlu0 %5049
      %5051 = vrot.lane.b32.xlu0 %v4934, 120
      %v5052 = vpop.permute.xlu0 %5051
      %v5055 = vsel %vm280, %v4519, %v4938
      %v5056 = vsel %vm280, %v4655, %v4940
      %v5057 = vsel %vm1778, %v5055, %v4946
      %v5058 = vsel %vm1778, %v5056, %v4948
      %v5059 = vsel %vm1811, %v5057, %v4954
      %v5060 = vsel %vm1811, %v5058, %v4956
      %v5061 = vsel %vm1844, %v5059, %v4962
      %v5062 = vsel %vm1844, %v5060, %v4964
      %v5063 = vsel %vm1877, %v5061, %v4970
      %v5064 = vsel %vm1877, %v5062, %v4972
      %v5065 = vsel %vm1910, %v5063, %v4978
      %v5066 = vsel %vm1910, %v5064, %v4980
      %v5067 = vsel %vm1943, %v5065, %v4986
      %v5068 = vsel %vm1943, %v5066, %v4988
      %v5069 = vsel %vm1976, %v5067, %v4994
      %v5070 = vsel %vm1976, %v5068, %v4996
      %v5071 = vsel %vm2061, %v5069, %v5002
      %v5072 = vsel %vm2061, %v5070, %v5004
      %vm5073 = vcmask 654336
      %v5074 = vsel %vm5073, %v5071, %v5010
      %v5075 = vsel %vm5073, %v5072, %v5012
      %vm5076 = vcmask 719872
      %v5077 = vsel %vm5076, %v5074, %v5018
      %v5078 = vsel %vm5076, %v5075, %v5020
      %vm5079 = vcmask 785408
      %v5080 = vsel %vm5079, %v5077, %v5026
      %v5081 = vsel %vm5079, %v5078, %v5028
      %vm5082 = vcmask 850944
      %v5083 = vsel %vm5082, %v5080, %v5034
      %v5084 = vsel %vm5082, %v5081, %v5036
      %vm5085 = vcmask 916480
      %v5086 = vsel %vm5085, %v5083, %v5042
      %v5087 = vsel %vm5085, %v5084, %v5044
      %vm5088 = vcmask 982016
      %v5089 = vsel %vm5088, %v5086, %v5050
      %v5090 = vsel %vm5088, %v5087, %v5052
      %5091 = vst [vmem:[%s278] sm:$0xff] %v5089
      %5092 = vst [vmem:[%s278 + $0x8] sm:$0xff] %v5090
      %p5093 = scmp.lt.s32.totalorder %s18, 1
      %s5094 = scalar_select %p5093, %s18, 1
      %s5095 = smul.addr %s5094, 2
      %s5096 = smul.addr %s5095, 8
      %s5097 = scalar_lea.vmem %s7, %s5096
      // Predicated region
      $region49: #{basic_block_forward.1} parent=47 // pred_check
        %p5098 = pneg %p188
      $region50: #{basic_block_forward.1} parent=47 // pred_check_branch
        %5100 = sbr.rel (%p5098) target = $region52
      $region51: #{basic_block_forward.1} parent=47 // pred_region
        _
      $region52: #{basic_block_forward.1} parent=47 // pred_fallthru
        _
    $region48: #{basic_block_forward.1} parent=5 // pred_fallthru
      _
    %p5101 = scmp.le.s32.totalorder 2, %s13
    // Predicated region
    $region53: #{basic_block_forward.1} parent=5 // pred_check
      %p5102 = pneg %p5101
    $region54: #{basic_block_forward.1} parent=5 // pred_check_branch
      %5104 = sbr.rel (%p5102) target = $region56
    $region55: #{basic_block_forward.1} parent=5 // pred_region
      %s5105 = ssub.s32 %s13, 2
      // Predicated region
      $region57: #{basic_block_forward.1} parent=55 // pred_check
        %p5106 = pneg %p194
      $region58: #{basic_block_forward.1} parent=55 // pred_check_branch
        %5108 = sbr.rel (%p5106) target = $region60
      $region59: #{basic_block_forward.1} parent=55 // pred_region
        %p5109 = scmp.lt.s32.totalorder %s19, 1
        %s5110 = scalar_select %p5109, %s19, 1
        %s5111 = smul.addr %s5110, 2
        %s5112 = smul.addr %s5111, 8
        %s5113 = scalar_lea.vmem %s7, %s5112
      $region60: #{basic_block_forward.1} parent=55 // pred_fallthru
        _
    $region56: #{basic_block_forward.1} parent=5 // pred_fallthru
      _
  $region6: #{basic_block_forward.1} parent=0 // loop_footer
    %s17 = sadd.s32 1, %s13
  $region7: #{basic_block_forward.1} parent=0 // loop_footer_branch
    %12 = sbr.rel target = $region3
  $region8: #{basic_block_forward.1} parent=0 // loop_exit
    _

</llo_original>
